<compile_context>
chip_gen: v7x
topology: tpu7x:2x2x1
jax: 0.10.0
libtpu: 0.0.40
codegen_flags: <defaults>
</compile_context>

<pallas_src>
import math

import jax
import jax.numpy as jnp
from jax.experimental import pallas as pl

# ----------------------------- config (small) ------------------------------
B = 2            # batch
S = 8            # sequence length
H = 32           # hidden size
NH = 2           # attention heads
DH = H // NH     # head dim
FF = 64          # FFN intermediate size
VOCAB = 50
PAD_VOCAB = 56   # VOCAB rounded up to a sublane multiple (zero-padded rows)
EMB_ROWS = PAD_VOCAB + S   # word rows + position rows in the embedding slab
NUM_CLASSES = 4
NUM_LAYERS = 2
E1_TOKEN = 3     # entity-one start token id
E2_TOKEN = 4     # entity-two start token id
ENC_EPS = 1e-12  # BERT encoder LayerNorm eps
HEAD_EPS = 1e-5  # torch.nn.LayerNorm default eps (classifier head)
SCALE = 1.0 / math.sqrt(DH)

# packed per-layer vector rows (layer_vecs[l] has shape [8, 3*H])
_R_BQKV, _R_BO, _R_LN1G, _R_LN1B, _R_B1, _R_B2, _R_LN2G, _R_LN2B = range(8)
# packed head/embedding vector rows (head_vecs has shape [8, H])
_R_EMBG, _R_EMBB, _R_HG1, _R_HG2, _R_HB1, _R_HB2, _R_HBIAS, _R_UNUSED = range(8)


# ------------------------------ fused kernel --------------------------------
def _layernorm(x, g, b, eps):
    mu = jnp.mean(x, axis=-1, keepdims=True)
    var = jnp.mean((x - mu) ** 2, axis=-1, keepdims=True)
    return (x - mu) * jax.lax.rsqrt(var + eps) * g + b


def _softmax_lastdim(s):
    m = jnp.max(s, axis=-1, keepdims=True)
    p = jnp.exp(s - m)
    # denominator reciprocal on the (otherwise idle) EUP slot
    return p * pl.reciprocal(jnp.sum(p, axis=-1, keepdims=True), approx=True)


def _fused_forward_kernel(tok_ref, amask_ref, emb_ref, wh_ref, w2_ref,
                          lvec_ref, hvec_ref, head_w_ref, o_ref):
    f32 = jnp.float32
    bs = B * S

    tok = tok_ref[...]                       # [B, S] int32
    amask = amask_ref[...]                   # [B, S] int32
    hv = hvec_ref[...]                       # [8, H] packed head/emb vectors

    # ---- embeddings: word + position lookup fused into ONE one-hot matmul --
    col = jax.lax.broadcasted_iota(jnp.int32, (B, S, EMB_ROWS), 2)
    pos = jax.lax.broadcasted_iota(jnp.int32, (B, S, EMB_ROWS), 1) + PAD_VOCAB
    sel = jnp.logical_or(col == tok[:, :, None], col == pos)
    sel = sel.reshape(bs, EMB_ROWS).astype(f32)                       # [bs, 64]
    x = jnp.dot(sel, emb_ref[...], preferred_element_type=f32)        # [bs, H]
    x = _layernorm(x, hv[_R_EMBG:_R_EMBG + 1], hv[_R_EMBB:_R_EMBB + 1], ENC_EPS)

    # additive attention mask (HF BERT convention): 0 keep, -10000 pad  [B, S]
    add_mask = (1.0 - amask.astype(f32)) * -10000.0

    # ---- transformer encoder layers (unrolled; weight slabs resident) ------
    for l in range(NUM_LAYERS):
        wl = wh_ref[l]                        # [H, 3H + H + FF] = wqkv|wo|w1
        lv = lvec_ref[l]                      # [8, 3H] packed vectors
        wqkv = wl[:, :3 * H]
        wo = wl[:, 3 * H:4 * H]
        w1 = wl[:, 4 * H:4 * H + FF]
        w2 = w2_ref[l]                        # [FF, H]

        # fused Q|K|V projection: one [bs, H] x [H, 3H] MXU push
        qkv = (jnp.dot(x, wqkv, preferred_element_type=f32)
               + lv[_R_BQKV:_R_BQKV + 1, :3 * H])                     # [bs, 3H]

        ctx_heads = []
        # TODO(synk): NH=2 static unroll; a two-batch-dim einsum over all heads
        #             is not guaranteed to lower in Mosaic, so heads stay
        #             unrolled (3-D single-batch einsums only).
        for n in range(NH):
            q = qkv[:, n * DH:(n + 1) * DH].reshape(B, S, DH)
            k = qkv[:, H + n * DH:H + (n + 1) * DH].reshape(B, S, DH)
            v = qkv[:, 2 * H + n * DH:2 * H + (n + 1) * DH].reshape(B, S, DH)
            s = jnp.einsum("bqd,bkd->bqk", q, k,
                           preferred_element_type=f32) * SCALE
            p = _softmax_lastdim(s + add_mask[:, None, :])
            c = jnp.einsum("bqk,bkd->bqd", p, v, preferred_element_type=f32)
            ctx_heads.append(c.reshape(bs, DH))
        ctx = jnp.concatenate(ctx_heads, axis=-1)                     # [bs, H]

        attn = (jnp.dot(ctx, wo, preferred_element_type=f32)
                + lv[_R_BO:_R_BO + 1, :H])
        x = _layernorm(x + attn, lv[_R_LN1G:_R_LN1G + 1, :H],
                       lv[_R_LN1B:_R_LN1B + 1, :H], ENC_EPS)

        ff = (jnp.dot(x, w1, preferred_element_type=f32)
              + lv[_R_B1:_R_B1 + 1, :FF])
        # TODO(synk): HF BERT uses exact erf-GELU; tanh approximation used here
        #             (erf has no guaranteed Mosaic lowering).
        ff = jax.nn.gelu(ff, approximate=True)
        ff = (jnp.dot(ff, w2, preferred_element_type=f32)
              + lv[_R_B2:_R_B2 + 1, :H])
        x = _layernorm(x + ff, lv[_R_LN2G:_R_LN2G + 1, :H],
                       lv[_R_LN2B:_R_LN2B + 1, :H], ENC_EPS)

    # ---- RelationshipEncoder head (pool -> LN(2H) -> Linear) ---------------
    h3 = x.reshape(B, S, H)
    m1 = (tok == E1_TOKEN).astype(f32)[:, :, None]
    m2 = (tok == E2_TOKEN).astype(f32)[:, :, None]
    e1 = jnp.sum(m1 * h3, axis=1)                                     # [B, H]
    e2 = jnp.sum(m2 * h3, axis=1)                                     # [B, H]

    # LayerNorm over the virtual [e1 | e2] concat without a lane-axis concat:
    # statistics over both halves, then normalize each half separately.
    mu = (jnp.sum(e1, -1, keepdims=True)
          + jnp.sum(e2, -1, keepdims=True)) / (2.0 * H)
    d1 = e1 - mu
    d2 = e2 - mu
    var = (jnp.sum(d1 * d1, -1, keepdims=True)
           + jnp.sum(d2 * d2, -1, keepdims=True)) / (2.0 * H)
    inv = jax.lax.rsqrt(var + HEAD_EPS)
    e1n = d1 * inv * hv[_R_HG1:_R_HG1 + 1] + hv[_R_HB1:_R_HB1 + 1]
    e2n = d2 * inv * hv[_R_HG2:_R_HG2 + 1] + hv[_R_HB2:_R_HB2 + 1]

    head_w = head_w_ref[...]                                          # [2H, C]
    logits = (jnp.dot(e1n, head_w[:H], preferred_element_type=f32)
              + jnp.dot(e2n, head_w[H:], preferred_element_type=f32)
              + hv[_R_HBIAS:_R_HBIAS + 1, :NUM_CLASSES])
    o_ref[...] = logits.astype(o_ref.dtype)


# ------------------------------ forward wrapper ------------------------------
@jax.jit
def relationship_encoder_forward(params, token_ids, attention_mask):
    """Full RelationshipEncoder forward in a single fused Pallas kernel."""
    bsz = token_ids.shape[0]
    return pl.pallas_call(
        _fused_forward_kernel,
        out_shape=jax.ShapeDtypeStruct((bsz, NUM_CLASSES), jnp.float32),
    )(token_ids.astype(jnp.int32),
      attention_mask.astype(jnp.int32),
      params["emb_slab"],
      params["w_slab_h"],
      params["w2_slab"],
      params["layer_vecs"],
      params["head_vecs"],
      params["head_w"])


# ------------------------------ param init ----------------------------------
def init_params(key):
    ks = iter(jax.random.split(key, 32))

    def nrm(shape, scale=0.02):
        return jax.random.normal(next(ks), shape, jnp.float32) * scale

    # Embedding slab: rows [0, VOCAB) word embeddings, [VOCAB, PAD_VOCAB) zero
    # padding, [PAD_VOCAB, PAD_VOCAB+S) position embeddings (token-type-0
    # embedding folded in).
    emb_slab = jnp.zeros((EMB_ROWS, H), jnp.float32)
    emb_slab = emb_slab.at[:VOCAB].set(nrm((VOCAB, H)))
    emb_slab = emb_slab.at[PAD_VOCAB:].set(nrm((S, H)) + nrm((1, H)))

    # Per-layer matmul weights packed as  wqkv | wo | w1  along the lane axis.
    w_slab_h = jnp.stack(
        [jnp.concatenate([nrm((H, 3 * H)), nrm((H, H)), nrm((H, FF))], axis=1)
         for _ in range(NUM_LAYERS)], axis=0)              # [L, H, 3H+H+FF]
    w2_slab = jnp.stack([nrm((FF, H)) for _ in range(NUM_LAYERS)], axis=0)

    # Per-layer bias / LayerNorm vectors: one [8, 3H] row block per layer.
    layer_vecs = jnp.zeros((NUM_LAYERS, 8, 3 * H), jnp.float32)
    layer_vecs = layer_vecs.at[:, _R_LN1G, :H].set(1.0)
    layer_vecs = layer_vecs.at[:, _R_LN2G, :H].set(1.0)

    # Embedding-LN + head-LN + head-bias vectors packed into one [8, H] slab.
    head_vecs = jnp.zeros((8, H), jnp.float32)
    head_vecs = head_vecs.at[_R_EMBG].set(1.0)
    head_vecs = head_vecs.at[_R_HG1].set(1.0)
    head_vecs = head_vecs.at[_R_HG2].set(1.0)

    head_w = nrm((2 * H, NUM_CLASSES))

    return {"emb_slab": emb_slab,
            "w_slab_h": w_slab_h,
            "w2_slab": w2_slab,
            "layer_vecs": layer_vecs,
            "head_vecs": head_vecs,
            "head_w": head_w}


# ---------------------------------- main -------------------------------------
if __name__ == "__main__":
    key = jax.random.PRNGKey(0)
    pkey, tkey = jax.random.split(key)
    params = init_params(pkey)

    # Deterministic inputs: token ids with entity-start markers inserted.
    token_ids = jax.random.randint(tkey, (B, S), 5, VOCAB, dtype=jnp.int32)
    token_ids = token_ids.at[:, 1].set(E1_TOKEN)   # entity-one start token
    token_ids = token_ids.at[:, 4].set(E2_TOKEN)   # entity-two start token
    attention_mask = jnp.ones((B, S), dtype=jnp.int32)
    attention_mask = attention_mask.at[1, S - 1].set(0)  # one padded position

    logits = relationship_encoder_forward(params, token_ids, attention_mask)
    logits = jax.block_until_ready(logits)
    assert logits.shape == (B, NUM_CLASSES)
    assert bool(jnp.all(jnp.isfinite(logits)))
    print("KERNEL_OK")
</pallas_src>

<mosaic_0001>
module attributes {stable_mosaic.version = 11 : i64} {
  func.func @_fused_forward_kernel(%arg0: memref<2x8xi32, #tpu.memory_space<vmem>>, %arg1: memref<2x8xi32, #tpu.memory_space<vmem>>, %arg2: memref<64x32xf32, #tpu.memory_space<vmem>>, %arg3: memref<2x32x192xf32, #tpu.memory_space<vmem>>, %arg4: memref<2x64x32xf32, #tpu.memory_space<vmem>>, %arg5: memref<2x8x96xf32, #tpu.memory_space<vmem>>, %arg6: memref<8x32xf32, #tpu.memory_space<vmem>>, %arg7: memref<64x4xf32, #tpu.memory_space<vmem>>, %arg8: memref<2x4xf32, #tpu.memory_space<vmem>>) attributes {dimension_semantics = [], scalar_prefetch = 0 : i64, scratch_operands = 0 : i64, tpu.core_type = #tpu.core_type<tc>} {
    %c0 = arith.constant 0 : index
    %c0_0 = arith.constant 0 : index
    %0 = vector.load %arg0[%c0, %c0_0] : memref<2x8xi32, #tpu.memory_space<vmem>>, vector<2x8xi32>
    %c0_1 = arith.constant 0 : index
    %c0_2 = arith.constant 0 : index
    %1 = vector.load %arg1[%c0_1, %c0_2] : memref<2x8xi32, #tpu.memory_space<vmem>>, vector<2x8xi32>
    %c0_3 = arith.constant 0 : index
    %c0_4 = arith.constant 0 : index
    %2 = vector.load %arg6[%c0_3, %c0_4] : memref<8x32xf32, #tpu.memory_space<vmem>>, vector<8x32xf32>
    %3 = tpu.iota {dimensions = array<i32: 2>} : vector<2x8x64xi32>
    %4 = tpu.iota {dimensions = array<i32: 1>} : vector<2x8x64xi32>
    %c56_i32 = arith.constant 56 : i32
    %5 = vector.broadcast %c56_i32 : i32 to vector<2x8x64xi32>
    %6 = arith.addi %4, %5 : vector<2x8x64xi32>
    %7 = vector.shape_cast %0 : vector<2x8xi32> to vector<2x8x1xi32>
    %8 = vector.broadcast %7 : vector<2x8x1xi32> to vector<2x8x64xi32>
    %9 = arith.cmpi eq, %3, %8 : vector<2x8x64xi32>
    %10 = arith.cmpi eq, %3, %6 : vector<2x8x64xi32>
    %11 = arith.ori %9, %10 : vector<2x8x64xi1>
    %12 = vector.shape_cast %11 : vector<2x8x64xi1> to vector<16x64xi1>
    %13 = arith.extui %12 : vector<16x64xi1> to vector<16x64xi32>
    %14 = arith.sitofp %13 : vector<16x64xi32> to vector<16x64xf32>
    %c0_5 = arith.constant 0 : index
    %c0_6 = arith.constant 0 : index
    %15 = vector.load %arg2[%c0_5, %c0_6] : memref<64x32xf32, #tpu.memory_space<vmem>>, vector<64x32xf32>
    %cst = arith.constant dense<0.000000e+00> : vector<16x32xf32>
    %16 = tpu.matmul %14, %15, %cst {dimension_numbers = #tpu.dot_dimension_numbers<[1], [0], [0], [1], [0, 0, 1, 1], [], []>} : vector<16x64xf32>, vector<64x32xf32>, vector<16x32xf32> -> vector<16x32xf32>
    %17 = vector.extract_strided_slice %2 {offsets = [0, 0], sizes = [1, 32], strides = [1, 1]} : vector<8x32xf32> to vector<1x32xf32>
    %18 = vector.extract_strided_slice %2 {offsets = [1, 0], sizes = [1, 32], strides = [1, 1]} : vector<8x32xf32> to vector<1x32xf32>
    %cst_7 = arith.constant dense<0.000000e+00> : vector<16xf32>
    %19 = vector.multi_reduction <add>, %16, %cst_7 [1] : vector<16x32xf32> to vector<16xf32>
    %20 = vector.shape_cast %19 : vector<16xf32> to vector<16x1xf32>
    %cst_8 = arith.constant 3.200000e+01 : f32
    %21 = vector.broadcast %cst_8 : f32 to vector<16x1xf32>
    %22 = arith.divf %20, %21 : vector<16x1xf32>
    %23 = vector.broadcast %22 : vector<16x1xf32> to vector<16x32xf32>
    %24 = arith.subf %16, %23 : vector<16x32xf32>
    %25 = arith.mulf %24, %24 : vector<16x32xf32>
    %cst_9 = arith.constant dense<0.000000e+00> : vector<16xf32>
    %26 = vector.multi_reduction <add>, %25, %cst_9 [1] : vector<16x32xf32> to vector<16xf32>
    %27 = vector.shape_cast %26 : vector<16xf32> to vector<16x1xf32>
    %cst_10 = arith.constant 3.200000e+01 : f32
    %28 = vector.broadcast %cst_10 : f32 to vector<16x1xf32>
    %29 = arith.divf %27, %28 : vector<16x1xf32>
    %30 = vector.broadcast %22 : vector<16x1xf32> to vector<16x32xf32>
    %31 = arith.subf %16, %30 : vector<16x32xf32>
    %cst_11 = arith.constant 9.99999996E-13 : f32
    %32 = vector.broadcast %cst_11 : f32 to vector<16x1xf32>
    %33 = arith.addf %29, %32 : vector<16x1xf32>
    %34 = math.rsqrt %33 : vector<16x1xf32>
    %35 = vector.broadcast %34 : vector<16x1xf32> to vector<16x32xf32>
    %36 = arith.mulf %31, %35 : vector<16x32xf32>
    %37 = vector.broadcast %17 : vector<1x32xf32> to vector<16x32xf32>
    %38 = arith.mulf %36, %37 : vector<16x32xf32>
    %39 = vector.broadcast %18 : vector<1x32xf32> to vector<16x32xf32>
    %40 = arith.addf %38, %39 : vector<16x32xf32>
    %41 = arith.sitofp %1 : vector<2x8xi32> to vector<2x8xf32>
    %cst_12 = arith.constant 1.000000e+00 : f32
    %42 = vector.broadcast %cst_12 : f32 to vector<2x8xf32>
    %43 = arith.subf %42, %41 : vector<2x8xf32>
    %cst_13 = arith.constant -1.000000e+04 : f32
    %44 = vector.broadcast %cst_13 : f32 to vector<2x8xf32>
    %45 = arith.mulf %43, %44 : vector<2x8xf32>
    %c0_14 = arith.constant 0 : index
    %c0_15 = arith.constant 0 : index
    %c0_16 = arith.constant 0 : index
    %46 = vector.load %arg3[%c0_14, %c0_15, %c0_16] : memref<2x32x192xf32, #tpu.memory_space<vmem>>, vector<1x32x192xf32>
    %47 = vector.shape_cast %46 : vector<1x32x192xf32> to vector<32x192xf32>
    %c0_17 = arith.constant 0 : index
    %c0_18 = arith.constant 0 : index
    %c0_19 = arith.constant 0 : index
    %48 = vector.load %arg5[%c0_17, %c0_18, %c0_19] : memref<2x8x96xf32, #tpu.memory_space<vmem>>, vector<1x8x96xf32>
    %49 = vector.shape_cast %48 : vector<1x8x96xf32> to vector<8x96xf32>
    %50 = vector.extract_strided_slice %47 {offsets = [0, 0], sizes = [32, 96], strides = [1, 1]} : vector<32x192xf32> to vector<32x96xf32>
    %51 = vector.extract_strided_slice %47 {offsets = [0, 96], sizes = [32, 32], strides = [1, 1]} : vector<32x192xf32> to vector<32x32xf32>
    %52 = vector.extract_strided_slice %47 {offsets = [0, 128], sizes = [32, 64], strides = [1, 1]} : vector<32x192xf32> to vector<32x64xf32>
    %c0_20 = arith.constant 0 : index
    %c0_21 = arith.constant 0 : index
    %c0_22 = arith.constant 0 : index
    %53 = vector.load %arg4[%c0_20, %c0_21, %c0_22] : memref<2x64x32xf32, #tpu.memory_space<vmem>>, vector<1x64x32xf32>
    %54 = vector.shape_cast %53 : vector<1x64x32xf32> to vector<64x32xf32>
    %cst_23 = arith.constant dense<0.000000e+00> : vector<16x96xf32>
    %55 = tpu.matmul %40, %50, %cst_23 {dimension_numbers = #tpu.dot_dimension_numbers<[1], [0], [0], [1], [0, 0, 1, 1], [], []>} : vector<16x32xf32>, vector<32x96xf32>, vector<16x96xf32> -> vector<16x96xf32>
    %56 = vector.extract_strided_slice %49 {offsets = [0, 0], sizes = [1, 96], strides = [1, 1]} : vector<8x96xf32> to vector<1x96xf32>
    %57 = vector.broadcast %56 : vector<1x96xf32> to vector<16x96xf32>
    %58 = arith.addf %55, %57 : vector<16x96xf32>
    %59 = vector.extract_strided_slice %58 {offsets = [0, 0], sizes = [16, 16], strides = [1, 1]} : vector<16x96xf32> to vector<16x16xf32>
    %60 = vector.shape_cast %59 : vector<16x16xf32> to vector<2x8x16xf32>
    %61 = vector.extract_strided_slice %58 {offsets = [0, 32], sizes = [16, 16], strides = [1, 1]} : vector<16x96xf32> to vector<16x16xf32>
    %62 = vector.shape_cast %61 : vector<16x16xf32> to vector<2x8x16xf32>
    %63 = vector.extract_strided_slice %58 {offsets = [0, 64], sizes = [16, 16], strides = [1, 1]} : vector<16x96xf32> to vector<16x16xf32>
    %64 = vector.shape_cast %63 : vector<16x16xf32> to vector<2x8x16xf32>
    "tpu.trace_start"() <{level = 10 : i32, message = "bqd,bkd->bqk"}> : () -> ()
    %cst_24 = arith.constant dense<0.000000e+00> : vector<2x8x8xf32>
    %65 = tpu.matmul %60, %62, %cst_24 {dimension_numbers = #tpu.dot_dimension_numbers<[2], [2], [1], [1], [0, 0, 0, 1, 1, 1], [0], [0]>} : vector<2x8x16xf32>, vector<2x8x16xf32>, vector<2x8x8xf32> -> vector<2x8x8xf32>
    "tpu.trace_stop"() : () -> ()
    %cst_25 = arith.constant 2.500000e-01 : f32
    %66 = vector.broadcast %cst_25 : f32 to vector<2x8x8xf32>
    %67 = arith.mulf %65, %66 : vector<2x8x8xf32>
    %68 = vector.shape_cast %45 : vector<2x8xf32> to vector<2x1x8xf32>
    %69 = vector.broadcast %68 : vector<2x1x8xf32> to vector<2x8x8xf32>
    %70 = arith.addf %67, %69 : vector<2x8x8xf32>
    %cst_26 = arith.constant dense<0xFF800000> : vector<2x8xf32>
    %71 = vector.multi_reduction <maximumf>, %70, %cst_26 [2] : vector<2x8x8xf32> to vector<2x8xf32>
    %72 = vector.shape_cast %71 : vector<2x8xf32> to vector<2x8x1xf32>
    %73 = vector.broadcast %72 : vector<2x8x1xf32> to vector<2x8x8xf32>
    %74 = arith.subf %70, %73 : vector<2x8x8xf32>
    %75 = math.exp %74 : vector<2x8x8xf32>
    %cst_27 = arith.constant dense<0.000000e+00> : vector<2x8xf32>
    %76 = vector.multi_reduction <add>, %75, %cst_27 [2] : vector<2x8x8xf32> to vector<2x8xf32>
    %77 = vector.shape_cast %76 : vector<2x8xf32> to vector<2x8x1xf32>
    %78 = tpu.reciprocal %77 {approx = true} : vector<2x8x1xf32> -> vector<2x8x1xf32>
    %79 = vector.broadcast %78 : vector<2x8x1xf32> to vector<2x8x8xf32>
    %80 = arith.mulf %75, %79 : vector<2x8x8xf32>
    "tpu.trace_start"() <{level = 10 : i32, message = "bqk,bkd->bqd"}> : () -> ()
    %cst_28 = arith.constant dense<0.000000e+00> : vector<2x8x16xf32>
    %81 = tpu.matmul %80, %64, %cst_28 {dimension_numbers = #tpu.dot_dimension_numbers<[2], [1], [1], [2], [0, 0, 0, 1, 1, 2], [0], [0]>} : vector<2x8x8xf32>, vector<2x8x16xf32>, vector<2x8x16xf32> -> vector<2x8x16xf32>
    "tpu.trace_stop"() : () -> ()
    %82 = vector.shape_cast %81 : vector<2x8x16xf32> to vector<16x16xf32>
    %83 = vector.extract_strided_slice %58 {offsets = [0, 16], sizes = [16, 16], strides = [1, 1]} : vector<16x96xf32> to vector<16x16xf32>
    %84 = vector.shape_cast %83 : vector<16x16xf32> to vector<2x8x16xf32>
    %85 = vector.extract_strided_slice %58 {offsets = [0, 48], sizes = [16, 16], strides = [1, 1]} : vector<16x96xf32> to vector<16x16xf32>
    %86 = vector.shape_cast %85 : vector<16x16xf32> to vector<2x8x16xf32>
    %87 = vector.extract_strided_slice %58 {offsets = [0, 80], sizes = [16, 16], strides = [1, 1]} : vector<16x96xf32> to vector<16x16xf32>
    %88 = vector.shape_cast %87 : vector<16x16xf32> to vector<2x8x16xf32>
    "tpu.trace_start"() <{level = 10 : i32, message = "bqd,bkd->bqk"}> : () -> ()
    %cst_29 = arith.constant dense<0.000000e+00> : vector<2x8x8xf32>
    %89 = tpu.matmul %84, %86, %cst_29 {dimension_numbers = #tpu.dot_dimension_numbers<[2], [2], [1], [1], [0, 0, 0, 1, 1, 1], [0], [0]>} : vector<2x8x16xf32>, vector<2x8x16xf32>, vector<2x8x8xf32> -> vector<2x8x8xf32>
    "tpu.trace_stop"() : () -> ()
    %cst_30 = arith.constant 2.500000e-01 : f32
    %90 = vector.broadcast %cst_30 : f32 to vector<2x8x8xf32>
    %91 = arith.mulf %89, %90 : vector<2x8x8xf32>
    %92 = vector.shape_cast %45 : vector<2x8xf32> to vector<2x1x8xf32>
    %93 = vector.broadcast %92 : vector<2x1x8xf32> to vector<2x8x8xf32>
    %94 = arith.addf %91, %93 : vector<2x8x8xf32>
    %cst_31 = arith.constant dense<0xFF800000> : vector<2x8xf32>
    %95 = vector.multi_reduction <maximumf>, %94, %cst_31 [2] : vector<2x8x8xf32> to vector<2x8xf32>
    %96 = vector.shape_cast %95 : vector<2x8xf32> to vector<2x8x1xf32>
    %97 = vector.broadcast %96 : vector<2x8x1xf32> to vector<2x8x8xf32>
    %98 = arith.subf %94, %97 : vector<2x8x8xf32>
    %99 = math.exp %98 : vector<2x8x8xf32>
    %cst_32 = arith.constant dense<0.000000e+00> : vector<2x8xf32>
    %100 = vector.multi_reduction <add>, %99, %cst_32 [2] : vector<2x8x8xf32> to vector<2x8xf32>
    %101 = vector.shape_cast %100 : vector<2x8xf32> to vector<2x8x1xf32>
    %102 = tpu.reciprocal %101 {approx = true} : vector<2x8x1xf32> -> vector<2x8x1xf32>
    %103 = vector.broadcast %102 : vector<2x8x1xf32> to vector<2x8x8xf32>
    %104 = arith.mulf %99, %103 : vector<2x8x8xf32>
    "tpu.trace_start"() <{level = 10 : i32, message = "bqk,bkd->bqd"}> : () -> ()
    %cst_33 = arith.constant dense<0.000000e+00> : vector<2x8x16xf32>
    %105 = tpu.matmul %104, %88, %cst_33 {dimension_numbers = #tpu.dot_dimension_numbers<[2], [1], [1], [2], [0, 0, 0, 1, 1, 2], [0], [0]>} : vector<2x8x8xf32>, vector<2x8x16xf32>, vector<2x8x16xf32> -> vector<2x8x16xf32>
    "tpu.trace_stop"() : () -> ()
    %106 = vector.shape_cast %105 : vector<2x8x16xf32> to vector<16x16xf32>
    %107 = tpu.concatenate %82, %106 in 1 : vector<16x16xf32>, vector<16x16xf32> -> vector<16x32xf32>
    %cst_34 = arith.constant dense<0.000000e+00> : vector<16x32xf32>
    %108 = tpu.matmul %107, %51, %cst_34 {dimension_numbers = #tpu.dot_dimension_numbers<[1], [0], [0], [1], [0, 0, 1, 1], [], []>} : vector<16x32xf32>, vector<32x32xf32>, vector<16x32xf32> -> vector<16x32xf32>
    %109 = vector.extract_strided_slice %49 {offsets = [1, 0], sizes = [1, 32], strides = [1, 1]} : vector<8x96xf32> to vector<1x32xf32>
    %110 = vector.broadcast %109 : vector<1x32xf32> to vector<16x32xf32>
    %111 = arith.addf %108, %110 : vector<16x32xf32>
    %112 = arith.addf %40, %111 : vector<16x32xf32>
    %113 = vector.extract_strided_slice %49 {offsets = [2, 0], sizes = [1, 32], strides = [1, 1]} : vector<8x96xf32> to vector<1x32xf32>
    %114 = vector.extract_strided_slice %49 {offsets = [3, 0], sizes = [1, 32], strides = [1, 1]} : vector<8x96xf32> to vector<1x32xf32>
    %cst_35 = arith.constant dense<0.000000e+00> : vector<16xf32>
    %115 = vector.multi_reduction <add>, %112, %cst_35 [1] : vector<16x32xf32> to vector<16xf32>
    %116 = vector.shape_cast %115 : vector<16xf32> to vector<16x1xf32>
    %cst_36 = arith.constant 3.200000e+01 : f32
    %117 = vector.broadcast %cst_36 : f32 to vector<16x1xf32>
    %118 = arith.divf %116, %117 : vector<16x1xf32>
    %119 = vector.broadcast %118 : vector<16x1xf32> to vector<16x32xf32>
    %120 = arith.subf %112, %119 : vector<16x32xf32>
    %121 = arith.mulf %120, %120 : vector<16x32xf32>
    %cst_37 = arith.constant dense<0.000000e+00> : vector<16xf32>
    %122 = vector.multi_reduction <add>, %121, %cst_37 [1] : vector<16x32xf32> to vector<16xf32>
    %123 = vector.shape_cast %122 : vector<16xf32> to vector<16x1xf32>
    %cst_38 = arith.constant 3.200000e+01 : f32
    %124 = vector.broadcast %cst_38 : f32 to vector<16x1xf32>
    %125 = arith.divf %123, %124 : vector<16x1xf32>
    %126 = vector.broadcast %118 : vector<16x1xf32> to vector<16x32xf32>
    %127 = arith.subf %112, %126 : vector<16x32xf32>
    %cst_39 = arith.constant 9.99999996E-13 : f32
    %128 = vector.broadcast %cst_39 : f32 to vector<16x1xf32>
    %129 = arith.addf %125, %128 : vector<16x1xf32>
    %130 = math.rsqrt %129 : vector<16x1xf32>
    %131 = vector.broadcast %130 : vector<16x1xf32> to vector<16x32xf32>
    %132 = arith.mulf %127, %131 : vector<16x32xf32>
    %133 = vector.broadcast %113 : vector<1x32xf32> to vector<16x32xf32>
    %134 = arith.mulf %132, %133 : vector<16x32xf32>
    %135 = vector.broadcast %114 : vector<1x32xf32> to vector<16x32xf32>
    %136 = arith.addf %134, %135 : vector<16x32xf32>
    %cst_40 = arith.constant dense<0.000000e+00> : vector<16x64xf32>
    %137 = tpu.matmul %136, %52, %cst_40 {dimension_numbers = #tpu.dot_dimension_numbers<[1], [0], [0], [1], [0, 0, 1, 1], [], []>} : vector<16x32xf32>, vector<32x64xf32>, vector<16x64xf32> -> vector<16x64xf32>
    %138 = vector.extract_strided_slice %49 {offsets = [4, 0], sizes = [1, 64], strides = [1, 1]} : vector<8x96xf32> to vector<1x64xf32>
    %139 = vector.broadcast %138 : vector<1x64xf32> to vector<16x64xf32>
    %140 = arith.addf %137, %139 : vector<16x64xf32>
    %141 = arith.mulf %140, %140 : vector<16x64xf32>
    %142 = arith.mulf %140, %141 : vector<16x64xf32>
    %cst_41 = arith.constant 4.471500e-02 : f32
    %143 = vector.broadcast %cst_41 : f32 to vector<16x64xf32>
    %144 = arith.mulf %143, %142 : vector<16x64xf32>
    %145 = arith.addf %140, %144 : vector<16x64xf32>
    %cst_42 = arith.constant 0.797884583 : f32
    %146 = vector.broadcast %cst_42 : f32 to vector<16x64xf32>
    %147 = arith.mulf %146, %145 : vector<16x64xf32>
    %148 = math.tanh %147 : vector<16x64xf32>
    %cst_43 = arith.constant 1.000000e+00 : f32
    %149 = vector.broadcast %cst_43 : f32 to vector<16x64xf32>
    %150 = arith.addf %149, %148 : vector<16x64xf32>
    %cst_44 = arith.constant 5.000000e-01 : f32
    %151 = vector.broadcast %cst_44 : f32 to vector<16x64xf32>
    %152 = arith.mulf %151, %150 : vector<16x64xf32>
    %153 = arith.mulf %140, %152 : vector<16x64xf32>
    %cst_45 = arith.constant dense<0.000000e+00> : vector<16x32xf32>
    %154 = tpu.matmul %153, %54, %cst_45 {dimension_numbers = #tpu.dot_dimension_numbers<[1], [0], [0], [1], [0, 0, 1, 1], [], []>} : vector<16x64xf32>, vector<64x32xf32>, vector<16x32xf32> -> vector<16x32xf32>
    %155 = vector.extract_strided_slice %49 {offsets = [5, 0], sizes = [1, 32], strides = [1, 1]} : vector<8x96xf32> to vector<1x32xf32>
    %156 = vector.broadcast %155 : vector<1x32xf32> to vector<16x32xf32>
    %157 = arith.addf %154, %156 : vector<16x32xf32>
    %158 = arith.addf %136, %157 : vector<16x32xf32>
    %159 = vector.extract_strided_slice %49 {offsets = [6, 0], sizes = [1, 32], strides = [1, 1]} : vector<8x96xf32> to vector<1x32xf32>
    %160 = vector.extract_strided_slice %49 {offsets = [7, 0], sizes = [1, 32], strides = [1, 1]} : vector<8x96xf32> to vector<1x32xf32>
    %cst_46 = arith.constant dense<0.000000e+00> : vector<16xf32>
    %161 = vector.multi_reduction <add>, %158, %cst_46 [1] : vector<16x32xf32> to vector<16xf32>
    %162 = vector.shape_cast %161 : vector<16xf32> to vector<16x1xf32>
    %cst_47 = arith.constant 3.200000e+01 : f32
    %163 = vector.broadcast %cst_47 : f32 to vector<16x1xf32>
    %164 = arith.divf %162, %163 : vector<16x1xf32>
    %165 = vector.broadcast %164 : vector<16x1xf32> to vector<16x32xf32>
    %166 = arith.subf %158, %165 : vector<16x32xf32>
    %167 = arith.mulf %166, %166 : vector<16x32xf32>
    %cst_48 = arith.constant dense<0.000000e+00> : vector<16xf32>
    %168 = vector.multi_reduction <add>, %167, %cst_48 [1] : vector<16x32xf32> to vector<16xf32>
    %169 = vector.shape_cast %168 : vector<16xf32> to vector<16x1xf32>
    %cst_49 = arith.constant 3.200000e+01 : f32
    %170 = vector.broadcast %cst_49 : f32 to vector<16x1xf32>
    %171 = arith.divf %169, %170 : vector<16x1xf32>
    %172 = vector.broadcast %164 : vector<16x1xf32> to vector<16x32xf32>
    %173 = arith.subf %158, %172 : vector<16x32xf32>
    %cst_50 = arith.constant 9.99999996E-13 : f32
    %174 = vector.broadcast %cst_50 : f32 to vector<16x1xf32>
    %175 = arith.addf %171, %174 : vector<16x1xf32>
    %176 = math.rsqrt %175 : vector<16x1xf32>
    %177 = vector.broadcast %176 : vector<16x1xf32> to vector<16x32xf32>
    %178 = arith.mulf %173, %177 : vector<16x32xf32>
    %179 = vector.broadcast %159 : vector<1x32xf32> to vector<16x32xf32>
    %180 = arith.mulf %178, %179 : vector<16x32xf32>
    %181 = vector.broadcast %160 : vector<1x32xf32> to vector<16x32xf32>
    %182 = arith.addf %180, %181 : vector<16x32xf32>
    %c1 = arith.constant 1 : index
    %c0_51 = arith.constant 0 : index
    %c0_52 = arith.constant 0 : index
    %183 = vector.load %arg3[%c1, %c0_51, %c0_52] : memref<2x32x192xf32, #tpu.memory_space<vmem>>, vector<1x32x192xf32>
    %184 = vector.shape_cast %183 : vector<1x32x192xf32> to vector<32x192xf32>
    %c1_53 = arith.constant 1 : index
    %c0_54 = arith.constant 0 : index
    %c0_55 = arith.constant 0 : index
    %185 = vector.load %arg5[%c1_53, %c0_54, %c0_55] : memref<2x8x96xf32, #tpu.memory_space<vmem>>, vector<1x8x96xf32>
    %186 = vector.shape_cast %185 : vector<1x8x96xf32> to vector<8x96xf32>
    %187 = vector.extract_strided_slice %184 {offsets = [0, 0], sizes = [32, 96], strides = [1, 1]} : vector<32x192xf32> to vector<32x96xf32>
    %188 = vector.extract_strided_slice %184 {offsets = [0, 96], sizes = [32, 32], strides = [1, 1]} : vector<32x192xf32> to vector<32x32xf32>
    %189 = vector.extract_strided_slice %184 {offsets = [0, 128], sizes = [32, 64], strides = [1, 1]} : vector<32x192xf32> to vector<32x64xf32>
    %c1_56 = arith.constant 1 : index
    %c0_57 = arith.constant 0 : index
    %c0_58 = arith.constant 0 : index
    %190 = vector.load %arg4[%c1_56, %c0_57, %c0_58] : memref<2x64x32xf32, #tpu.memory_space<vmem>>, vector<1x64x32xf32>
    %191 = vector.shape_cast %190 : vector<1x64x32xf32> to vector<64x32xf32>
    %cst_59 = arith.constant dense<0.000000e+00> : vector<16x96xf32>
    %192 = tpu.matmul %182, %187, %cst_59 {dimension_numbers = #tpu.dot_dimension_numbers<[1], [0], [0], [1], [0, 0, 1, 1], [], []>} : vector<16x32xf32>, vector<32x96xf32>, vector<16x96xf32> -> vector<16x96xf32>
    %193 = vector.extract_strided_slice %186 {offsets = [0, 0], sizes = [1, 96], strides = [1, 1]} : vector<8x96xf32> to vector<1x96xf32>
    %194 = vector.broadcast %193 : vector<1x96xf32> to vector<16x96xf32>
    %195 = arith.addf %192, %194 : vector<16x96xf32>
    %196 = vector.extract_strided_slice %195 {offsets = [0, 0], sizes = [16, 16], strides = [1, 1]} : vector<16x96xf32> to vector<16x16xf32>
    %197 = vector.shape_cast %196 : vector<16x16xf32> to vector<2x8x16xf32>
    %198 = vector.extract_strided_slice %195 {offsets = [0, 32], sizes = [16, 16], strides = [1, 1]} : vector<16x96xf32> to vector<16x16xf32>
    %199 = vector.shape_cast %198 : vector<16x16xf32> to vector<2x8x16xf32>
    %200 = vector.extract_strided_slice %195 {offsets = [0, 64], sizes = [16, 16], strides = [1, 1]} : vector<16x96xf32> to vector<16x16xf32>
    %201 = vector.shape_cast %200 : vector<16x16xf32> to vector<2x8x16xf32>
    "tpu.trace_start"() <{level = 10 : i32, message = "bqd,bkd->bqk"}> : () -> ()
    %cst_60 = arith.constant dense<0.000000e+00> : vector<2x8x8xf32>
    %202 = tpu.matmul %197, %199, %cst_60 {dimension_numbers = #tpu.dot_dimension_numbers<[2], [2], [1], [1], [0, 0, 0, 1, 1, 1], [0], [0]>} : vector<2x8x16xf32>, vector<2x8x16xf32>, vector<2x8x8xf32> -> vector<2x8x8xf32>
    "tpu.trace_stop"() : () -> ()
    %cst_61 = arith.constant 2.500000e-01 : f32
    %203 = vector.broadcast %cst_61 : f32 to vector<2x8x8xf32>
    %204 = arith.mulf %202, %203 : vector<2x8x8xf32>
    %205 = vector.shape_cast %45 : vector<2x8xf32> to vector<2x1x8xf32>
    %206 = vector.broadcast %205 : vector<2x1x8xf32> to vector<2x8x8xf32>
    %207 = arith.addf %204, %206 : vector<2x8x8xf32>
    %cst_62 = arith.constant dense<0xFF800000> : vector<2x8xf32>
    %208 = vector.multi_reduction <maximumf>, %207, %cst_62 [2] : vector<2x8x8xf32> to vector<2x8xf32>
    %209 = vector.shape_cast %208 : vector<2x8xf32> to vector<2x8x1xf32>
    %210 = vector.broadcast %209 : vector<2x8x1xf32> to vector<2x8x8xf32>
    %211 = arith.subf %207, %210 : vector<2x8x8xf32>
    %212 = math.exp %211 : vector<2x8x8xf32>
    %cst_63 = arith.constant dense<0.000000e+00> : vector<2x8xf32>
    %213 = vector.multi_reduction <add>, %212, %cst_63 [2] : vector<2x8x8xf32> to vector<2x8xf32>
    %214 = vector.shape_cast %213 : vector<2x8xf32> to vector<2x8x1xf32>
    %215 = tpu.reciprocal %214 {approx = true} : vector<2x8x1xf32> -> vector<2x8x1xf32>
    %216 = vector.broadcast %215 : vector<2x8x1xf32> to vector<2x8x8xf32>
    %217 = arith.mulf %212, %216 : vector<2x8x8xf32>
    "tpu.trace_start"() <{level = 10 : i32, message = "bqk,bkd->bqd"}> : () -> ()
    %cst_64 = arith.constant dense<0.000000e+00> : vector<2x8x16xf32>
    %218 = tpu.matmul %217, %201, %cst_64 {dimension_numbers = #tpu.dot_dimension_numbers<[2], [1], [1], [2], [0, 0, 0, 1, 1, 2], [0], [0]>} : vector<2x8x8xf32>, vector<2x8x16xf32>, vector<2x8x16xf32> -> vector<2x8x16xf32>
    "tpu.trace_stop"() : () -> ()
    %219 = vector.shape_cast %218 : vector<2x8x16xf32> to vector<16x16xf32>
    %220 = vector.extract_strided_slice %195 {offsets = [0, 16], sizes = [16, 16], strides = [1, 1]} : vector<16x96xf32> to vector<16x16xf32>
    %221 = vector.shape_cast %220 : vector<16x16xf32> to vector<2x8x16xf32>
    %222 = vector.extract_strided_slice %195 {offsets = [0, 48], sizes = [16, 16], strides = [1, 1]} : vector<16x96xf32> to vector<16x16xf32>
    %223 = vector.shape_cast %222 : vector<16x16xf32> to vector<2x8x16xf32>
    %224 = vector.extract_strided_slice %195 {offsets = [0, 80], sizes = [16, 16], strides = [1, 1]} : vector<16x96xf32> to vector<16x16xf32>
    %225 = vector.shape_cast %224 : vector<16x16xf32> to vector<2x8x16xf32>
    "tpu.trace_start"() <{level = 10 : i32, message = "bqd,bkd->bqk"}> : () -> ()
    %cst_65 = arith.constant dense<0.000000e+00> : vector<2x8x8xf32>
    %226 = tpu.matmul %221, %223, %cst_65 {dimension_numbers = #tpu.dot_dimension_numbers<[2], [2], [1], [1], [0, 0, 0, 1, 1, 1], [0], [0]>} : vector<2x8x16xf32>, vector<2x8x16xf32>, vector<2x8x8xf32> -> vector<2x8x8xf32>
    "tpu.trace_stop"() : () -> ()
    %cst_66 = arith.constant 2.500000e-01 : f32
    %227 = vector.broadcast %cst_66 : f32 to vector<2x8x8xf32>
    %228 = arith.mulf %226, %227 : vector<2x8x8xf32>
    %229 = vector.shape_cast %45 : vector<2x8xf32> to vector<2x1x8xf32>
    %230 = vector.broadcast %229 : vector<2x1x8xf32> to vector<2x8x8xf32>
    %231 = arith.addf %228, %230 : vector<2x8x8xf32>
    %cst_67 = arith.constant dense<0xFF800000> : vector<2x8xf32>
    %232 = vector.multi_reduction <maximumf>, %231, %cst_67 [2] : vector<2x8x8xf32> to vector<2x8xf32>
    %233 = vector.shape_cast %232 : vector<2x8xf32> to vector<2x8x1xf32>
    %234 = vector.broadcast %233 : vector<2x8x1xf32> to vector<2x8x8xf32>
    %235 = arith.subf %231, %234 : vector<2x8x8xf32>
    %236 = math.exp %235 : vector<2x8x8xf32>
    %cst_68 = arith.constant dense<0.000000e+00> : vector<2x8xf32>
    %237 = vector.multi_reduction <add>, %236, %cst_68 [2] : vector<2x8x8xf32> to vector<2x8xf32>
    %238 = vector.shape_cast %237 : vector<2x8xf32> to vector<2x8x1xf32>
    %239 = tpu.reciprocal %238 {approx = true} : vector<2x8x1xf32> -> vector<2x8x1xf32>
    %240 = vector.broadcast %239 : vector<2x8x1xf32> to vector<2x8x8xf32>
    %241 = arith.mulf %236, %240 : vector<2x8x8xf32>
    "tpu.trace_start"() <{level = 10 : i32, message = "bqk,bkd->bqd"}> : () -> ()
    %cst_69 = arith.constant dense<0.000000e+00> : vector<2x8x16xf32>
    %242 = tpu.matmul %241, %225, %cst_69 {dimension_numbers = #tpu.dot_dimension_numbers<[2], [1], [1], [2], [0, 0, 0, 1, 1, 2], [0], [0]>} : vector<2x8x8xf32>, vector<2x8x16xf32>, vector<2x8x16xf32> -> vector<2x8x16xf32>
    "tpu.trace_stop"() : () -> ()
    %243 = vector.shape_cast %242 : vector<2x8x16xf32> to vector<16x16xf32>
    %244 = tpu.concatenate %219, %243 in 1 : vector<16x16xf32>, vector<16x16xf32> -> vector<16x32xf32>
    %cst_70 = arith.constant dense<0.000000e+00> : vector<16x32xf32>
    %245 = tpu.matmul %244, %188, %cst_70 {dimension_numbers = #tpu.dot_dimension_numbers<[1], [0], [0], [1], [0, 0, 1, 1], [], []>} : vector<16x32xf32>, vector<32x32xf32>, vector<16x32xf32> -> vector<16x32xf32>
    %246 = vector.extract_strided_slice %186 {offsets = [1, 0], sizes = [1, 32], strides = [1, 1]} : vector<8x96xf32> to vector<1x32xf32>
    %247 = vector.broadcast %246 : vector<1x32xf32> to vector<16x32xf32>
    %248 = arith.addf %245, %247 : vector<16x32xf32>
    %249 = arith.addf %182, %248 : vector<16x32xf32>
    %250 = vector.extract_strided_slice %186 {offsets = [2, 0], sizes = [1, 32], strides = [1, 1]} : vector<8x96xf32> to vector<1x32xf32>
    %251 = vector.extract_strided_slice %186 {offsets = [3, 0], sizes = [1, 32], strides = [1, 1]} : vector<8x96xf32> to vector<1x32xf32>
    %cst_71 = arith.constant dense<0.000000e+00> : vector<16xf32>
    %252 = vector.multi_reduction <add>, %249, %cst_71 [1] : vector<16x32xf32> to vector<16xf32>
    %253 = vector.shape_cast %252 : vector<16xf32> to vector<16x1xf32>
    %cst_72 = arith.constant 3.200000e+01 : f32
    %254 = vector.broadcast %cst_72 : f32 to vector<16x1xf32>
    %255 = arith.divf %253, %254 : vector<16x1xf32>
    %256 = vector.broadcast %255 : vector<16x1xf32> to vector<16x32xf32>
    %257 = arith.subf %249, %256 : vector<16x32xf32>
    %258 = arith.mulf %257, %257 : vector<16x32xf32>
    %cst_73 = arith.constant dense<0.000000e+00> : vector<16xf32>
    %259 = vector.multi_reduction <add>, %258, %cst_73 [1] : vector<16x32xf32> to vector<16xf32>
    %260 = vector.shape_cast %259 : vector<16xf32> to vector<16x1xf32>
    %cst_74 = arith.constant 3.200000e+01 : f32
    %261 = vector.broadcast %cst_74 : f32 to vector<16x1xf32>
    %262 = arith.divf %260, %261 : vector<16x1xf32>
    %263 = vector.broadcast %255 : vector<16x1xf32> to vector<16x32xf32>
    %264 = arith.subf %249, %263 : vector<16x32xf32>
    %cst_75 = arith.constant 9.99999996E-13 : f32
    %265 = vector.broadcast %cst_75 : f32 to vector<16x1xf32>
    %266 = arith.addf %262, %265 : vector<16x1xf32>
    %267 = math.rsqrt %266 : vector<16x1xf32>
    %268 = vector.broadcast %267 : vector<16x1xf32> to vector<16x32xf32>
    %269 = arith.mulf %264, %268 : vector<16x32xf32>
    %270 = vector.broadcast %250 : vector<1x32xf32> to vector<16x32xf32>
    %271 = arith.mulf %269, %270 : vector<16x32xf32>
    %272 = vector.broadcast %251 : vector<1x32xf32> to vector<16x32xf32>
    %273 = arith.addf %271, %272 : vector<16x32xf32>
    %cst_76 = arith.constant dense<0.000000e+00> : vector<16x64xf32>
    %274 = tpu.matmul %273, %189, %cst_76 {dimension_numbers = #tpu.dot_dimension_numbers<[1], [0], [0], [1], [0, 0, 1, 1], [], []>} : vector<16x32xf32>, vector<32x64xf32>, vector<16x64xf32> -> vector<16x64xf32>
    %275 = vector.extract_strided_slice %186 {offsets = [4, 0], sizes = [1, 64], strides = [1, 1]} : vector<8x96xf32> to vector<1x64xf32>
    %276 = vector.broadcast %275 : vector<1x64xf32> to vector<16x64xf32>
    %277 = arith.addf %274, %276 : vector<16x64xf32>
    %278 = arith.mulf %277, %277 : vector<16x64xf32>
    %279 = arith.mulf %277, %278 : vector<16x64xf32>
    %cst_77 = arith.constant 4.471500e-02 : f32
    %280 = vector.broadcast %cst_77 : f32 to vector<16x64xf32>
    %281 = arith.mulf %280, %279 : vector<16x64xf32>
    %282 = arith.addf %277, %281 : vector<16x64xf32>
    %cst_78 = arith.constant 0.797884583 : f32
    %283 = vector.broadcast %cst_78 : f32 to vector<16x64xf32>
    %284 = arith.mulf %283, %282 : vector<16x64xf32>
    %285 = math.tanh %284 : vector<16x64xf32>
    %cst_79 = arith.constant 1.000000e+00 : f32
    %286 = vector.broadcast %cst_79 : f32 to vector<16x64xf32>
    %287 = arith.addf %286, %285 : vector<16x64xf32>
    %cst_80 = arith.constant 5.000000e-01 : f32
    %288 = vector.broadcast %cst_80 : f32 to vector<16x64xf32>
    %289 = arith.mulf %288, %287 : vector<16x64xf32>
    %290 = arith.mulf %277, %289 : vector<16x64xf32>
    %cst_81 = arith.constant dense<0.000000e+00> : vector<16x32xf32>
    %291 = tpu.matmul %290, %191, %cst_81 {dimension_numbers = #tpu.dot_dimension_numbers<[1], [0], [0], [1], [0, 0, 1, 1], [], []>} : vector<16x64xf32>, vector<64x32xf32>, vector<16x32xf32> -> vector<16x32xf32>
    %292 = vector.extract_strided_slice %186 {offsets = [5, 0], sizes = [1, 32], strides = [1, 1]} : vector<8x96xf32> to vector<1x32xf32>
    %293 = vector.broadcast %292 : vector<1x32xf32> to vector<16x32xf32>
    %294 = arith.addf %291, %293 : vector<16x32xf32>
    %295 = arith.addf %273, %294 : vector<16x32xf32>
    %296 = vector.extract_strided_slice %186 {offsets = [6, 0], sizes = [1, 32], strides = [1, 1]} : vector<8x96xf32> to vector<1x32xf32>
    %297 = vector.extract_strided_slice %186 {offsets = [7, 0], sizes = [1, 32], strides = [1, 1]} : vector<8x96xf32> to vector<1x32xf32>
    %cst_82 = arith.constant dense<0.000000e+00> : vector<16xf32>
    %298 = vector.multi_reduction <add>, %295, %cst_82 [1] : vector<16x32xf32> to vector<16xf32>
    %299 = vector.shape_cast %298 : vector<16xf32> to vector<16x1xf32>
    %cst_83 = arith.constant 3.200000e+01 : f32
    %300 = vector.broadcast %cst_83 : f32 to vector<16x1xf32>
    %301 = arith.divf %299, %300 : vector<16x1xf32>
    %302 = vector.broadcast %301 : vector<16x1xf32> to vector<16x32xf32>
    %303 = arith.subf %295, %302 : vector<16x32xf32>
    %304 = arith.mulf %303, %303 : vector<16x32xf32>
    %cst_84 = arith.constant dense<0.000000e+00> : vector<16xf32>
    %305 = vector.multi_reduction <add>, %304, %cst_84 [1] : vector<16x32xf32> to vector<16xf32>
    %306 = vector.shape_cast %305 : vector<16xf32> to vector<16x1xf32>
    %cst_85 = arith.constant 3.200000e+01 : f32
    %307 = vector.broadcast %cst_85 : f32 to vector<16x1xf32>
    %308 = arith.divf %306, %307 : vector<16x1xf32>
    %309 = vector.broadcast %301 : vector<16x1xf32> to vector<16x32xf32>
    %310 = arith.subf %295, %309 : vector<16x32xf32>
    %cst_86 = arith.constant 9.99999996E-13 : f32
    %311 = vector.broadcast %cst_86 : f32 to vector<16x1xf32>
    %312 = arith.addf %308, %311 : vector<16x1xf32>
    %313 = math.rsqrt %312 : vector<16x1xf32>
    %314 = vector.broadcast %313 : vector<16x1xf32> to vector<16x32xf32>
    %315 = arith.mulf %310, %314 : vector<16x32xf32>
    %316 = vector.broadcast %296 : vector<1x32xf32> to vector<16x32xf32>
    %317 = arith.mulf %315, %316 : vector<16x32xf32>
    %318 = vector.broadcast %297 : vector<1x32xf32> to vector<16x32xf32>
    %319 = arith.addf %317, %318 : vector<16x32xf32>
    %320 = vector.shape_cast %319 : vector<16x32xf32> to vector<2x8x32xf32>
    %c3_i32 = arith.constant 3 : i32
    %321 = vector.broadcast %c3_i32 : i32 to vector<2x8xi32>
    %322 = arith.cmpi eq, %0, %321 : vector<2x8xi32>
    %323 = arith.extui %322 : vector<2x8xi1> to vector<2x8xi32>
    %324 = arith.sitofp %323 : vector<2x8xi32> to vector<2x8xf32>
    %325 = vector.shape_cast %324 : vector<2x8xf32> to vector<2x8x1xf32>
    %c4_i32 = arith.constant 4 : i32
    %326 = vector.broadcast %c4_i32 : i32 to vector<2x8xi32>
    %327 = arith.cmpi eq, %0, %326 : vector<2x8xi32>
    %328 = arith.extui %327 : vector<2x8xi1> to vector<2x8xi32>
    %329 = arith.sitofp %328 : vector<2x8xi32> to vector<2x8xf32>
    %330 = vector.shape_cast %329 : vector<2x8xf32> to vector<2x8x1xf32>
    %331 = vector.broadcast %325 : vector<2x8x1xf32> to vector<2x8x32xf32>
    %332 = arith.mulf %331, %320 : vector<2x8x32xf32>
    %cst_87 = arith.constant dense<0.000000e+00> : vector<2x32xf32>
    %333 = vector.multi_reduction <add>, %332, %cst_87 [1] : vector<2x8x32xf32> to vector<2x32xf32>
    %334 = vector.broadcast %330 : vector<2x8x1xf32> to vector<2x8x32xf32>
    %335 = arith.mulf %334, %320 : vector<2x8x32xf32>
    %cst_88 = arith.constant dense<0.000000e+00> : vector<2x32xf32>
    %336 = vector.multi_reduction <add>, %335, %cst_88 [1] : vector<2x8x32xf32> to vector<2x32xf32>
    %cst_89 = arith.constant dense<0.000000e+00> : vector<2xf32>
    %337 = vector.multi_reduction <add>, %333, %cst_89 [1] : vector<2x32xf32> to vector<2xf32>
    %338 = vector.shape_cast %337 : vector<2xf32> to vector<2x1xf32>
    %cst_90 = arith.constant dense<0.000000e+00> : vector<2xf32>
    %339 = vector.multi_reduction <add>, %336, %cst_90 [1] : vector<2x32xf32> to vector<2xf32>
    %340 = vector.shape_cast %339 : vector<2xf32> to vector<2x1xf32>
    %341 = arith.addf %338, %340 : vector<2x1xf32>
    %cst_91 = arith.constant 6.400000e+01 : f32
    %342 = vector.broadcast %cst_91 : f32 to vector<2x1xf32>
    %343 = arith.divf %341, %342 : vector<2x1xf32>
    %344 = vector.broadcast %343 : vector<2x1xf32> to vector<2x32xf32>
    %345 = arith.subf %333, %344 : vector<2x32xf32>
    %346 = vector.broadcast %343 : vector<2x1xf32> to vector<2x32xf32>
    %347 = arith.subf %336, %346 : vector<2x32xf32>
    %348 = arith.mulf %345, %345 : vector<2x32xf32>
    %cst_92 = arith.constant dense<0.000000e+00> : vector<2xf32>
    %349 = vector.multi_reduction <add>, %348, %cst_92 [1] : vector<2x32xf32> to vector<2xf32>
    %350 = vector.shape_cast %349 : vector<2xf32> to vector<2x1xf32>
    %351 = arith.mulf %347, %347 : vector<2x32xf32>
    %cst_93 = arith.constant dense<0.000000e+00> : vector<2xf32>
    %352 = vector.multi_reduction <add>, %351, %cst_93 [1] : vector<2x32xf32> to vector<2xf32>
    %353 = vector.shape_cast %352 : vector<2xf32> to vector<2x1xf32>
    %354 = arith.addf %350, %353 : vector<2x1xf32>
    %cst_94 = arith.constant 6.400000e+01 : f32
    %355 = vector.broadcast %cst_94 : f32 to vector<2x1xf32>
    %356 = arith.divf %354, %355 : vector<2x1xf32>
    %cst_95 = arith.constant 9.99999974E-6 : f32
    %357 = vector.broadcast %cst_95 : f32 to vector<2x1xf32>
    %358 = arith.addf %356, %357 : vector<2x1xf32>
    %359 = math.rsqrt %358 : vector<2x1xf32>
    %360 = vector.broadcast %359 : vector<2x1xf32> to vector<2x32xf32>
    %361 = arith.mulf %345, %360 : vector<2x32xf32>
    %362 = vector.extract_strided_slice %2 {offsets = [2, 0], sizes = [1, 32], strides = [1, 1]} : vector<8x32xf32> to vector<1x32xf32>
    %363 = vector.broadcast %362 : vector<1x32xf32> to vector<2x32xf32>
    %364 = arith.mulf %361, %363 : vector<2x32xf32>
    %365 = vector.extract_strided_slice %2 {offsets = [4, 0], sizes = [1, 32], strides = [1, 1]} : vector<8x32xf32> to vector<1x32xf32>
    %366 = vector.broadcast %365 : vector<1x32xf32> to vector<2x32xf32>
    %367 = arith.addf %364, %366 : vector<2x32xf32>
    %368 = vector.broadcast %359 : vector<2x1xf32> to vector<2x32xf32>
    %369 = arith.mulf %347, %368 : vector<2x32xf32>
    %370 = vector.extract_strided_slice %2 {offsets = [3, 0], sizes = [1, 32], strides = [1, 1]} : vector<8x32xf32> to vector<1x32xf32>
    %371 = vector.broadcast %370 : vector<1x32xf32> to vector<2x32xf32>
    %372 = arith.mulf %369, %371 : vector<2x32xf32>
    %373 = vector.extract_strided_slice %2 {offsets = [5, 0], sizes = [1, 32], strides = [1, 1]} : vector<8x32xf32> to vector<1x32xf32>
    %374 = vector.broadcast %373 : vector<1x32xf32> to vector<2x32xf32>
    %375 = arith.addf %372, %374 : vector<2x32xf32>
    %c0_96 = arith.constant 0 : index
    %c0_97 = arith.constant 0 : index
    %376 = vector.load %arg7[%c0_96, %c0_97] : memref<64x4xf32, #tpu.memory_space<vmem>>, vector<64x4xf32>
    %377 = vector.extract_strided_slice %376 {offsets = [0, 0], sizes = [32, 4], strides = [1, 1]} : vector<64x4xf32> to vector<32x4xf32>
    %cst_98 = arith.constant dense<0.000000e+00> : vector<2x4xf32>
    %378 = tpu.matmul %367, %377, %cst_98 {dimension_numbers = #tpu.dot_dimension_numbers<[1], [0], [0], [1], [0, 0, 1, 1], [], []>} : vector<2x32xf32>, vector<32x4xf32>, vector<2x4xf32> -> vector<2x4xf32>
    %379 = vector.extract_strided_slice %376 {offsets = [32, 0], sizes = [32, 4], strides = [1, 1]} : vector<64x4xf32> to vector<32x4xf32>
    %cst_99 = arith.constant dense<0.000000e+00> : vector<2x4xf32>
    %380 = tpu.matmul %375, %379, %cst_99 {dimension_numbers = #tpu.dot_dimension_numbers<[1], [0], [0], [1], [0, 0, 1, 1], [], []>} : vector<2x32xf32>, vector<32x4xf32>, vector<2x4xf32> -> vector<2x4xf32>
    %381 = arith.addf %378, %380 : vector<2x4xf32>
    %382 = vector.extract_strided_slice %2 {offsets = [6, 0], sizes = [1, 4], strides = [1, 1]} : vector<8x32xf32> to vector<1x4xf32>
    %383 = vector.broadcast %382 : vector<1x4xf32> to vector<2x4xf32>
    %384 = arith.addf %381, %383 : vector<2x4xf32>
    %c0_100 = arith.constant 0 : index
    %c0_101 = arith.constant 0 : index
    %385 = vector.load %arg8[%c0_100, %c0_101] : memref<2x4xf32, #tpu.memory_space<vmem>>, vector<2x4xf32>
    tpu.vector_store %arg8[%c0_100, %c0_101], %384 {strides = array<i32>} : memref<2x4xf32, #tpu.memory_space<vmem>>, vector<2x4xf32>,
    return
  }
}

</mosaic_0001>

<llo_original>
// kernel: relationship_encoder_forward.1
$region0: #{relationship_encoder_forward.1}
  #allocation0 [shape = 'u32[]', space=smem, size = 0x4, offset = 0x4, fixed_abs, tag = 'smem constant byte address 0x4 - core index']
  #allocation1 [shape = 'u32[144,128]{1,0:T(1,128)}', space=vmem, size = 0x12000, scoped, tag = 'internal scratch']
  %s0 = inlined_call_operand.vmem [shape: s32[2,8], index: 0, kind: input, shape index: {}]
  %s1 = inlined_call_operand.vmem [shape: s32[2,8], index: 1, kind: input, shape index: {}]
  %s2 = inlined_call_operand.vmem [shape: f32[64,32], index: 2, kind: input, shape index: {}]
  %s3 = inlined_call_operand.vmem [shape: f32[2,32,192], index: 3, kind: input, shape index: {}]
  %s4 = inlined_call_operand.vmem [shape: f32[2,64,32], index: 4, kind: input, shape index: {}]
  %s5 = inlined_call_operand.vmem [shape: f32[2,8,96], index: 5, kind: input, shape index: {}]
  %s6 = inlined_call_operand.vmem [shape: f32[8,32], index: 6, kind: input, shape index: {}]
  %s7 = inlined_call_operand.vmem [shape: f32[64,4], index: 7, kind: input, shape index: {}]
  %s8 = inlined_call_operand.hbm [shape: f32[2,4], index: 8, kind: output, shape index: {}]
  %s9 = sld [smem:[#allocation0]]
  $region42: #{relationship_encoder_forward.1} parent=0
    _
  %s11 = ssub.s32 1, %s9
  %s12 = scalar_select 0, %s11, %s9
  $region1: #{relationship_encoder_forward.1} parent=0
    #allocation2 [shape = 'u8[1024]{0}', space=vmem, size = 0x400, scoped, tag = 'output window, operand 0, single buffered']
    #allocation3 [shape = 's32[1]{0}', space=sflag, size = 0x4, scoped, tag = 'scoped memory for relationship_encoder_forward.1']
    %13 = vsyncpa [#allocation3], 0
    // Predicated region
    $region2: #{relationship_encoder_forward.1} parent=1 // pred_check
      _
    $region3: #{relationship_encoder_forward.1} parent=1 // pred_check_branch
      %15 = sbr.rel (0) target = $region5
    $region4: #{relationship_encoder_forward.1} parent=1 // pred_region
      _
    $region5: #{relationship_encoder_forward.1} parent=1 // pred_fallthru
      _
    // Predicated region
    $region6: #{relationship_encoder_forward.1} parent=1 // pred_check
      _
    $region7: #{relationship_encoder_forward.1} parent=1 // pred_check_branch
      %17 = sbr.rel (0) target = $region9
    $region8: #{relationship_encoder_forward.1} parent=1 // pred_region
      _
    $region9: #{relationship_encoder_forward.1} parent=1 // pred_fallthru
      _
    // Predicated region
    $region10: #{relationship_encoder_forward.1} parent=1 // pred_check
      _
    $region11: #{relationship_encoder_forward.1} parent=1 // pred_check_branch
      %19 = sbr.rel (0) target = $region13
    $region12: #{relationship_encoder_forward.1} parent=1 // pred_region
      _
    $region13: #{relationship_encoder_forward.1} parent=1 // pred_fallthru
      _
    // Predicated region
    $region14: #{relationship_encoder_forward.1} parent=1 // pred_check
      _
    $region15: #{relationship_encoder_forward.1} parent=1 // pred_check_branch
      %21 = sbr.rel (0) target = $region17
    $region16: #{relationship_encoder_forward.1} parent=1 // pred_region
      _
    $region17: #{relationship_encoder_forward.1} parent=1 // pred_fallthru
      _
    // Predicated region
    $region18: #{relationship_encoder_forward.1} parent=1 // pred_check
      _
    $region19: #{relationship_encoder_forward.1} parent=1 // pred_check_branch
      %23 = sbr.rel (0) target = $region21
    $region20: #{relationship_encoder_forward.1} parent=1 // pred_region
      _
    $region21: #{relationship_encoder_forward.1} parent=1 // pred_fallthru
      _
    // Predicated region
    $region22: #{relationship_encoder_forward.1} parent=1 // pred_check
      _
    $region23: #{relationship_encoder_forward.1} parent=1 // pred_check_branch
      %25 = sbr.rel (0) target = $region25
    $region24: #{relationship_encoder_forward.1} parent=1 // pred_region
      _
    $region25: #{relationship_encoder_forward.1} parent=1 // pred_fallthru
      _
    // Predicated region
    $region26: #{relationship_encoder_forward.1} parent=1 // pred_check
      _
    $region27: #{relationship_encoder_forward.1} parent=1 // pred_check_branch
      %27 = sbr.rel (0) target = $region29
    $region28: #{relationship_encoder_forward.1} parent=1 // pred_region
      _
    $region29: #{relationship_encoder_forward.1} parent=1 // pred_fallthru
      _
    // Predicated region
    $region30: #{relationship_encoder_forward.1} parent=1 // pred_check
      _
    $region31: #{relationship_encoder_forward.1} parent=1 // pred_check_branch
      %29 = sbr.rel (0) target = $region33
    $region32: #{relationship_encoder_forward.1} parent=1 // pred_region
      _
    $region33: #{relationship_encoder_forward.1} parent=1 // pred_fallthru
      _
    %v30 = vld [vmem:[%s0] sm:$0x3]
    %v31 = vld [vmem:[%s1] sm:$0x3]
    %v32 = vld [vmem:[%s6] sm:$0xff]
    %v33 = vlaneseq
    %v34 = vand.u32 %v33, 127
    %v35 = vlaneseq
    %v36 = vshrl.u32 %v35, 7
    %v37 = vadd.s32 %v36, 56
    %v38 = vlaneseq
    %v39 = vshrl.u32 %v38, 7
    %v40 = vsub.s32 0, %v39
    %v41 = vrot.slane %v30, %v40
    %43 = vbcast.lane.b32.xlu0 %v41, 256
    %v44 = vpop.permute.xlu0 %43
    %v45 = vlaneseq
    %v46 = vshrl.u32 %v45, 7
    %v47 = vsub.s32 1, %v46
    %v48 = vrot.slane %v30, %v47
    %50 = vbcast.lane.b32.xlu0 %v48, 256
    %v51 = vpop.permute.xlu0 %50
    %vm52 = vcmp.eq.s32.totalorder %v34, %v44
    %vm53 = vcmp.eq.s32.totalorder %v34, %v51
    %vm54 = vcmp.eq.s32.totalorder %v34, %v37
    %vm55 = vmor %vm52, %vm54
    %vm56 = vmor %vm53, %vm54
    %v57 = vsel %vm55, 1, 0
    %v58 = vsel %vm56, 1, 0
    %v59 = vcvt.s32.f32 %v57
    %v60 = vcvt.s32.f32 %v58
    %v61 = vld [vmem:[%s2] sm:$0xff]
    %v62 = vld [vmem:[%s2 + $0x8] sm:$0xff]
    %v63 = vld [vmem:[%s2 + $0x10] sm:$0xff]
    %v64 = vld [vmem:[%s2 + $0x18] sm:$0xff]
    %v65 = vld [vmem:[%s2 + $0x20] sm:$0xff]
    %v66 = vld [vmem:[%s2 + $0x28] sm:$0xff]
    %v67 = vld [vmem:[%s2 + $0x30] sm:$0xff]
    %v68 = vld [vmem:[%s2 + $0x38] sm:$0xff]
    %vm69 = vcmask 523264
    %v71 = vsel %vm69, %v59, 0
    %v74 = vsel %vm69, %v60, 0
    %76 = vmatprep.subr.mxu0 0.0
    %77 = vmatpush1.msra.mxu0 %v61
    %78 = vmatprep.subr.mxu0 0.0
    %79 = vmatpush1.msra.mxu0 %v62
    %80 = vmatprep.subr.mxu0 0.0
    %81 = vmatpush1.msra.mxu0 %v63
    %82 = vmatprep.subr.mxu0 0.0
    %83 = vmatpush1.msra.mxu0 %v64
    %84 = vmatprep.subr.mxu0 0.0
    %85 = vmatpush1.msra.mxu0 %v65
    %86 = vmatprep.subr.mxu0 0.0
    %87 = vmatpush1.msra.mxu0 %v66
    %88 = vmatprep.subr.mxu0 0.0
    %89 = vmatpush1.msra.mxu0 %v67
    %90 = vmatprep.subr.mxu0 0.0
    %91 = vmatpush1.msra.mxu0 %v68
    %92 = vmatprep.subr.mxu0 0.0
    %93 = vmatpush1.msra.mxu0 0.0
    %94 = vmatprep.subr.mxu0 0.0
    %95 = vmatpush1.msra.mxu0 0.0
    %96 = vmatprep.subr.mxu0 0.0
    %97 = vmatpush1.msra.mxu0 0.0
    %98 = vmatprep.subr.mxu0 0.0
    %99 = vmatpush1.msra.mxu0 0.0
    %100 = vmatprep.subr.mxu0 0.0
    %101 = vmatpush1.msra.mxu0 0.0
    %102 = vmatprep.subr.mxu0 0.0
    %103 = vmatpush1.msra.mxu0 0.0
    %104 = vmatprep.subr.mxu0 0.0
    %105 = vmatpush1.msra.mxu0 0.0
    %106 = vmatprep.subr.mxu0 0.0
    %107 = vmatpush1.msra.mxu0 0.0
    %108 = vmatprep.subr.mxu0 0.0
    %109 = vmatpush1.msra.mxu0 0.0
    %110 = vmatprep.subr.mxu0 0.0
    %111 = vmatpush1.msra.mxu0 0.0
    %112 = vmatprep.subr.mxu0 0.0
    %113 = vmatpush1.msra.mxu0 0.0
    %114 = vmatprep.subr.mxu0 0.0
    %115 = vmatpush1.msra.mxu0 0.0
    %116 = vmatprep.subr.mxu0 0.0
    %117 = vmatpush1.msra.mxu0 0.0
    %118 = vmatprep.subr.mxu0 0.0
    %119 = vmatpush1.msra.mxu0 0.0
    %120 = vmatprep.subr.mxu0 0.0
    %121 = vmatpush1.msra.mxu0 0.0
    %122 = vmatprep.subr.mxu0 0.0
    %123 = vmatpush1.msra.mxu0 0.0
    %124 = vmatprep.subr.mxu0 0.0
    %125 = vmatpush1.msra.mxu0 0.0
    %126 = vmatprep.subr.mxu0 0.0
    %127 = vmatpush1.msra.mxu0 0.0
    %128 = vmatprep.subr.mxu0 0.0
    %129 = vmatpush1.msra.mxu0 0.0
    %130 = vmatprep.subr.mxu0 0.0
    %131 = vmatpush1.msra.mxu0 0.0
    %132 = vmatprep.subr.mxu0 0.0
    %133 = vmatpush1.msra.mxu0 0.0
    %134 = vmatprep.subr.mxu0 0.0
    %135 = vmatpush1.msra.mxu0 0.0
    %136 = vmatprep.subr.mxu0 0.0
    %137 = vmatpush1.msra.mxu0 0.0
    %138 = vmatprep.subr.mxu0 0.0
    %139 = vmatpush1.msra.mxu0 0.0
    %140 = vmatprep.mubr.f32.mxu0 0.0
    %141 = vmatmul.mubr.f32.gmra.mrb[0].mxu0 %v71
    %v142 = vpop.f32.mrb[0].mxu0
    %v143 = vadd.f32 0.0, %v142
    %v144 = vpop.f32.mrb[0].mxu0
    %145 = vmatprep.mubr.f32.mxu0 0.0
    %146 = vmatmul.mubr.f32.gmra.mrb[0].mxu0 %v74
    %v147 = vpop.f32.mrb[0].mxu0
    %v148 = vadd.f32 0.0, %v147
    %v149 = vpop.f32.mrb[0].mxu0
    %150 = vdwg.mxu0
    %vm151 = vcmask 261120
    %v152 = vsel %vm151, %v143, 0.0
    %153 = vadd.xlane.f32.xlu0 %v152
    %v154 = vpop.xlane.xlu0 %153
    %v155 = vsel %vm151, %v148, 0.0
    %156 = vadd.xlane.f32.xlu0 %v155
    %v157 = vpop.xlane.xlu0 %156
    %v158 = vrcp.pop 32.0
    %v159 = vmul.f32 %v154, %v158
    %v160 = vmul.f32 %v157, %v158
    %v161 = vsub.f32 %v143, %v159
    %v162 = vsub.f32 %v148, %v160
    %v163 = vmul.f32 %v161, %v161
    %v164 = vmul.f32 %v162, %v162
    %v165 = vsel %vm151, %v163, 0.0
    %166 = vadd.xlane.f32.xlu0 %v165
    %v167 = vpop.xlane.xlu0 %166
    %v168 = vsel %vm151, %v164, 0.0
    %169 = vadd.xlane.f32.xlu0 %v168
    %v170 = vpop.xlane.xlu0 %169
    %v171 = vmul.f32 %v167, %v158
    %v172 = vmul.f32 %v170, %v158
    %v173 = vadd.f32 %v171, 1e-12
    %v174 = vadd.f32 %v172, 1e-12
    %v175 = vrsqrt.pop %v173
    %v176 = vrsqrt.pop %v174
    %v177 = vmul.f32 %v161, %v175
    %v178 = vmul.f32 %v162, %v176
    %v179 = vlaneseq
    %v180 = vshrl.u32 %v179, 7
    %v181 = vsub.s32 0, %v180
    %v182 = vrot.slane %v32, %v181
    %v183 = vmul.f32 %v177, %v182
    %v184 = vmul.f32 %v178, %v182
    %v185 = vlaneseq
    %v186 = vshrl.u32 %v185, 7
    %v187 = vsub.s32 1, %v186
    %v188 = vrot.slane %v32, %v187
    %v189 = vadd.f32 %v183, %v188
    %v190 = vadd.f32 %v184, %v188
    %v191 = vcvt.s32.f32 %v31
    %v192 = vsub.f32 1.0, %v191
    %v193 = vmul.f32 %v192, -10000.0
    %v194 = vld [vmem:[%s3] sm:$0xff]
    %v195 = vld [vmem:[%s3 + $0x8] sm:$0xff]
    %v196 = vld [vmem:[%s3 + $0x10] sm:$0xff]
    %v197 = vld [vmem:[%s3 + $0x18] sm:$0xff]
    %v198 = vld [vmem:[%s3 + $0x20] sm:$0xff]
    %v199 = vld [vmem:[%s3 + $0x28] sm:$0xff]
    %v200 = vld [vmem:[%s3 + $0x30] sm:$0xff]
    %v201 = vld [vmem:[%s3 + $0x38] sm:$0xff]
    %v202 = vld [vmem:[%s5] sm:$0xff]
    %v203 = vld [vmem:[%s4] sm:$0xff]
    %v204 = vld [vmem:[%s4 + $0x8] sm:$0xff]
    %v205 = vld [vmem:[%s4 + $0x10] sm:$0xff]
    %v206 = vld [vmem:[%s4 + $0x18] sm:$0xff]
    %v207 = vld [vmem:[%s4 + $0x20] sm:$0xff]
    %v208 = vld [vmem:[%s4 + $0x28] sm:$0xff]
    %v209 = vld [vmem:[%s4 + $0x30] sm:$0xff]
    %v210 = vld [vmem:[%s4 + $0x38] sm:$0xff]
    %v211 = vlaneseq
    %v212 = vshrl.u32 %v211, 7
    %v213 = vsub.s32 0, %v212
    %v214 = vrot.slane %v202, %v213
    %v216 = vsel %vm151, %v189, 0
    %v219 = vsel %vm151, %v190, 0
    %221 = vmatprep.subr.mxu0 0.0
    %222 = vmatpush1.msra.mxu0 %v194
    %223 = vmatprep.subr.mxu0 0.0
    %224 = vmatpush1.msra.mxu0 %v196
    %225 = vmatprep.subr.mxu0 0.0
    %226 = vmatpush1.msra.mxu0 %v198
    %227 = vmatprep.subr.mxu0 0.0
    %228 = vmatpush1.msra.mxu0 %v200
    %229 = vmatprep.subr.mxu0 0.0
    %230 = vmatpush1.msra.mxu0 0.0
    %231 = vmatprep.subr.mxu0 0.0
    %232 = vmatpush1.msra.mxu0 0.0
    %233 = vmatprep.subr.mxu0 0.0
    %234 = vmatpush1.msra.mxu0 0.0
    %235 = vmatprep.subr.mxu0 0.0
    %236 = vmatpush1.msra.mxu0 0.0
    %237 = vmatprep.subr.mxu0 0.0
    %238 = vmatpush1.msra.mxu0 0.0
    %239 = vmatprep.subr.mxu0 0.0
    %240 = vmatpush1.msra.mxu0 0.0
    %241 = vmatprep.subr.mxu0 0.0
    %242 = vmatpush1.msra.mxu0 0.0
    %243 = vmatprep.subr.mxu0 0.0
    %244 = vmatpush1.msra.mxu0 0.0
    %245 = vmatprep.subr.mxu0 0.0
    %246 = vmatpush1.msra.mxu0 0.0
    %247 = vmatprep.subr.mxu0 0.0
    %248 = vmatpush1.msra.mxu0 0.0
    %249 = vmatprep.subr.mxu0 0.0
    %250 = vmatpush1.msra.mxu0 0.0
    %251 = vmatprep.subr.mxu0 0.0
    %252 = vmatpush1.msra.mxu0 0.0
    %253 = vmatprep.subr.mxu0 0.0
    %254 = vmatpush1.msra.mxu0 0.0
    %255 = vmatprep.subr.mxu0 0.0
    %256 = vmatpush1.msra.mxu0 0.0
    %257 = vmatprep.subr.mxu0 0.0
    %258 = vmatpush1.msra.mxu0 0.0
    %259 = vmatprep.subr.mxu0 0.0
    %260 = vmatpush1.msra.mxu0 0.0
    %261 = vmatprep.subr.mxu0 0.0
    %262 = vmatpush1.msra.mxu0 0.0
    %263 = vmatprep.subr.mxu0 0.0
    %264 = vmatpush1.msra.mxu0 0.0
    %265 = vmatprep.subr.mxu0 0.0
    %266 = vmatpush1.msra.mxu0 0.0
    %267 = vmatprep.subr.mxu0 0.0
    %268 = vmatpush1.msra.mxu0 0.0
    %269 = vmatprep.subr.mxu0 0.0
    %270 = vmatpush1.msra.mxu0 0.0
    %271 = vmatprep.subr.mxu0 0.0
    %272 = vmatpush1.msra.mxu0 0.0
    %273 = vmatprep.subr.mxu0 0.0
    %274 = vmatpush1.msra.mxu0 0.0
    %275 = vmatprep.subr.mxu0 0.0
    %276 = vmatpush1.msra.mxu0 0.0
    %277 = vmatprep.subr.mxu0 0.0
    %278 = vmatpush1.msra.mxu0 0.0
    %279 = vmatprep.subr.mxu0 0.0
    %280 = vmatpush1.msra.mxu0 0.0
    %281 = vmatprep.subr.mxu0 0.0
    %282 = vmatpush1.msra.mxu0 0.0
    %283 = vmatprep.subr.mxu0 0.0
    %284 = vmatpush1.msra.mxu0 0.0
    %285 = vmatprep.mubr.f32.mxu0 0.0
    %286 = vmatmul.mubr.f32.gmra.mrb[0].mxu0 %v216
    %v287 = vpop.f32.mrb[0].mxu0
    %v288 = vadd.f32 %v214, %v287
    %v289 = vpop.f32.mrb[0].mxu0
    %290 = vmatprep.mubr.f32.mxu0 0.0
    %291 = vmatmul.mubr.f32.gmra.mrb[0].mxu0 %v219
    %v292 = vpop.f32.mrb[0].mxu0
    %v293 = vadd.f32 %v214, %v292
    %v294 = vpop.f32.mrb[0].mxu0
    %295 = vdwg.mxu0
    %297 = vrot.lane.b32.xlu0 %v288, 96
    %v298 = vpop.permute.xlu0 %297
    %vm299 = vcmask 130048
    %v300 = vsel %vm299, %v288, 0
    %v302 = vsel %vm299, %v298, 0
    %304 = vmatprep.subr.mxu0 0.0
    %305 = vmatpush1.xpose.msra.mxu0 %v302
    %306 = vmatprep.subr.mxu0 0.0
    %307 = vmatpush1.xpose.msra.mxu0 0.0
    %308 = vmatprep.subr.mxu0 0.0
    %309 = vmatpush1.xpose.msra.mxu0 0.0
    %310 = vmatprep.subr.mxu0 0.0
    %311 = vmatpush1.xpose.msra.mxu0 0.0
    %312 = vmatprep.subr.mxu0 0.0
    %313 = vmatpush1.xpose.msra.mxu0 0.0
    %314 = vmatprep.subr.mxu0 0.0
    %315 = vmatpush1.xpose.msra.mxu0 0.0
    %316 = vmatprep.subr.mxu0 0.0
    %317 = vmatpush1.xpose.msra.mxu0 0.0
    %318 = vmatprep.subr.mxu0 0.0
    %319 = vmatpush1.xpose.msra.mxu0 0.0
    %320 = vmatprep.subr.mxu0 0.0
    %321 = vmatpush1.xpose.msra.mxu0 0.0
    %322 = vmatprep.subr.mxu0 0.0
    %323 = vmatpush1.xpose.msra.mxu0 0.0
    %324 = vmatprep.subr.mxu0 0.0
    %325 = vmatpush1.xpose.msra.mxu0 0.0
    %326 = vmatprep.subr.mxu0 0.0
    %327 = vmatpush1.xpose.msra.mxu0 0.0
    %328 = vmatprep.subr.mxu0 0.0
    %329 = vmatpush1.xpose.msra.mxu0 0.0
    %330 = vmatprep.subr.mxu0 0.0
    %331 = vmatpush1.xpose.msra.mxu0 0.0
    %332 = vmatprep.subr.mxu0 0.0
    %333 = vmatpush1.xpose.msra.mxu0 0.0
    %334 = vmatprep.subr.mxu0 0.0
    %335 = vmatpush1.xpose.msra.mxu0 0.0
    %336 = vmatprep.subr.mxu0 0.0
    %337 = vmatpush1.xpose.msra.mxu0 0.0
    %338 = vmatprep.subr.mxu0 0.0
    %339 = vmatpush1.xpose.msra.mxu0 0.0
    %340 = vmatprep.subr.mxu0 0.0
    %341 = vmatpush1.xpose.msra.mxu0 0.0
    %342 = vmatprep.subr.mxu0 0.0
    %343 = vmatpush1.xpose.msra.mxu0 0.0
    %344 = vmatprep.subr.mxu0 0.0
    %345 = vmatpush1.xpose.msra.mxu0 0.0
    %346 = vmatprep.subr.mxu0 0.0
    %347 = vmatpush1.xpose.msra.mxu0 0.0
    %348 = vmatprep.subr.mxu0 0.0
    %349 = vmatpush1.xpose.msra.mxu0 0.0
    %350 = vmatprep.subr.mxu0 0.0
    %351 = vmatpush1.xpose.msra.mxu0 0.0
    %352 = vmatprep.subr.mxu0 0.0
    %353 = vmatpush1.xpose.msra.mxu0 0.0
    %354 = vmatprep.subr.mxu0 0.0
    %355 = vmatpush1.xpose.msra.mxu0 0.0
    %356 = vmatprep.subr.mxu0 0.0
    %357 = vmatpush1.xpose.msra.mxu0 0.0
    %358 = vmatprep.subr.mxu0 0.0
    %359 = vmatpush1.xpose.msra.mxu0 0.0
    %360 = vmatprep.subr.mxu0 0.0
    %361 = vmatpush1.xpose.msra.mxu0 0.0
    %362 = vmatprep.subr.mxu0 0.0
    %363 = vmatpush1.xpose.msra.mxu0 0.0
    %364 = vmatprep.subr.mxu0 0.0
    %365 = vmatpush1.xpose.msra.mxu0 0.0
    %366 = vmatprep.subr.mxu0 0.0
    %367 = vmatpush1.xpose.msra.mxu0 0.0
    %368 = vmatprep.mubr.f32.mxu0 0.0
    %369 = vmatmul.mubr.f32.gmra.mrb[0].mxu0 %v300
    %v370 = vpop.f32.mrb[0].mxu0
    %v371 = vadd.f32 0.0, %v370
    %v372 = vpop.f32.mrb[0].mxu0
    %373 = vdwg.mxu0
    %375 = vrot.lane.b32.xlu0 %v293, 96
    %v376 = vpop.permute.xlu0 %375
    %v377 = vsel %vm299, %v293, 0
    %v379 = vsel %vm299, %v376, 0
    %381 = vmatprep.subr.mxu0 0.0
    %382 = vmatpush1.xpose.msra.mxu0 %v379
    %383 = vmatprep.subr.mxu0 0.0
    %384 = vmatpush1.xpose.msra.mxu0 0.0
    %385 = vmatprep.subr.mxu0 0.0
    %386 = vmatpush1.xpose.msra.mxu0 0.0
    %387 = vmatprep.subr.mxu0 0.0
    %388 = vmatpush1.xpose.msra.mxu0 0.0
    %389 = vmatprep.subr.mxu0 0.0
    %390 = vmatpush1.xpose.msra.mxu0 0.0
    %391 = vmatprep.subr.mxu0 0.0
    %392 = vmatpush1.xpose.msra.mxu0 0.0
    %393 = vmatprep.subr.mxu0 0.0
    %394 = vmatpush1.xpose.msra.mxu0 0.0
    %395 = vmatprep.subr.mxu0 0.0
    %396 = vmatpush1.xpose.msra.mxu0 0.0
    %397 = vmatprep.subr.mxu0 0.0
    %398 = vmatpush1.xpose.msra.mxu0 0.0
    %399 = vmatprep.subr.mxu0 0.0
    %400 = vmatpush1.xpose.msra.mxu0 0.0
    %401 = vmatprep.subr.mxu0 0.0
    %402 = vmatpush1.xpose.msra.mxu0 0.0
    %403 = vmatprep.subr.mxu0 0.0
    %404 = vmatpush1.xpose.msra.mxu0 0.0
    %405 = vmatprep.subr.mxu0 0.0
    %406 = vmatpush1.xpose.msra.mxu0 0.0
    %407 = vmatprep.subr.mxu0 0.0
    %408 = vmatpush1.xpose.msra.mxu0 0.0
    %409 = vmatprep.subr.mxu0 0.0
    %410 = vmatpush1.xpose.msra.mxu0 0.0
    %411 = vmatprep.subr.mxu0 0.0
    %412 = vmatpush1.xpose.msra.mxu0 0.0
    %413 = vmatprep.subr.mxu0 0.0
    %414 = vmatpush1.xpose.msra.mxu0 0.0
    %415 = vmatprep.subr.mxu0 0.0
    %416 = vmatpush1.xpose.msra.mxu0 0.0
    %417 = vmatprep.subr.mxu0 0.0
    %418 = vmatpush1.xpose.msra.mxu0 0.0
    %419 = vmatprep.subr.mxu0 0.0
    %420 = vmatpush1.xpose.msra.mxu0 0.0
    %421 = vmatprep.subr.mxu0 0.0
    %422 = vmatpush1.xpose.msra.mxu0 0.0
    %423 = vmatprep.subr.mxu0 0.0
    %424 = vmatpush1.xpose.msra.mxu0 0.0
    %425 = vmatprep.subr.mxu0 0.0
    %426 = vmatpush1.xpose.msra.mxu0 0.0
    %427 = vmatprep.subr.mxu0 0.0
    %428 = vmatpush1.xpose.msra.mxu0 0.0
    %429 = vmatprep.subr.mxu0 0.0
    %430 = vmatpush1.xpose.msra.mxu0 0.0
    %431 = vmatprep.subr.mxu0 0.0
    %432 = vmatpush1.xpose.msra.mxu0 0.0
    %433 = vmatprep.subr.mxu0 0.0
    %434 = vmatpush1.xpose.msra.mxu0 0.0
    %435 = vmatprep.subr.mxu0 0.0
    %436 = vmatpush1.xpose.msra.mxu0 0.0
    %437 = vmatprep.subr.mxu0 0.0
    %438 = vmatpush1.xpose.msra.mxu0 0.0
    %439 = vmatprep.subr.mxu0 0.0
    %440 = vmatpush1.xpose.msra.mxu0 0.0
    %441 = vmatprep.subr.mxu0 0.0
    %442 = vmatpush1.xpose.msra.mxu0 0.0
    %443 = vmatprep.subr.mxu0 0.0
    %444 = vmatpush1.xpose.msra.mxu0 0.0
    %445 = vmatprep.mubr.f32.mxu0 0.0
    %446 = vmatmul.mubr.f32.gmra.mrb[0].mxu0 %v377
    %v447 = vpop.f32.mrb[0].mxu0
    %v448 = vadd.f32 0.0, %v447
    %v449 = vpop.f32.mrb[0].mxu0
    %450 = vdwg.mxu0
    %v451 = vmul.f32 %v371, 0.25
    %v452 = vmul.f32 %v448, 0.25
    %v455 = vunpack.c.l.s4 1966171168
    %v456 = vunpack.c.0.s8 %v455
    %v457 = vlaneseq
    %v458 = vshrl.u32 %v457, 7
    %v459 = vsub.s32 %v456, %v458
    %v460 = vrot.slane %v193, %v459
    %v461 = vcombine.high %v460, %v460
    %v463 = vunpack.c.l.s4 1966171168
    %v464 = vunpack.c.0.s8 %v463
    %v465 = vlaneseq
    %v466 = vshrl.u32 %v465, 7
    %v467 = vsub.s32 %v464, %v466
    %v468 = vrot.slane %v460, %v467
    %v470 = vunpack.c.l.s4 1966171168
    %v471 = vunpack.c.0.s8 %v470
    %v472 = vlaneseq
    %v473 = vshrl.u32 %v472, 7
    %v474 = vsub.s32 %v471, %v473
    %v475 = vrot.slane %v461, %v474
    %v476 = vlaneseq
    %v477 = vshrl.u32 %v476, 7
    %v478 = vsub.s32 0, %v477
    %v479 = vrot.slane %v468, %v478
    %v480 = vlaneseq
    %v481 = vshrl.u32 %v480, 7
    %v482 = vsub.s32 0, %v481
    %v483 = vrot.slane %v475, %v482
    %v486 = vadd.f32 %v451, %v479
    %v487 = vadd.f32 %v452, %v483
    %vm488 = vcmask 64512
    %v489 = vsel %vm488, %v486, -inf
    %490 = vmax.xlane.f32.xlu0 %v489
    %v491 = vpop.xlane.xlu0 %490
    %v492 = vsel %vm488, %v487, -inf
    %493 = vmax.xlane.f32.xlu0 %v492
    %v494 = vpop.xlane.xlu0 %493
    %v495 = vsub.f32 %v486, %v491
    %v496 = vsub.f32 %v487, %v494
    %v497 = vmul.f32 %v495, 1.442695
    %v498 = vpow.pop %v497
    %v499 = vmul.f32 %v496, 1.442695
    %v500 = vpow.pop %v499
    %v501 = vsel %vm488, %v498, 0.0
    %502 = vadd.xlane.f32.xlu0 %v501
    %v503 = vpop.xlane.xlu0 %502
    %v504 = vsel %vm488, %v500, 0.0
    %505 = vadd.xlane.f32.xlu0 %v504
    %v506 = vpop.xlane.xlu0 %505
    %v507 = vrcp.pop %v503
    %v508 = vrcp.pop %v506
    %v509 = vmul.f32 %v498, %v507
    %v510 = vmul.f32 %v500, %v508
    %511 = vrot.lane.b32.xlu0 %v288, 64
    %v512 = vpop.permute.xlu0 %511
    %v515 = vsel %vm488, %v509, 0
    %517 = vmatprep.subr.mxu0 0.0
    %518 = vmatpush1.msra.mxu0 %v512
    %519 = vmatprep.subr.mxu0 0.0
    %520 = vmatpush1.msra.mxu0 0.0
    %521 = vmatprep.subr.mxu0 0.0
    %522 = vmatpush1.msra.mxu0 0.0
    %523 = vmatprep.subr.mxu0 0.0
    %524 = vmatpush1.msra.mxu0 0.0
    %525 = vmatprep.subr.mxu0 0.0
    %526 = vmatpush1.msra.mxu0 0.0
    %527 = vmatprep.subr.mxu0 0.0
    %528 = vmatpush1.msra.mxu0 0.0
    %529 = vmatprep.subr.mxu0 0.0
    %530 = vmatpush1.msra.mxu0 0.0
    %531 = vmatprep.subr.mxu0 0.0
    %532 = vmatpush1.msra.mxu0 0.0
    %533 = vmatprep.subr.mxu0 0.0
    %534 = vmatpush1.msra.mxu0 0.0
    %535 = vmatprep.subr.mxu0 0.0
    %536 = vmatpush1.msra.mxu0 0.0
    %537 = vmatprep.subr.mxu0 0.0
    %538 = vmatpush1.msra.mxu0 0.0
    %539 = vmatprep.subr.mxu0 0.0
    %540 = vmatpush1.msra.mxu0 0.0
    %541 = vmatprep.subr.mxu0 0.0
    %542 = vmatpush1.msra.mxu0 0.0
    %543 = vmatprep.subr.mxu0 0.0
    %544 = vmatpush1.msra.mxu0 0.0
    %545 = vmatprep.subr.mxu0 0.0
    %546 = vmatpush1.msra.mxu0 0.0
    %547 = vmatprep.subr.mxu0 0.0
    %548 = vmatpush1.msra.mxu0 0.0
    %549 = vmatprep.subr.mxu0 0.0
    %550 = vmatpush1.msra.mxu0 0.0
    %551 = vmatprep.subr.mxu0 0.0
    %552 = vmatpush1.msra.mxu0 0.0
    %553 = vmatprep.subr.mxu0 0.0
    %554 = vmatpush1.msra.mxu0 0.0
    %555 = vmatprep.subr.mxu0 0.0
    %556 = vmatpush1.msra.mxu0 0.0
    %557 = vmatprep.subr.mxu0 0.0
    %558 = vmatpush1.msra.mxu0 0.0
    %559 = vmatprep.subr.mxu0 0.0
    %560 = vmatpush1.msra.mxu0 0.0
    %561 = vmatprep.subr.mxu0 0.0
    %562 = vmatpush1.msra.mxu0 0.0
    %563 = vmatprep.subr.mxu0 0.0
    %564 = vmatpush1.msra.mxu0 0.0
    %565 = vmatprep.subr.mxu0 0.0
    %566 = vmatpush1.msra.mxu0 0.0
    %567 = vmatprep.subr.mxu0 0.0
    %568 = vmatpush1.msra.mxu0 0.0
    %569 = vmatprep.subr.mxu0 0.0
    %570 = vmatpush1.msra.mxu0 0.0
    %571 = vmatprep.subr.mxu0 0.0
    %572 = vmatpush1.msra.mxu0 0.0
    %573 = vmatprep.subr.mxu0 0.0
    %574 = vmatpush1.msra.mxu0 0.0
    %575 = vmatprep.subr.mxu0 0.0
    %576 = vmatpush1.msra.mxu0 0.0
    %577 = vmatprep.subr.mxu0 0.0
    %578 = vmatpush1.msra.mxu0 0.0
    %579 = vmatprep.subr.mxu0 0.0
    %580 = vmatpush1.msra.mxu0 0.0
    %581 = vmatprep.mubr.f32.mxu0 0.0
    %582 = vmatmul.mubr.f32.gmra.mrb[0].mxu0 %v515
    %v583 = vpop.f32.mrb[0].mxu0
    %v584 = vadd.f32 0.0, %v583
    %v585 = vpop.f32.mrb[0].mxu0
    %586 = vdwg.mxu0
    %587 = vrot.lane.b32.xlu0 %v293, 64
    %v588 = vpop.permute.xlu0 %587
    %v591 = vsel %vm488, %v510, 0
    %593 = vmatprep.subr.mxu0 0.0
    %594 = vmatpush1.msra.mxu0 %v588
    %595 = vmatprep.subr.mxu0 0.0
    %596 = vmatpush1.msra.mxu0 0.0
    %597 = vmatprep.subr.mxu0 0.0
    %598 = vmatpush1.msra.mxu0 0.0
    %599 = vmatprep.subr.mxu0 0.0
    %600 = vmatpush1.msra.mxu0 0.0
    %601 = vmatprep.subr.mxu0 0.0
    %602 = vmatpush1.msra.mxu0 0.0
    %603 = vmatprep.subr.mxu0 0.0
    %604 = vmatpush1.msra.mxu0 0.0
    %605 = vmatprep.subr.mxu0 0.0
    %606 = vmatpush1.msra.mxu0 0.0
    %607 = vmatprep.subr.mxu0 0.0
    %608 = vmatpush1.msra.mxu0 0.0
    %609 = vmatprep.subr.mxu0 0.0
    %610 = vmatpush1.msra.mxu0 0.0
    %611 = vmatprep.subr.mxu0 0.0
    %612 = vmatpush1.msra.mxu0 0.0
    %613 = vmatprep.subr.mxu0 0.0
    %614 = vmatpush1.msra.mxu0 0.0
    %615 = vmatprep.subr.mxu0 0.0
    %616 = vmatpush1.msra.mxu0 0.0
    %617 = vmatprep.subr.mxu0 0.0
    %618 = vmatpush1.msra.mxu0 0.0
    %619 = vmatprep.subr.mxu0 0.0
    %620 = vmatpush1.msra.mxu0 0.0
    %621 = vmatprep.subr.mxu0 0.0
    %622 = vmatpush1.msra.mxu0 0.0
    %623 = vmatprep.subr.mxu0 0.0
    %624 = vmatpush1.msra.mxu0 0.0
    %625 = vmatprep.subr.mxu0 0.0
    %626 = vmatpush1.msra.mxu0 0.0
    %627 = vmatprep.subr.mxu0 0.0
    %628 = vmatpush1.msra.mxu0 0.0
    %629 = vmatprep.subr.mxu0 0.0
    %630 = vmatpush1.msra.mxu0 0.0
    %631 = vmatprep.subr.mxu0 0.0
    %632 = vmatpush1.msra.mxu0 0.0
    %633 = vmatprep.subr.mxu0 0.0
    %634 = vmatpush1.msra.mxu0 0.0
    %635 = vmatprep.subr.mxu0 0.0
    %636 = vmatpush1.msra.mxu0 0.0
    %637 = vmatprep.subr.mxu0 0.0
    %638 = vmatpush1.msra.mxu0 0.0
    %639 = vmatprep.subr.mxu0 0.0
    %640 = vmatpush1.msra.mxu0 0.0
    %641 = vmatprep.subr.mxu0 0.0
    %642 = vmatpush1.msra.mxu0 0.0
    %643 = vmatprep.subr.mxu0 0.0
    %644 = vmatpush1.msra.mxu0 0.0
    %645 = vmatprep.subr.mxu0 0.0
    %646 = vmatpush1.msra.mxu0 0.0
    %647 = vmatprep.subr.mxu0 0.0
    %648 = vmatpush1.msra.mxu0 0.0
    %649 = vmatprep.subr.mxu0 0.0
    %650 = vmatpush1.msra.mxu0 0.0
    %651 = vmatprep.subr.mxu0 0.0
    %652 = vmatpush1.msra.mxu0 0.0
    %653 = vmatprep.subr.mxu0 0.0
    %654 = vmatpush1.msra.mxu0 0.0
    %655 = vmatprep.subr.mxu0 0.0
    %656 = vmatpush1.msra.mxu0 0.0
    %657 = vmatprep.mubr.f32.mxu0 0.0
    %658 = vmatmul.mubr.f32.gmra.mrb[0].mxu0 %v591
    %v659 = vpop.f32.mrb[0].mxu0
    %v660 = vadd.f32 0.0, %v659
    %v661 = vpop.f32.mrb[0].mxu0
    %662 = vdwg.mxu0
    %663 = vrot.lane.b32.xlu0 %v288, 112
    %v664 = vpop.permute.xlu0 %663
    %665 = vrot.lane.b32.xlu0 %v288, 80
    %v666 = vpop.permute.xlu0 %665
    %v667 = vsel %vm299, %v664, 0
    %v669 = vsel %vm299, %v666, 0
    %671 = vmatprep.subr.mxu0 0.0
    %672 = vmatpush1.xpose.msra.mxu0 %v669
    %673 = vmatprep.subr.mxu0 0.0
    %674 = vmatpush1.xpose.msra.mxu0 0.0
    %675 = vmatprep.subr.mxu0 0.0
    %676 = vmatpush1.xpose.msra.mxu0 0.0
    %677 = vmatprep.subr.mxu0 0.0
    %678 = vmatpush1.xpose.msra.mxu0 0.0
    %679 = vmatprep.subr.mxu0 0.0
    %680 = vmatpush1.xpose.msra.mxu0 0.0
    %681 = vmatprep.subr.mxu0 0.0
    %682 = vmatpush1.xpose.msra.mxu0 0.0
    %683 = vmatprep.subr.mxu0 0.0
    %684 = vmatpush1.xpose.msra.mxu0 0.0
    %685 = vmatprep.subr.mxu0 0.0
    %686 = vmatpush1.xpose.msra.mxu0 0.0
    %687 = vmatprep.subr.mxu0 0.0
    %688 = vmatpush1.xpose.msra.mxu0 0.0
    %689 = vmatprep.subr.mxu0 0.0
    %690 = vmatpush1.xpose.msra.mxu0 0.0
    %691 = vmatprep.subr.mxu0 0.0
    %692 = vmatpush1.xpose.msra.mxu0 0.0
    %693 = vmatprep.subr.mxu0 0.0
    %694 = vmatpush1.xpose.msra.mxu0 0.0
    %695 = vmatprep.subr.mxu0 0.0
    %696 = vmatpush1.xpose.msra.mxu0 0.0
    %697 = vmatprep.subr.mxu0 0.0
    %698 = vmatpush1.xpose.msra.mxu0 0.0
    %699 = vmatprep.subr.mxu0 0.0
    %700 = vmatpush1.xpose.msra.mxu0 0.0
    %701 = vmatprep.subr.mxu0 0.0
    %702 = vmatpush1.xpose.msra.mxu0 0.0
    %703 = vmatprep.subr.mxu0 0.0
    %704 = vmatpush1.xpose.msra.mxu0 0.0
    %705 = vmatprep.subr.mxu0 0.0
    %706 = vmatpush1.xpose.msra.mxu0 0.0
    %707 = vmatprep.subr.mxu0 0.0
    %708 = vmatpush1.xpose.msra.mxu0 0.0
    %709 = vmatprep.subr.mxu0 0.0
    %710 = vmatpush1.xpose.msra.mxu0 0.0
    %711 = vmatprep.subr.mxu0 0.0
    %712 = vmatpush1.xpose.msra.mxu0 0.0
    %713 = vmatprep.subr.mxu0 0.0
    %714 = vmatpush1.xpose.msra.mxu0 0.0
    %715 = vmatprep.subr.mxu0 0.0
    %716 = vmatpush1.xpose.msra.mxu0 0.0
    %717 = vmatprep.subr.mxu0 0.0
    %718 = vmatpush1.xpose.msra.mxu0 0.0
    %719 = vmatprep.subr.mxu0 0.0
    %720 = vmatpush1.xpose.msra.mxu0 0.0
    %721 = vmatprep.subr.mxu0 0.0
    %722 = vmatpush1.xpose.msra.mxu0 0.0
    %723 = vmatprep.subr.mxu0 0.0
    %724 = vmatpush1.xpose.msra.mxu0 0.0
    %725 = vmatprep.subr.mxu0 0.0
    %726 = vmatpush1.xpose.msra.mxu0 0.0
    %727 = vmatprep.subr.mxu0 0.0
    %728 = vmatpush1.xpose.msra.mxu0 0.0
    %729 = vmatprep.subr.mxu0 0.0
    %730 = vmatpush1.xpose.msra.mxu0 0.0
    %731 = vmatprep.subr.mxu0 0.0
    %732 = vmatpush1.xpose.msra.mxu0 0.0
    %733 = vmatprep.subr.mxu0 0.0
    %734 = vmatpush1.xpose.msra.mxu0 0.0
    %735 = vmatprep.mubr.f32.mxu0 0.0
    %736 = vmatmul.mubr.f32.gmra.mrb[0].mxu0 %v667
    %v737 = vpop.f32.mrb[0].mxu0
    %v738 = vadd.f32 0.0, %v737
    %v739 = vpop.f32.mrb[0].mxu0
    %740 = vdwg.mxu0
    %741 = vrot.lane.b32.xlu0 %v293, 112
    %v742 = vpop.permute.xlu0 %741
    %743 = vrot.lane.b32.xlu0 %v293, 80
    %v744 = vpop.permute.xlu0 %743
    %v745 = vsel %vm299, %v742, 0
    %v747 = vsel %vm299, %v744, 0
    %749 = vmatprep.subr.mxu0 0.0
    %750 = vmatpush1.xpose.msra.mxu0 %v747
    %751 = vmatprep.subr.mxu0 0.0
    %752 = vmatpush1.xpose.msra.mxu0 0.0
    %753 = vmatprep.subr.mxu0 0.0
    %754 = vmatpush1.xpose.msra.mxu0 0.0
    %755 = vmatprep.subr.mxu0 0.0
    %756 = vmatpush1.xpose.msra.mxu0 0.0
    %757 = vmatprep.subr.mxu0 0.0
    %758 = vmatpush1.xpose.msra.mxu0 0.0
    %759 = vmatprep.subr.mxu0 0.0
    %760 = vmatpush1.xpose.msra.mxu0 0.0
    %761 = vmatprep.subr.mxu0 0.0
    %762 = vmatpush1.xpose.msra.mxu0 0.0
    %763 = vmatprep.subr.mxu0 0.0
    %764 = vmatpush1.xpose.msra.mxu0 0.0
    %765 = vmatprep.subr.mxu0 0.0
    %766 = vmatpush1.xpose.msra.mxu0 0.0
    %767 = vmatprep.subr.mxu0 0.0
    %768 = vmatpush1.xpose.msra.mxu0 0.0
    %769 = vmatprep.subr.mxu0 0.0
    %770 = vmatpush1.xpose.msra.mxu0 0.0
    %771 = vmatprep.subr.mxu0 0.0
    %772 = vmatpush1.xpose.msra.mxu0 0.0
    %773 = vmatprep.subr.mxu0 0.0
    %774 = vmatpush1.xpose.msra.mxu0 0.0
    %775 = vmatprep.subr.mxu0 0.0
    %776 = vmatpush1.xpose.msra.mxu0 0.0
    %777 = vmatprep.subr.mxu0 0.0
    %778 = vmatpush1.xpose.msra.mxu0 0.0
    %779 = vmatprep.subr.mxu0 0.0
    %780 = vmatpush1.xpose.msra.mxu0 0.0
    %781 = vmatprep.subr.mxu0 0.0
    %782 = vmatpush1.xpose.msra.mxu0 0.0
    %783 = vmatprep.subr.mxu0 0.0
    %784 = vmatpush1.xpose.msra.mxu0 0.0
    %785 = vmatprep.subr.mxu0 0.0
    %786 = vmatpush1.xpose.msra.mxu0 0.0
    %787 = vmatprep.subr.mxu0 0.0
    %788 = vmatpush1.xpose.msra.mxu0 0.0
    %789 = vmatprep.subr.mxu0 0.0
    %790 = vmatpush1.xpose.msra.mxu0 0.0
    %791 = vmatprep.subr.mxu0 0.0
    %792 = vmatpush1.xpose.msra.mxu0 0.0
    %793 = vmatprep.subr.mxu0 0.0
    %794 = vmatpush1.xpose.msra.mxu0 0.0
    %795 = vmatprep.subr.mxu0 0.0
    %796 = vmatpush1.xpose.msra.mxu0 0.0
    %797 = vmatprep.subr.mxu0 0.0
    %798 = vmatpush1.xpose.msra.mxu0 0.0
    %799 = vmatprep.subr.mxu0 0.0
    %800 = vmatpush1.xpose.msra.mxu0 0.0
    %801 = vmatprep.subr.mxu0 0.0
    %802 = vmatpush1.xpose.msra.mxu0 0.0
    %803 = vmatprep.subr.mxu0 0.0
    %804 = vmatpush1.xpose.msra.mxu0 0.0
    %805 = vmatprep.subr.mxu0 0.0
    %806 = vmatpush1.xpose.msra.mxu0 0.0
    %807 = vmatprep.subr.mxu0 0.0
    %808 = vmatpush1.xpose.msra.mxu0 0.0
    %809 = vmatprep.subr.mxu0 0.0
    %810 = vmatpush1.xpose.msra.mxu0 0.0
    %811 = vmatprep.subr.mxu0 0.0
    %812 = vmatpush1.xpose.msra.mxu0 0.0
    %813 = vmatprep.mubr.f32.mxu0 0.0
    %814 = vmatmul.mubr.f32.gmra.mrb[0].mxu0 %v745
    %v815 = vpop.f32.mrb[0].mxu0
    %v816 = vadd.f32 0.0, %v815
    %v817 = vpop.f32.mrb[0].mxu0
    %818 = vdwg.mxu0
    %v819 = vmul.f32 %v738, 0.25
    %v820 = vmul.f32 %v816, 0.25
    %v821 = vadd.f32 %v819, %v479
    %v822 = vadd.f32 %v820, %v483
    %v823 = vsel %vm488, %v821, -inf
    %824 = vmax.xlane.f32.xlu0 %v823
    %v825 = vpop.xlane.xlu0 %824
    %v826 = vsel %vm488, %v822, -inf
    %827 = vmax.xlane.f32.xlu0 %v826
    %v828 = vpop.xlane.xlu0 %827
    %v829 = vsub.f32 %v821, %v825
    %v830 = vsub.f32 %v822, %v828
    %v831 = vmul.f32 %v829, 1.442695
    %v832 = vpow.pop %v831
    %v833 = vmul.f32 %v830, 1.442695
    %v834 = vpow.pop %v833
    %v835 = vsel %vm488, %v832, 0.0
    %836 = vadd.xlane.f32.xlu0 %v835
    %v837 = vpop.xlane.xlu0 %836
    %v838 = vsel %vm488, %v834, 0.0
    %839 = vadd.xlane.f32.xlu0 %v838
    %v840 = vpop.xlane.xlu0 %839
    %v841 = vrcp.pop %v837
    %v842 = vrcp.pop %v840
    %v843 = vmul.f32 %v832, %v841
    %v844 = vmul.f32 %v834, %v842
    %845 = vrot.lane.b32.xlu0 %v288, 48
    %v846 = vpop.permute.xlu0 %845
    %v849 = vsel %vm488, %v843, 0
    %851 = vmatprep.subr.mxu0 0.0
    %852 = vmatpush1.msra.mxu0 %v846
    %853 = vmatprep.subr.mxu0 0.0
    %854 = vmatpush1.msra.mxu0 0.0
    %855 = vmatprep.subr.mxu0 0.0
    %856 = vmatpush1.msra.mxu0 0.0
    %857 = vmatprep.subr.mxu0 0.0
    %858 = vmatpush1.msra.mxu0 0.0
    %859 = vmatprep.subr.mxu0 0.0
    %860 = vmatpush1.msra.mxu0 0.0
    %861 = vmatprep.subr.mxu0 0.0
    %862 = vmatpush1.msra.mxu0 0.0
    %863 = vmatprep.subr.mxu0 0.0
    %864 = vmatpush1.msra.mxu0 0.0
    %865 = vmatprep.subr.mxu0 0.0
    %866 = vmatpush1.msra.mxu0 0.0
    %867 = vmatprep.subr.mxu0 0.0
    %868 = vmatpush1.msra.mxu0 0.0
    %869 = vmatprep.subr.mxu0 0.0
    %870 = vmatpush1.msra.mxu0 0.0
    %871 = vmatprep.subr.mxu0 0.0
    %872 = vmatpush1.msra.mxu0 0.0
    %873 = vmatprep.subr.mxu0 0.0
    %874 = vmatpush1.msra.mxu0 0.0
    %875 = vmatprep.subr.mxu0 0.0
    %876 = vmatpush1.msra.mxu0 0.0
    %877 = vmatprep.subr.mxu0 0.0
    %878 = vmatpush1.msra.mxu0 0.0
    %879 = vmatprep.subr.mxu0 0.0
    %880 = vmatpush1.msra.mxu0 0.0
    %881 = vmatprep.subr.mxu0 0.0
    %882 = vmatpush1.msra.mxu0 0.0
    %883 = vmatprep.subr.mxu0 0.0
    %884 = vmatpush1.msra.mxu0 0.0
    %885 = vmatprep.subr.mxu0 0.0
    %886 = vmatpush1.msra.mxu0 0.0
    %887 = vmatprep.subr.mxu0 0.0
    %888 = vmatpush1.msra.mxu0 0.0
    %889 = vmatprep.subr.mxu0 0.0
    %890 = vmatpush1.msra.mxu0 0.0
    %891 = vmatprep.subr.mxu0 0.0
    %892 = vmatpush1.msra.mxu0 0.0
    %893 = vmatprep.subr.mxu0 0.0
    %894 = vmatpush1.msra.mxu0 0.0
    %895 = vmatprep.subr.mxu0 0.0
    %896 = vmatpush1.msra.mxu0 0.0
    %897 = vmatprep.subr.mxu0 0.0
    %898 = vmatpush1.msra.mxu0 0.0
    %899 = vmatprep.subr.mxu0 0.0
    %900 = vmatpush1.msra.mxu0 0.0
    %901 = vmatprep.subr.mxu0 0.0
    %902 = vmatpush1.msra.mxu0 0.0
    %903 = vmatprep.subr.mxu0 0.0
    %904 = vmatpush1.msra.mxu0 0.0
    %905 = vmatprep.subr.mxu0 0.0
    %906 = vmatpush1.msra.mxu0 0.0
    %907 = vmatprep.subr.mxu0 0.0
    %908 = vmatpush1.msra.mxu0 0.0
    %909 = vmatprep.subr.mxu0 0.0
    %910 = vmatpush1.msra.mxu0 0.0
    %911 = vmatprep.subr.mxu0 0.0
    %912 = vmatpush1.msra.mxu0 0.0
    %913 = vmatprep.subr.mxu0 0.0
    %914 = vmatpush1.msra.mxu0 0.0
    %915 = vmatprep.mubr.f32.mxu0 0.0
    %916 = vmatmul.mubr.f32.gmra.mrb[0].mxu0 %v849
    %v917 = vpop.f32.mrb[0].mxu0
    %v918 = vadd.f32 0.0, %v917
    %v919 = vpop.f32.mrb[0].mxu0
    %920 = vdwg.mxu0
    %921 = vrot.lane.b32.xlu0 %v293, 48
    %v922 = vpop.permute.xlu0 %921
    %v925 = vsel %vm488, %v844, 0
    %927 = vmatprep.subr.mxu0 0.0
    %928 = vmatpush1.msra.mxu0 %v922
    %929 = vmatprep.subr.mxu0 0.0
    %930 = vmatpush1.msra.mxu0 0.0
    %931 = vmatprep.subr.mxu0 0.0
    %932 = vmatpush1.msra.mxu0 0.0
    %933 = vmatprep.subr.mxu0 0.0
    %934 = vmatpush1.msra.mxu0 0.0
    %935 = vmatprep.subr.mxu0 0.0
    %936 = vmatpush1.msra.mxu0 0.0
    %937 = vmatprep.subr.mxu0 0.0
    %938 = vmatpush1.msra.mxu0 0.0
    %939 = vmatprep.subr.mxu0 0.0
    %940 = vmatpush1.msra.mxu0 0.0
    %941 = vmatprep.subr.mxu0 0.0
    %942 = vmatpush1.msra.mxu0 0.0
    %943 = vmatprep.subr.mxu0 0.0
    %944 = vmatpush1.msra.mxu0 0.0
    %945 = vmatprep.subr.mxu0 0.0
    %946 = vmatpush1.msra.mxu0 0.0
    %947 = vmatprep.subr.mxu0 0.0
    %948 = vmatpush1.msra.mxu0 0.0
    %949 = vmatprep.subr.mxu0 0.0
    %950 = vmatpush1.msra.mxu0 0.0
    %951 = vmatprep.subr.mxu0 0.0
    %952 = vmatpush1.msra.mxu0 0.0
    %953 = vmatprep.subr.mxu0 0.0
    %954 = vmatpush1.msra.mxu0 0.0
    %955 = vmatprep.subr.mxu0 0.0
    %956 = vmatpush1.msra.mxu0 0.0
    %957 = vmatprep.subr.mxu0 0.0
    %958 = vmatpush1.msra.mxu0 0.0
    %959 = vmatprep.subr.mxu0 0.0
    %960 = vmatpush1.msra.mxu0 0.0
    %961 = vmatprep.subr.mxu0 0.0
    %962 = vmatpush1.msra.mxu0 0.0
    %963 = vmatprep.subr.mxu0 0.0
    %964 = vmatpush1.msra.mxu0 0.0
    %965 = vmatprep.subr.mxu0 0.0
    %966 = vmatpush1.msra.mxu0 0.0
    %967 = vmatprep.subr.mxu0 0.0
    %968 = vmatpush1.msra.mxu0 0.0
    %969 = vmatprep.subr.mxu0 0.0
    %970 = vmatpush1.msra.mxu0 0.0
    %971 = vmatprep.subr.mxu0 0.0
    %972 = vmatpush1.msra.mxu0 0.0
    %973 = vmatprep.subr.mxu0 0.0
    %974 = vmatpush1.msra.mxu0 0.0
    %975 = vmatprep.subr.mxu0 0.0
    %976 = vmatpush1.msra.mxu0 0.0
    %977 = vmatprep.subr.mxu0 0.0
    %978 = vmatpush1.msra.mxu0 0.0
    %979 = vmatprep.subr.mxu0 0.0
    %980 = vmatpush1.msra.mxu0 0.0
    %981 = vmatprep.subr.mxu0 0.0
    %982 = vmatpush1.msra.mxu0 0.0
    %983 = vmatprep.subr.mxu0 0.0
    %984 = vmatpush1.msra.mxu0 0.0
    %985 = vmatprep.subr.mxu0 0.0
    %986 = vmatpush1.msra.mxu0 0.0
    %987 = vmatprep.subr.mxu0 0.0
    %988 = vmatpush1.msra.mxu0 0.0
    %989 = vmatprep.subr.mxu0 0.0
    %990 = vmatpush1.msra.mxu0 0.0
    %991 = vmatprep.mubr.f32.mxu0 0.0
    %992 = vmatmul.mubr.f32.gmra.mrb[0].mxu0 %v925
    %v993 = vpop.f32.mrb[0].mxu0
    %v994 = vadd.f32 0.0, %v993
    %v995 = vpop.f32.mrb[0].mxu0
    %996 = vdwg.mxu0
    %999 = vrot.lane.b32.xlu0 %v918, 16
    %v1000 = vpop.permute.xlu0 %999
    %1001 = vrot.lane.b32.xlu0 %v994, 16
    %v1002 = vpop.permute.xlu0 %1001
    %v1005 = vsel %vm299, %v584, %v1000
    %v1006 = vsel %vm299, %v660, %v1002
    %v1007 = vlaneseq
    %v1008 = vshrl.u32 %v1007, 7
    %v1009 = vsub.s32 1, %v1008
    %v1010 = vrot.slane %v202, %v1009
    %1015 = vrot.lane.b32.xlu0 %v194, 32
    %v1016 = vpop.permute.xlu0 %1015
    %1017 = vrot.lane.b32.xlu0 %v196, 32
    %v1018 = vpop.permute.xlu0 %1017
    %1019 = vrot.lane.b32.xlu0 %v198, 32
    %v1020 = vpop.permute.xlu0 %1019
    %1021 = vrot.lane.b32.xlu0 %v200, 32
    %v1022 = vpop.permute.xlu0 %1021
    %v1028 = vsel %vm151, %v1005, 0
    %v1031 = vsel %vm151, %v1006, 0
    %1033 = vmatprep.subr.mxu0 0.0
    %1034 = vmatpush1.msra.mxu0 %v1016
    %1035 = vmatprep.subr.mxu0 0.0
    %1036 = vmatpush1.msra.mxu0 %v1018
    %1037 = vmatprep.subr.mxu0 0.0
    %1038 = vmatpush1.msra.mxu0 %v1020
    %1039 = vmatprep.subr.mxu0 0.0
    %1040 = vmatpush1.msra.mxu0 %v1022
    %1041 = vmatprep.subr.mxu0 0.0
    %1042 = vmatpush1.msra.mxu0 0.0
    %1043 = vmatprep.subr.mxu0 0.0
    %1044 = vmatpush1.msra.mxu0 0.0
    %1045 = vmatprep.subr.mxu0 0.0
    %1046 = vmatpush1.msra.mxu0 0.0
    %1047 = vmatprep.subr.mxu0 0.0
    %1048 = vmatpush1.msra.mxu0 0.0
    %1049 = vmatprep.subr.mxu0 0.0
    %1050 = vmatpush1.msra.mxu0 0.0
    %1051 = vmatprep.subr.mxu0 0.0
    %1052 = vmatpush1.msra.mxu0 0.0
    %1053 = vmatprep.subr.mxu0 0.0
    %1054 = vmatpush1.msra.mxu0 0.0
    %1055 = vmatprep.subr.mxu0 0.0
    %1056 = vmatpush1.msra.mxu0 0.0
    %1057 = vmatprep.subr.mxu0 0.0
    %1058 = vmatpush1.msra.mxu0 0.0
    %1059 = vmatprep.subr.mxu0 0.0
    %1060 = vmatpush1.msra.mxu0 0.0
    %1061 = vmatprep.subr.mxu0 0.0
    %1062 = vmatpush1.msra.mxu0 0.0
    %1063 = vmatprep.subr.mxu0 0.0
    %1064 = vmatpush1.msra.mxu0 0.0
    %1065 = vmatprep.subr.mxu0 0.0
    %1066 = vmatpush1.msra.mxu0 0.0
    %1067 = vmatprep.subr.mxu0 0.0
    %1068 = vmatpush1.msra.mxu0 0.0
    %1069 = vmatprep.subr.mxu0 0.0
    %1070 = vmatpush1.msra.mxu0 0.0
    %1071 = vmatprep.subr.mxu0 0.0
    %1072 = vmatpush1.msra.mxu0 0.0
    %1073 = vmatprep.subr.mxu0 0.0
    %1074 = vmatpush1.msra.mxu0 0.0
    %1075 = vmatprep.subr.mxu0 0.0
    %1076 = vmatpush1.msra.mxu0 0.0
    %1077 = vmatprep.subr.mxu0 0.0
    %1078 = vmatpush1.msra.mxu0 0.0
    %1079 = vmatprep.subr.mxu0 0.0
    %1080 = vmatpush1.msra.mxu0 0.0
    %1081 = vmatprep.subr.mxu0 0.0
    %1082 = vmatpush1.msra.mxu0 0.0
    %1083 = vmatprep.subr.mxu0 0.0
    %1084 = vmatpush1.msra.mxu0 0.0
    %1085 = vmatprep.subr.mxu0 0.0
    %1086 = vmatpush1.msra.mxu0 0.0
    %1087 = vmatprep.subr.mxu0 0.0
    %1088 = vmatpush1.msra.mxu0 0.0
    %1089 = vmatprep.subr.mxu0 0.0
    %1090 = vmatpush1.msra.mxu0 0.0
    %1091 = vmatprep.subr.mxu0 0.0
    %1092 = vmatpush1.msra.mxu0 0.0
    %1093 = vmatprep.subr.mxu0 0.0
    %1094 = vmatpush1.msra.mxu0 0.0
    %1095 = vmatprep.subr.mxu0 0.0
    %1096 = vmatpush1.msra.mxu0 0.0
    %1097 = vmatprep.mubr.f32.mxu0 0.0
    %1098 = vmatmul.mubr.f32.gmra.mrb[0].mxu0 %v1028
    %v1099 = vpop.f32.mrb[0].mxu0
    %v1100 = vadd.f32 %v1010, %v1099
    %v1101 = vpop.f32.mrb[0].mxu0
    %1102 = vmatprep.mubr.f32.mxu0 0.0
    %1103 = vmatmul.mubr.f32.gmra.mrb[0].mxu0 %v1031
    %v1104 = vpop.f32.mrb[0].mxu0
    %v1105 = vadd.f32 %v1010, %v1104
    %v1106 = vpop.f32.mrb[0].mxu0
    %1107 = vdwg.mxu0
    %v1108 = vadd.f32 %v189, %v1100
    %v1109 = vadd.f32 %v190, %v1105
    %v1110 = vsel %vm151, %v1108, 0.0
    %1111 = vadd.xlane.f32.xlu0 %v1110
    %v1112 = vpop.xlane.xlu0 %1111
    %v1113 = vsel %vm151, %v1109, 0.0
    %1114 = vadd.xlane.f32.xlu0 %v1113
    %v1115 = vpop.xlane.xlu0 %1114
    %v1116 = vmul.f32 %v1112, %v158
    %v1117 = vmul.f32 %v1115, %v158
    %v1118 = vsub.f32 %v1108, %v1116
    %v1119 = vsub.f32 %v1109, %v1117
    %v1120 = vmul.f32 %v1118, %v1118
    %v1121 = vmul.f32 %v1119, %v1119
    %v1122 = vsel %vm151, %v1120, 0.0
    %1123 = vadd.xlane.f32.xlu0 %v1122
    %v1124 = vpop.xlane.xlu0 %1123
    %v1125 = vsel %vm151, %v1121, 0.0
    %1126 = vadd.xlane.f32.xlu0 %v1125
    %v1127 = vpop.xlane.xlu0 %1126
    %v1128 = vmul.f32 %v1124, %v158
    %v1129 = vmul.f32 %v1127, %v158
    %v1130 = vadd.f32 %v1128, 1e-12
    %v1131 = vadd.f32 %v1129, 1e-12
    %v1132 = vrsqrt.pop %v1130
    %v1133 = vrsqrt.pop %v1131
    %v1134 = vmul.f32 %v1118, %v1132
    %v1135 = vmul.f32 %v1119, %v1133
    %v1136 = vlaneseq
    %v1137 = vshrl.u32 %v1136, 7
    %v1138 = vsub.s32 2, %v1137
    %v1139 = vrot.slane %v202, %v1138
    %v1140 = vmul.f32 %v1134, %v1139
    %v1141 = vmul.f32 %v1135, %v1139
    %v1142 = vlaneseq
    %v1143 = vshrl.u32 %v1142, 7
    %v1144 = vsub.s32 3, %v1143
    %v1145 = vrot.slane %v202, %v1144
    %v1146 = vadd.f32 %v1140, %v1145
    %v1147 = vadd.f32 %v1141, %v1145
    %v1148 = vlaneseq
    %v1149 = vshrl.u32 %v1148, 7
    %v1150 = vsub.s32 4, %v1149
    %v1151 = vrot.slane %v202, %v1150
    %v1153 = vsel %vm151, %v1146, 0
    %v1156 = vsel %vm151, %v1147, 0
    %1158 = vmatprep.subr.mxu0 0.0
    %1159 = vmatpush1.msra.mxu0 %v195
    %1160 = vmatprep.subr.mxu0 0.0
    %1161 = vmatpush1.msra.mxu0 %v197
    %1162 = vmatprep.subr.mxu0 0.0
    %1163 = vmatpush1.msra.mxu0 %v199
    %1164 = vmatprep.subr.mxu0 0.0
    %1165 = vmatpush1.msra.mxu0 %v201
    %1166 = vmatprep.subr.mxu0 0.0
    %1167 = vmatpush1.msra.mxu0 0.0
    %1168 = vmatprep.subr.mxu0 0.0
    %1169 = vmatpush1.msra.mxu0 0.0
    %1170 = vmatprep.subr.mxu0 0.0
    %1171 = vmatpush1.msra.mxu0 0.0
    %1172 = vmatprep.subr.mxu0 0.0
    %1173 = vmatpush1.msra.mxu0 0.0
    %1174 = vmatprep.subr.mxu0 0.0
    %1175 = vmatpush1.msra.mxu0 0.0
    %1176 = vmatprep.subr.mxu0 0.0
    %1177 = vmatpush1.msra.mxu0 0.0
    %1178 = vmatprep.subr.mxu0 0.0
    %1179 = vmatpush1.msra.mxu0 0.0
    %1180 = vmatprep.subr.mxu0 0.0
    %1181 = vmatpush1.msra.mxu0 0.0
    %1182 = vmatprep.subr.mxu0 0.0
    %1183 = vmatpush1.msra.mxu0 0.0
    %1184 = vmatprep.subr.mxu0 0.0
    %1185 = vmatpush1.msra.mxu0 0.0
    %1186 = vmatprep.subr.mxu0 0.0
    %1187 = vmatpush1.msra.mxu0 0.0
    %1188 = vmatprep.subr.mxu0 0.0
    %1189 = vmatpush1.msra.mxu0 0.0
    %1190 = vmatprep.subr.mxu0 0.0
    %1191 = vmatpush1.msra.mxu0 0.0
    %1192 = vmatprep.subr.mxu0 0.0
    %1193 = vmatpush1.msra.mxu0 0.0
    %1194 = vmatprep.subr.mxu0 0.0
    %1195 = vmatpush1.msra.mxu0 0.0
    %1196 = vmatprep.subr.mxu0 0.0
    %1197 = vmatpush1.msra.mxu0 0.0
    %1198 = vmatprep.subr.mxu0 0.0
    %1199 = vmatpush1.msra.mxu0 0.0
    %1200 = vmatprep.subr.mxu0 0.0
    %1201 = vmatpush1.msra.mxu0 0.0
    %1202 = vmatprep.subr.mxu0 0.0
    %1203 = vmatpush1.msra.mxu0 0.0
    %1204 = vmatprep.subr.mxu0 0.0
    %1205 = vmatpush1.msra.mxu0 0.0
    %1206 = vmatprep.subr.mxu0 0.0
    %1207 = vmatpush1.msra.mxu0 0.0
    %1208 = vmatprep.subr.mxu0 0.0
    %1209 = vmatpush1.msra.mxu0 0.0
    %1210 = vmatprep.subr.mxu0 0.0
    %1211 = vmatpush1.msra.mxu0 0.0
    %1212 = vmatprep.subr.mxu0 0.0
    %1213 = vmatpush1.msra.mxu0 0.0
    %1214 = vmatprep.subr.mxu0 0.0
    %1215 = vmatpush1.msra.mxu0 0.0
    %1216 = vmatprep.subr.mxu0 0.0
    %1217 = vmatpush1.msra.mxu0 0.0
    %1218 = vmatprep.subr.mxu0 0.0
    %1219 = vmatpush1.msra.mxu0 0.0
    %1220 = vmatprep.subr.mxu0 0.0
    %1221 = vmatpush1.msra.mxu0 0.0
    %1222 = vmatprep.mubr.f32.mxu0 0.0
    %1223 = vmatmul.mubr.f32.gmra.mrb[0].mxu0 %v1153
    %v1224 = vpop.f32.mrb[0].mxu0
    %v1225 = vadd.f32 %v1151, %v1224
    %v1226 = vpop.f32.mrb[0].mxu0
    %1227 = vmatprep.mubr.f32.mxu0 0.0
    %1228 = vmatmul.mubr.f32.gmra.mrb[0].mxu0 %v1156
    %v1229 = vpop.f32.mrb[0].mxu0
    %v1230 = vadd.f32 %v1151, %v1229
    %v1231 = vpop.f32.mrb[0].mxu0
    %1232 = vdwg.mxu0
    %v1233 = vmul.f32 %v1225, %v1225
    %v1234 = vmul.f32 %v1230, %v1230
    %v1235 = vmul.f32 %v1225, %v1233
    %v1236 = vmul.f32 %v1230, %v1234
    %v1237 = vmul.f32 %v1235, 0.044715
    %v1238 = vmul.f32 %v1236, 0.044715
    %v1239 = vadd.f32 %v1225, %v1237
    %v1240 = vadd.f32 %v1230, %v1238
    %v1241 = vmul.f32 %v1239, 0.7978846
    %v1242 = vmul.f32 %v1240, 0.7978846
    %v1243 = vtanh.pop %v1241
    %v1244 = vtanh.pop %v1242
    %v1245 = vadd.f32 %v1243, 1.0
    %v1246 = vadd.f32 %v1244, 1.0
    %v1247 = vmul.f32 %v1245, 0.5
    %v1248 = vmul.f32 %v1246, 0.5
    %v1249 = vmul.f32 %v1225, %v1247
    %v1250 = vmul.f32 %v1230, %v1248
    %v1251 = vlaneseq
    %v1252 = vshrl.u32 %v1251, 7
    %v1253 = vsub.s32 5, %v1252
    %v1254 = vrot.slane %v202, %v1253
    %v1256 = vsel %vm69, %v1249, 0
    %v1259 = vsel %vm69, %v1250, 0
    %1261 = vmatprep.subr.mxu0 0.0
    %1262 = vmatpush1.msra.mxu0 %v203
    %1263 = vmatprep.subr.mxu0 0.0
    %1264 = vmatpush1.msra.mxu0 %v204
    %1265 = vmatprep.subr.mxu0 0.0
    %1266 = vmatpush1.msra.mxu0 %v205
    %1267 = vmatprep.subr.mxu0 0.0
    %1268 = vmatpush1.msra.mxu0 %v206
    %1269 = vmatprep.subr.mxu0 0.0
    %1270 = vmatpush1.msra.mxu0 %v207
    %1271 = vmatprep.subr.mxu0 0.0
    %1272 = vmatpush1.msra.mxu0 %v208
    %1273 = vmatprep.subr.mxu0 0.0
    %1274 = vmatpush1.msra.mxu0 %v209
    %1275 = vmatprep.subr.mxu0 0.0
    %1276 = vmatpush1.msra.mxu0 %v210
    %1277 = vmatprep.subr.mxu0 0.0
    %1278 = vmatpush1.msra.mxu0 0.0
    %1279 = vmatprep.subr.mxu0 0.0
    %1280 = vmatpush1.msra.mxu0 0.0
    %1281 = vmatprep.subr.mxu0 0.0
    %1282 = vmatpush1.msra.mxu0 0.0
    %1283 = vmatprep.subr.mxu0 0.0
    %1284 = vmatpush1.msra.mxu0 0.0
    %1285 = vmatprep.subr.mxu0 0.0
    %1286 = vmatpush1.msra.mxu0 0.0
    %1287 = vmatprep.subr.mxu0 0.0
    %1288 = vmatpush1.msra.mxu0 0.0
    %1289 = vmatprep.subr.mxu0 0.0
    %1290 = vmatpush1.msra.mxu0 0.0
    %1291 = vmatprep.subr.mxu0 0.0
    %1292 = vmatpush1.msra.mxu0 0.0
    %1293 = vmatprep.subr.mxu0 0.0
    %1294 = vmatpush1.msra.mxu0 0.0
    %1295 = vmatprep.subr.mxu0 0.0
    %1296 = vmatpush1.msra.mxu0 0.0
    %1297 = vmatprep.subr.mxu0 0.0
    %1298 = vmatpush1.msra.mxu0 0.0
    %1299 = vmatprep.subr.mxu0 0.0
    %1300 = vmatpush1.msra.mxu0 0.0
    %1301 = vmatprep.subr.mxu0 0.0
    %1302 = vmatpush1.msra.mxu0 0.0
    %1303 = vmatprep.subr.mxu0 0.0
    %1304 = vmatpush1.msra.mxu0 0.0
    %1305 = vmatprep.subr.mxu0 0.0
    %1306 = vmatpush1.msra.mxu0 0.0
    %1307 = vmatprep.subr.mxu0 0.0
    %1308 = vmatpush1.msra.mxu0 0.0
    %1309 = vmatprep.subr.mxu0 0.0
    %1310 = vmatpush1.msra.mxu0 0.0
    %1311 = vmatprep.subr.mxu0 0.0
    %1312 = vmatpush1.msra.mxu0 0.0
    %1313 = vmatprep.subr.mxu0 0.0
    %1314 = vmatpush1.msra.mxu0 0.0
    %1315 = vmatprep.subr.mxu0 0.0
    %1316 = vmatpush1.msra.mxu0 0.0
    %1317 = vmatprep.subr.mxu0 0.0
    %1318 = vmatpush1.msra.mxu0 0.0
    %1319 = vmatprep.subr.mxu0 0.0
    %1320 = vmatpush1.msra.mxu0 0.0
    %1321 = vmatprep.subr.mxu0 0.0
    %1322 = vmatpush1.msra.mxu0 0.0
    %1323 = vmatprep.subr.mxu0 0.0
    %1324 = vmatpush1.msra.mxu0 0.0
    %1325 = vmatprep.mubr.f32.mxu0 0.0
    %1326 = vmatmul.mubr.f32.gmra.mrb[0].mxu0 %v1256
    %v1327 = vpop.f32.mrb[0].mxu0
    %v1328 = vadd.f32 %v1254, %v1327
    %v1329 = vpop.f32.mrb[0].mxu0
    %1330 = vmatprep.mubr.f32.mxu0 0.0
    %1331 = vmatmul.mubr.f32.gmra.mrb[0].mxu0 %v1259
    %v1332 = vpop.f32.mrb[0].mxu0
    %v1333 = vadd.f32 %v1254, %v1332
    %v1334 = vpop.f32.mrb[0].mxu0
    %1335 = vdwg.mxu0
    %v1336 = vadd.f32 %v1146, %v1328
    %v1337 = vadd.f32 %v1147, %v1333
    %v1338 = vsel %vm151, %v1336, 0.0
    %1339 = vadd.xlane.f32.xlu0 %v1338
    %v1340 = vpop.xlane.xlu0 %1339
    %v1341 = vsel %vm151, %v1337, 0.0
    %1342 = vadd.xlane.f32.xlu0 %v1341
    %v1343 = vpop.xlane.xlu0 %1342
    %v1344 = vmul.f32 %v1340, %v158
    %v1345 = vmul.f32 %v1343, %v158
    %v1346 = vsub.f32 %v1336, %v1344
    %v1347 = vsub.f32 %v1337, %v1345
    %v1348 = vmul.f32 %v1346, %v1346
    %v1349 = vmul.f32 %v1347, %v1347
    %v1350 = vsel %vm151, %v1348, 0.0
    %1351 = vadd.xlane.f32.xlu0 %v1350
    %v1352 = vpop.xlane.xlu0 %1351
    %v1353 = vsel %vm151, %v1349, 0.0
    %1354 = vadd.xlane.f32.xlu0 %v1353
    %v1355 = vpop.xlane.xlu0 %1354
    %v1356 = vmul.f32 %v1352, %v158
    %v1357 = vmul.f32 %v1355, %v158
    %v1358 = vadd.f32 %v1356, 1e-12
    %v1359 = vadd.f32 %v1357, 1e-12
    %v1360 = vrsqrt.pop %v1358
    %v1361 = vrsqrt.pop %v1359
    %v1362 = vmul.f32 %v1346, %v1360
    %v1363 = vmul.f32 %v1347, %v1361
    %v1364 = vlaneseq
    %v1365 = vshrl.u32 %v1364, 7
    %v1366 = vsub.s32 6, %v1365
    %v1367 = vrot.slane %v202, %v1366
    %v1368 = vmul.f32 %v1362, %v1367
    %v1369 = vmul.f32 %v1363, %v1367
    %v1370 = vlaneseq
    %v1371 = vshrl.u32 %v1370, 7
    %v1372 = vsub.s32 7, %v1371
    %v1373 = vrot.slane %v202, %v1372
    %v1374 = vadd.f32 %v1368, %v1373
    %v1375 = vadd.f32 %v1369, %v1373
    %s1376 = scalar_lea.vmem %s3, 64
    %v1377 = vld [vmem:[%s1376] sm:$0xff]
    %v1378 = vld [vmem:[%s1376 + $0x8] sm:$0xff]
    %v1379 = vld [vmem:[%s1376 + $0x10] sm:$0xff]
    %v1380 = vld [vmem:[%s1376 + $0x18] sm:$0xff]
    %v1381 = vld [vmem:[%s1376 + $0x20] sm:$0xff]
    %v1382 = vld [vmem:[%s1376 + $0x28] sm:$0xff]
    %v1383 = vld [vmem:[%s1376 + $0x30] sm:$0xff]
    %v1384 = vld [vmem:[%s1376 + $0x38] sm:$0xff]
    %s1385 = scalar_lea.vmem %s5, 8
    %v1386 = vld [vmem:[%s1385] sm:$0xff]
    %s1387 = scalar_lea.vmem %s4, 64
    %v1388 = vld [vmem:[%s1387] sm:$0xff]
    %v1389 = vld [vmem:[%s1387 + $0x8] sm:$0xff]
    %v1390 = vld [vmem:[%s1387 + $0x10] sm:$0xff]
    %v1391 = vld [vmem:[%s1387 + $0x18] sm:$0xff]
    %v1392 = vld [vmem:[%s1387 + $0x20] sm:$0xff]
    %v1393 = vld [vmem:[%s1387 + $0x28] sm:$0xff]
    %v1394 = vld [vmem:[%s1387 + $0x30] sm:$0xff]
    %v1395 = vld [vmem:[%s1387 + $0x38] sm:$0xff]
    %v1396 = vlaneseq
    %v1397 = vshrl.u32 %v1396, 7
    %v1398 = vsub.s32 0, %v1397
    %v1399 = vrot.slane %v1386, %v1398
    %v1401 = vsel %vm151, %v1374, 0
    %v1404 = vsel %vm151, %v1375, 0
    %1406 = vmatprep.subr.mxu0 0.0
    %1407 = vmatpush1.msra.mxu0 %v1377
    %1408 = vmatprep.subr.mxu0 0.0
    %1409 = vmatpush1.msra.mxu0 %v1379
    %1410 = vmatprep.subr.mxu0 0.0
    %1411 = vmatpush1.msra.mxu0 %v1381
    %1412 = vmatprep.subr.mxu0 0.0
    %1413 = vmatpush1.msra.mxu0 %v1383
    %1414 = vmatprep.subr.mxu0 0.0
    %1415 = vmatpush1.msra.mxu0 0.0
    %1416 = vmatprep.subr.mxu0 0.0
    %1417 = vmatpush1.msra.mxu0 0.0
    %1418 = vmatprep.subr.mxu0 0.0
    %1419 = vmatpush1.msra.mxu0 0.0
    %1420 = vmatprep.subr.mxu0 0.0
    %1421 = vmatpush1.msra.mxu0 0.0
    %1422 = vmatprep.subr.mxu0 0.0
    %1423 = vmatpush1.msra.mxu0 0.0
    %1424 = vmatprep.subr.mxu0 0.0
    %1425 = vmatpush1.msra.mxu0 0.0
    %1426 = vmatprep.subr.mxu0 0.0
    %1427 = vmatpush1.msra.mxu0 0.0
    %1428 = vmatprep.subr.mxu0 0.0
    %1429 = vmatpush1.msra.mxu0 0.0
    %1430 = vmatprep.subr.mxu0 0.0
    %1431 = vmatpush1.msra.mxu0 0.0
    %1432 = vmatprep.subr.mxu0 0.0
    %1433 = vmatpush1.msra.mxu0 0.0
    %1434 = vmatprep.subr.mxu0 0.0
    %1435 = vmatpush1.msra.mxu0 0.0
    %1436 = vmatprep.subr.mxu0 0.0
    %1437 = vmatpush1.msra.mxu0 0.0
    %1438 = vmatprep.subr.mxu0 0.0
    %1439 = vmatpush1.msra.mxu0 0.0
    %1440 = vmatprep.subr.mxu0 0.0
    %1441 = vmatpush1.msra.mxu0 0.0
    %1442 = vmatprep.subr.mxu0 0.0
    %1443 = vmatpush1.msra.mxu0 0.0
    %1444 = vmatprep.subr.mxu0 0.0
    %1445 = vmatpush1.msra.mxu0 0.0
    %1446 = vmatprep.subr.mxu0 0.0
    %1447 = vmatpush1.msra.mxu0 0.0
    %1448 = vmatprep.subr.mxu0 0.0
    %1449 = vmatpush1.msra.mxu0 0.0
    %1450 = vmatprep.subr.mxu0 0.0
    %1451 = vmatpush1.msra.mxu0 0.0
    %1452 = vmatprep.subr.mxu0 0.0
    %1453 = vmatpush1.msra.mxu0 0.0
    %1454 = vmatprep.subr.mxu0 0.0
    %1455 = vmatpush1.msra.mxu0 0.0
    %1456 = vmatprep.subr.mxu0 0.0
    %1457 = vmatpush1.msra.mxu0 0.0
    %1458 = vmatprep.subr.mxu0 0.0
    %1459 = vmatpush1.msra.mxu0 0.0
    %1460 = vmatprep.subr.mxu0 0.0
    %1461 = vmatpush1.msra.mxu0 0.0
    %1462 = vmatprep.subr.mxu0 0.0
    %1463 = vmatpush1.msra.mxu0 0.0
    %1464 = vmatprep.subr.mxu0 0.0
    %1465 = vmatpush1.msra.mxu0 0.0
    %1466 = vmatprep.subr.mxu0 0.0
    %1467 = vmatpush1.msra.mxu0 0.0
    %1468 = vmatprep.subr.mxu0 0.0
    %1469 = vmatpush1.msra.mxu0 0.0
    %1470 = vmatprep.mubr.f32.mxu0 0.0
    %1471 = vmatmul.mubr.f32.gmra.mrb[0].mxu0 %v1401
    %v1472 = vpop.f32.mrb[0].mxu0
    %v1473 = vadd.f32 %v1399, %v1472
    %v1474 = vpop.f32.mrb[0].mxu0
    %1475 = vmatprep.mubr.f32.mxu0 0.0
    %1476 = vmatmul.mubr.f32.gmra.mrb[0].mxu0 %v1404
    %v1477 = vpop.f32.mrb[0].mxu0
    %v1478 = vadd.f32 %v1399, %v1477
    %v1479 = vpop.f32.mrb[0].mxu0
    %1480 = vdwg.mxu0
    %1482 = vrot.lane.b32.xlu0 %v1473, 96
    %v1483 = vpop.permute.xlu0 %1482
    %v1484 = vsel %vm299, %v1473, 0
    %v1486 = vsel %vm299, %v1483, 0
    %1488 = vmatprep.subr.mxu0 0.0
    %1489 = vmatpush1.xpose.msra.mxu0 %v1486
    %1490 = vmatprep.subr.mxu0 0.0
    %1491 = vmatpush1.xpose.msra.mxu0 0.0
    %1492 = vmatprep.subr.mxu0 0.0
    %1493 = vmatpush1.xpose.msra.mxu0 0.0
    %1494 = vmatprep.subr.mxu0 0.0
    %1495 = vmatpush1.xpose.msra.mxu0 0.0
    %1496 = vmatprep.subr.mxu0 0.0
    %1497 = vmatpush1.xpose.msra.mxu0 0.0
    %1498 = vmatprep.subr.mxu0 0.0
    %1499 = vmatpush1.xpose.msra.mxu0 0.0
    %1500 = vmatprep.subr.mxu0 0.0
    %1501 = vmatpush1.xpose.msra.mxu0 0.0
    %1502 = vmatprep.subr.mxu0 0.0
    %1503 = vmatpush1.xpose.msra.mxu0 0.0
    %1504 = vmatprep.subr.mxu0 0.0
    %1505 = vmatpush1.xpose.msra.mxu0 0.0
    %1506 = vmatprep.subr.mxu0 0.0
    %1507 = vmatpush1.xpose.msra.mxu0 0.0
    %1508 = vmatprep.subr.mxu0 0.0
    %1509 = vmatpush1.xpose.msra.mxu0 0.0
    %1510 = vmatprep.subr.mxu0 0.0
    %1511 = vmatpush1.xpose.msra.mxu0 0.0
    %1512 = vmatprep.subr.mxu0 0.0
    %1513 = vmatpush1.xpose.msra.mxu0 0.0
    %1514 = vmatprep.subr.mxu0 0.0
    %1515 = vmatpush1.xpose.msra.mxu0 0.0
    %1516 = vmatprep.subr.mxu0 0.0
    %1517 = vmatpush1.xpose.msra.mxu0 0.0
    %1518 = vmatprep.subr.mxu0 0.0
    %1519 = vmatpush1.xpose.msra.mxu0 0.0
    %1520 = vmatprep.subr.mxu0 0.0
    %1521 = vmatpush1.xpose.msra.mxu0 0.0
    %1522 = vmatprep.subr.mxu0 0.0
    %1523 = vmatpush1.xpose.msra.mxu0 0.0
    %1524 = vmatprep.subr.mxu0 0.0
    %1525 = vmatpush1.xpose.msra.mxu0 0.0
    %1526 = vmatprep.subr.mxu0 0.0
    %1527 = vmatpush1.xpose.msra.mxu0 0.0
    %1528 = vmatprep.subr.mxu0 0.0
    %1529 = vmatpush1.xpose.msra.mxu0 0.0
    %1530 = vmatprep.subr.mxu0 0.0
    %1531 = vmatpush1.xpose.msra.mxu0 0.0
    %1532 = vmatprep.subr.mxu0 0.0
    %1533 = vmatpush1.xpose.msra.mxu0 0.0
    %1534 = vmatprep.subr.mxu0 0.0
    %1535 = vmatpush1.xpose.msra.mxu0 0.0
    %1536 = vmatprep.subr.mxu0 0.0
    %1537 = vmatpush1.xpose.msra.mxu0 0.0
    %1538 = vmatprep.subr.mxu0 0.0
    %1539 = vmatpush1.xpose.msra.mxu0 0.0
    %1540 = vmatprep.subr.mxu0 0.0
    %1541 = vmatpush1.xpose.msra.mxu0 0.0
    %1542 = vmatprep.subr.mxu0 0.0
    %1543 = vmatpush1.xpose.msra.mxu0 0.0
    %1544 = vmatprep.subr.mxu0 0.0
    %1545 = vmatpush1.xpose.msra.mxu0 0.0
    %1546 = vmatprep.subr.mxu0 0.0
    %1547 = vmatpush1.xpose.msra.mxu0 0.0
    %1548 = vmatprep.subr.mxu0 0.0
    %1549 = vmatpush1.xpose.msra.mxu0 0.0
    %1550 = vmatprep.subr.mxu0 0.0
    %1551 = vmatpush1.xpose.msra.mxu0 0.0
    %1552 = vmatprep.mubr.f32.mxu0 0.0
    %1553 = vmatmul.mubr.f32.gmra.mrb[0].mxu0 %v1484
    %v1554 = vpop.f32.mrb[0].mxu0
    %v1555 = vadd.f32 0.0, %v1554
    %v1556 = vpop.f32.mrb[0].mxu0
    %1557 = vdwg.mxu0
    %1559 = vrot.lane.b32.xlu0 %v1478, 96
    %v1560 = vpop.permute.xlu0 %1559
    %v1561 = vsel %vm299, %v1478, 0
    %v1563 = vsel %vm299, %v1560, 0
    %1565 = vmatprep.subr.mxu0 0.0
    %1566 = vmatpush1.xpose.msra.mxu0 %v1563
    %1567 = vmatprep.subr.mxu0 0.0
    %1568 = vmatpush1.xpose.msra.mxu0 0.0
    %1569 = vmatprep.subr.mxu0 0.0
    %1570 = vmatpush1.xpose.msra.mxu0 0.0
    %1571 = vmatprep.subr.mxu0 0.0
    %1572 = vmatpush1.xpose.msra.mxu0 0.0
    %1573 = vmatprep.subr.mxu0 0.0
    %1574 = vmatpush1.xpose.msra.mxu0 0.0
    %1575 = vmatprep.subr.mxu0 0.0
    %1576 = vmatpush1.xpose.msra.mxu0 0.0
    %1577 = vmatprep.subr.mxu0 0.0
    %1578 = vmatpush1.xpose.msra.mxu0 0.0
    %1579 = vmatprep.subr.mxu0 0.0
    %1580 = vmatpush1.xpose.msra.mxu0 0.0
    %1581 = vmatprep.subr.mxu0 0.0
    %1582 = vmatpush1.xpose.msra.mxu0 0.0
    %1583 = vmatprep.subr.mxu0 0.0
    %1584 = vmatpush1.xpose.msra.mxu0 0.0
    %1585 = vmatprep.subr.mxu0 0.0
    %1586 = vmatpush1.xpose.msra.mxu0 0.0
    %1587 = vmatprep.subr.mxu0 0.0
    %1588 = vmatpush1.xpose.msra.mxu0 0.0
    %1589 = vmatprep.subr.mxu0 0.0
    %1590 = vmatpush1.xpose.msra.mxu0 0.0
    %1591 = vmatprep.subr.mxu0 0.0
    %1592 = vmatpush1.xpose.msra.mxu0 0.0
    %1593 = vmatprep.subr.mxu0 0.0
    %1594 = vmatpush1.xpose.msra.mxu0 0.0
    %1595 = vmatprep.subr.mxu0 0.0
    %1596 = vmatpush1.xpose.msra.mxu0 0.0
    %1597 = vmatprep.subr.mxu0 0.0
    %1598 = vmatpush1.xpose.msra.mxu0 0.0
    %1599 = vmatprep.subr.mxu0 0.0
    %1600 = vmatpush1.xpose.msra.mxu0 0.0
    %1601 = vmatprep.subr.mxu0 0.0
    %1602 = vmatpush1.xpose.msra.mxu0 0.0
    %1603 = vmatprep.subr.mxu0 0.0
    %1604 = vmatpush1.xpose.msra.mxu0 0.0
    %1605 = vmatprep.subr.mxu0 0.0
    %1606 = vmatpush1.xpose.msra.mxu0 0.0
    %1607 = vmatprep.subr.mxu0 0.0
    %1608 = vmatpush1.xpose.msra.mxu0 0.0
    %1609 = vmatprep.subr.mxu0 0.0
    %1610 = vmatpush1.xpose.msra.mxu0 0.0
    %1611 = vmatprep.subr.mxu0 0.0
    %1612 = vmatpush1.xpose.msra.mxu0 0.0
    %1613 = vmatprep.subr.mxu0 0.0
    %1614 = vmatpush1.xpose.msra.mxu0 0.0
    %1615 = vmatprep.subr.mxu0 0.0
    %1616 = vmatpush1.xpose.msra.mxu0 0.0
    %1617 = vmatprep.subr.mxu0 0.0
    %1618 = vmatpush1.xpose.msra.mxu0 0.0
    %1619 = vmatprep.subr.mxu0 0.0
    %1620 = vmatpush1.xpose.msra.mxu0 0.0
    %1621 = vmatprep.subr.mxu0 0.0
    %1622 = vmatpush1.xpose.msra.mxu0 0.0
    %1623 = vmatprep.subr.mxu0 0.0
    %1624 = vmatpush1.xpose.msra.mxu0 0.0
    %1625 = vmatprep.subr.mxu0 0.0
    %1626 = vmatpush1.xpose.msra.mxu0 0.0
    %1627 = vmatprep.subr.mxu0 0.0
    %1628 = vmatpush1.xpose.msra.mxu0 0.0
    %1629 = vmatprep.mubr.f32.mxu0 0.0
    %1630 = vmatmul.mubr.f32.gmra.mrb[0].mxu0 %v1561
    %v1631 = vpop.f32.mrb[0].mxu0
    %v1632 = vadd.f32 0.0, %v1631
    %v1633 = vpop.f32.mrb[0].mxu0
    %1634 = vdwg.mxu0
    %v1635 = vmul.f32 %v1555, 0.25
    %v1636 = vmul.f32 %v1632, 0.25
    %v1637 = vadd.f32 %v1635, %v479
    %v1638 = vadd.f32 %v1636, %v483
    %v1639 = vsel %vm488, %v1637, -inf
    %1640 = vmax.xlane.f32.xlu0 %v1639
    %v1641 = vpop.xlane.xlu0 %1640
    %v1642 = vsel %vm488, %v1638, -inf
    %1643 = vmax.xlane.f32.xlu0 %v1642
    %v1644 = vpop.xlane.xlu0 %1643
    %v1645 = vsub.f32 %v1637, %v1641
    %v1646 = vsub.f32 %v1638, %v1644
    %v1647 = vmul.f32 %v1645, 1.442695
    %v1648 = vpow.pop %v1647
    %v1649 = vmul.f32 %v1646, 1.442695
    %v1650 = vpow.pop %v1649
    %v1651 = vsel %vm488, %v1648, 0.0
    %1652 = vadd.xlane.f32.xlu0 %v1651
    %v1653 = vpop.xlane.xlu0 %1652
    %v1654 = vsel %vm488, %v1650, 0.0
    %1655 = vadd.xlane.f32.xlu0 %v1654
    %v1656 = vpop.xlane.xlu0 %1655
    %v1657 = vrcp.pop %v1653
    %v1658 = vrcp.pop %v1656
    %v1659 = vmul.f32 %v1648, %v1657
    %v1660 = vmul.f32 %v1650, %v1658
    %1661 = vrot.lane.b32.xlu0 %v1473, 64
    %v1662 = vpop.permute.xlu0 %1661
    %v1665 = vsel %vm488, %v1659, 0
    %1667 = vmatprep.subr.mxu0 0.0
    %1668 = vmatpush1.msra.mxu0 %v1662
    %1669 = vmatprep.subr.mxu0 0.0
    %1670 = vmatpush1.msra.mxu0 0.0
    %1671 = vmatprep.subr.mxu0 0.0
    %1672 = vmatpush1.msra.mxu0 0.0
    %1673 = vmatprep.subr.mxu0 0.0
    %1674 = vmatpush1.msra.mxu0 0.0
    %1675 = vmatprep.subr.mxu0 0.0
    %1676 = vmatpush1.msra.mxu0 0.0
    %1677 = vmatprep.subr.mxu0 0.0
    %1678 = vmatpush1.msra.mxu0 0.0
    %1679 = vmatprep.subr.mxu0 0.0
    %1680 = vmatpush1.msra.mxu0 0.0
    %1681 = vmatprep.subr.mxu0 0.0
    %1682 = vmatpush1.msra.mxu0 0.0
    %1683 = vmatprep.subr.mxu0 0.0
    %1684 = vmatpush1.msra.mxu0 0.0
    %1685 = vmatprep.subr.mxu0 0.0
    %1686 = vmatpush1.msra.mxu0 0.0
    %1687 = vmatprep.subr.mxu0 0.0
    %1688 = vmatpush1.msra.mxu0 0.0
    %1689 = vmatprep.subr.mxu0 0.0
    %1690 = vmatpush1.msra.mxu0 0.0
    %1691 = vmatprep.subr.mxu0 0.0
    %1692 = vmatpush1.msra.mxu0 0.0
    %1693 = vmatprep.subr.mxu0 0.0
    %1694 = vmatpush1.msra.mxu0 0.0
    %1695 = vmatprep.subr.mxu0 0.0
    %1696 = vmatpush1.msra.mxu0 0.0
    %1697 = vmatprep.subr.mxu0 0.0
    %1698 = vmatpush1.msra.mxu0 0.0
    %1699 = vmatprep.subr.mxu0 0.0
    %1700 = vmatpush1.msra.mxu0 0.0
    %1701 = vmatprep.subr.mxu0 0.0
    %1702 = vmatpush1.msra.mxu0 0.0
    %1703 = vmatprep.subr.mxu0 0.0
    %1704 = vmatpush1.msra.mxu0 0.0
    %1705 = vmatprep.subr.mxu0 0.0
    %1706 = vmatpush1.msra.mxu0 0.0
    %1707 = vmatprep.subr.mxu0 0.0
    %1708 = vmatpush1.msra.mxu0 0.0
    %1709 = vmatprep.subr.mxu0 0.0
    %1710 = vmatpush1.msra.mxu0 0.0
    %1711 = vmatprep.subr.mxu0 0.0
    %1712 = vmatpush1.msra.mxu0 0.0
    %1713 = vmatprep.subr.mxu0 0.0
    %1714 = vmatpush1.msra.mxu0 0.0
    %1715 = vmatprep.subr.mxu0 0.0
    %1716 = vmatpush1.msra.mxu0 0.0
    %1717 = vmatprep.subr.mxu0 0.0
    %1718 = vmatpush1.msra.mxu0 0.0
    %1719 = vmatprep.subr.mxu0 0.0
    %1720 = vmatpush1.msra.mxu0 0.0
    %1721 = vmatprep.subr.mxu0 0.0
    %1722 = vmatpush1.msra.mxu0 0.0
    %1723 = vmatprep.subr.mxu0 0.0
    %1724 = vmatpush1.msra.mxu0 0.0
    %1725 = vmatprep.subr.mxu0 0.0
    %1726 = vmatpush1.msra.mxu0 0.0
    %1727 = vmatprep.subr.mxu0 0.0
    %1728 = vmatpush1.msra.mxu0 0.0
    %1729 = vmatprep.subr.mxu0 0.0
    %1730 = vmatpush1.msra.mxu0 0.0
    %1731 = vmatprep.mubr.f32.mxu0 0.0
    %1732 = vmatmul.mubr.f32.gmra.mrb[0].mxu0 %v1665
    %v1733 = vpop.f32.mrb[0].mxu0
    %v1734 = vadd.f32 0.0, %v1733
    %v1735 = vpop.f32.mrb[0].mxu0
    %1736 = vdwg.mxu0
    %1737 = vrot.lane.b32.xlu0 %v1478, 64
    %v1738 = vpop.permute.xlu0 %1737
    %v1741 = vsel %vm488, %v1660, 0
    %1743 = vmatprep.subr.mxu0 0.0
    %1744 = vmatpush1.msra.mxu0 %v1738
    %1745 = vmatprep.subr.mxu0 0.0
    %1746 = vmatpush1.msra.mxu0 0.0
    %1747 = vmatprep.subr.mxu0 0.0
    %1748 = vmatpush1.msra.mxu0 0.0
    %1749 = vmatprep.subr.mxu0 0.0
    %1750 = vmatpush1.msra.mxu0 0.0
    %1751 = vmatprep.subr.mxu0 0.0
    %1752 = vmatpush1.msra.mxu0 0.0
    %1753 = vmatprep.subr.mxu0 0.0
    %1754 = vmatpush1.msra.mxu0 0.0
    %1755 = vmatprep.subr.mxu0 0.0
    %1756 = vmatpush1.msra.mxu0 0.0
    %1757 = vmatprep.subr.mxu0 0.0
    %1758 = vmatpush1.msra.mxu0 0.0
    %1759 = vmatprep.subr.mxu0 0.0
    %1760 = vmatpush1.msra.mxu0 0.0
    %1761 = vmatprep.subr.mxu0 0.0
    %1762 = vmatpush1.msra.mxu0 0.0
    %1763 = vmatprep.subr.mxu0 0.0
    %1764 = vmatpush1.msra.mxu0 0.0
    %1765 = vmatprep.subr.mxu0 0.0
    %1766 = vmatpush1.msra.mxu0 0.0
    %1767 = vmatprep.subr.mxu0 0.0
    %1768 = vmatpush1.msra.mxu0 0.0
    %1769 = vmatprep.subr.mxu0 0.0
    %1770 = vmatpush1.msra.mxu0 0.0
    %1771 = vmatprep.subr.mxu0 0.0
    %1772 = vmatpush1.msra.mxu0 0.0
    %1773 = vmatprep.subr.mxu0 0.0
    %1774 = vmatpush1.msra.mxu0 0.0
    %1775 = vmatprep.subr.mxu0 0.0
    %1776 = vmatpush1.msra.mxu0 0.0
    %1777 = vmatprep.subr.mxu0 0.0
    %1778 = vmatpush1.msra.mxu0 0.0
    %1779 = vmatprep.subr.mxu0 0.0
    %1780 = vmatpush1.msra.mxu0 0.0
    %1781 = vmatprep.subr.mxu0 0.0
    %1782 = vmatpush1.msra.mxu0 0.0
    %1783 = vmatprep.subr.mxu0 0.0
    %1784 = vmatpush1.msra.mxu0 0.0
    %1785 = vmatprep.subr.mxu0 0.0
    %1786 = vmatpush1.msra.mxu0 0.0
    %1787 = vmatprep.subr.mxu0 0.0
    %1788 = vmatpush1.msra.mxu0 0.0
    %1789 = vmatprep.subr.mxu0 0.0
    %1790 = vmatpush1.msra.mxu0 0.0
    %1791 = vmatprep.subr.mxu0 0.0
    %1792 = vmatpush1.msra.mxu0 0.0
    %1793 = vmatprep.subr.mxu0 0.0
    %1794 = vmatpush1.msra.mxu0 0.0
    %1795 = vmatprep.subr.mxu0 0.0
    %1796 = vmatpush1.msra.mxu0 0.0
    %1797 = vmatprep.subr.mxu0 0.0
    %1798 = vmatpush1.msra.mxu0 0.0
    %1799 = vmatprep.subr.mxu0 0.0
    %1800 = vmatpush1.msra.mxu0 0.0
    %1801 = vmatprep.subr.mxu0 0.0
    %1802 = vmatpush1.msra.mxu0 0.0
    %1803 = vmatprep.subr.mxu0 0.0
    %1804 = vmatpush1.msra.mxu0 0.0
    %1805 = vmatprep.subr.mxu0 0.0
    %1806 = vmatpush1.msra.mxu0 0.0
    %1807 = vmatprep.mubr.f32.mxu0 0.0
    %1808 = vmatmul.mubr.f32.gmra.mrb[0].mxu0 %v1741
    %v1809 = vpop.f32.mrb[0].mxu0
    %v1810 = vadd.f32 0.0, %v1809
    %v1811 = vpop.f32.mrb[0].mxu0
    %1812 = vdwg.mxu0
    %1813 = vrot.lane.b32.xlu0 %v1473, 112
    %v1814 = vpop.permute.xlu0 %1813
    %1815 = vrot.lane.b32.xlu0 %v1473, 80
    %v1816 = vpop.permute.xlu0 %1815
    %v1817 = vsel %vm299, %v1814, 0
    %v1819 = vsel %vm299, %v1816, 0
    %1821 = vmatprep.subr.mxu0 0.0
    %1822 = vmatpush1.xpose.msra.mxu0 %v1819
    %1823 = vmatprep.subr.mxu0 0.0
    %1824 = vmatpush1.xpose.msra.mxu0 0.0
    %1825 = vmatprep.subr.mxu0 0.0
    %1826 = vmatpush1.xpose.msra.mxu0 0.0
    %1827 = vmatprep.subr.mxu0 0.0
    %1828 = vmatpush1.xpose.msra.mxu0 0.0
    %1829 = vmatprep.subr.mxu0 0.0
    %1830 = vmatpush1.xpose.msra.mxu0 0.0
    %1831 = vmatprep.subr.mxu0 0.0
    %1832 = vmatpush1.xpose.msra.mxu0 0.0
    %1833 = vmatprep.subr.mxu0 0.0
    %1834 = vmatpush1.xpose.msra.mxu0 0.0
    %1835 = vmatprep.subr.mxu0 0.0
    %1836 = vmatpush1.xpose.msra.mxu0 0.0
    %1837 = vmatprep.subr.mxu0 0.0
    %1838 = vmatpush1.xpose.msra.mxu0 0.0
    %1839 = vmatprep.subr.mxu0 0.0
    %1840 = vmatpush1.xpose.msra.mxu0 0.0
    %1841 = vmatprep.subr.mxu0 0.0
    %1842 = vmatpush1.xpose.msra.mxu0 0.0
    %1843 = vmatprep.subr.mxu0 0.0
    %1844 = vmatpush1.xpose.msra.mxu0 0.0
    %1845 = vmatprep.subr.mxu0 0.0
    %1846 = vmatpush1.xpose.msra.mxu0 0.0
    %1847 = vmatprep.subr.mxu0 0.0
    %1848 = vmatpush1.xpose.msra.mxu0 0.0
    %1849 = vmatprep.subr.mxu0 0.0
    %1850 = vmatpush1.xpose.msra.mxu0 0.0
    %1851 = vmatprep.subr.mxu0 0.0
    %1852 = vmatpush1.xpose.msra.mxu0 0.0
    %1853 = vmatprep.subr.mxu0 0.0
    %1854 = vmatpush1.xpose.msra.mxu0 0.0
    %1855 = vmatprep.subr.mxu0 0.0
    %1856 = vmatpush1.xpose.msra.mxu0 0.0
    %1857 = vmatprep.subr.mxu0 0.0
    %1858 = vmatpush1.xpose.msra.mxu0 0.0
    %1859 = vmatprep.subr.mxu0 0.0
    %1860 = vmatpush1.xpose.msra.mxu0 0.0
    %1861 = vmatprep.subr.mxu0 0.0
    %1862 = vmatpush1.xpose.msra.mxu0 0.0
    %1863 = vmatprep.subr.mxu0 0.0
    %1864 = vmatpush1.xpose.msra.mxu0 0.0
    %1865 = vmatprep.subr.mxu0 0.0
    %1866 = vmatpush1.xpose.msra.mxu0 0.0
    %1867 = vmatprep.subr.mxu0 0.0
    %1868 = vmatpush1.xpose.msra.mxu0 0.0
    %1869 = vmatprep.subr.mxu0 0.0
    %1870 = vmatpush1.xpose.msra.mxu0 0.0
    %1871 = vmatprep.subr.mxu0 0.0
    %1872 = vmatpush1.xpose.msra.mxu0 0.0
    %1873 = vmatprep.subr.mxu0 0.0
    %1874 = vmatpush1.xpose.msra.mxu0 0.0
    %1875 = vmatprep.subr.mxu0 0.0
    %1876 = vmatpush1.xpose.msra.mxu0 0.0
    %1877 = vmatprep.subr.mxu0 0.0
    %1878 = vmatpush1.xpose.msra.mxu0 0.0
    %1879 = vmatprep.subr.mxu0 0.0
    %1880 = vmatpush1.xpose.msra.mxu0 0.0
    %1881 = vmatprep.subr.mxu0 0.0
    %1882 = vmatpush1.xpose.msra.mxu0 0.0
    %1883 = vmatprep.subr.mxu0 0.0
    %1884 = vmatpush1.xpose.msra.mxu0 0.0
    %1885 = vmatprep.mubr.f32.mxu0 0.0
    %1886 = vmatmul.mubr.f32.gmra.mrb[0].mxu0 %v1817
    %v1887 = vpop.f32.mrb[0].mxu0
    %v1888 = vadd.f32 0.0, %v1887
    %v1889 = vpop.f32.mrb[0].mxu0
    %1890 = vdwg.mxu0
    %1891 = vrot.lane.b32.xlu0 %v1478, 112
    %v1892 = vpop.permute.xlu0 %1891
    %1893 = vrot.lane.b32.xlu0 %v1478, 80
    %v1894 = vpop.permute.xlu0 %1893
    %v1895 = vsel %vm299, %v1892, 0
    %v1897 = vsel %vm299, %v1894, 0
    %1899 = vmatprep.subr.mxu0 0.0
    %1900 = vmatpush1.xpose.msra.mxu0 %v1897
    %1901 = vmatprep.subr.mxu0 0.0
    %1902 = vmatpush1.xpose.msra.mxu0 0.0
    %1903 = vmatprep.subr.mxu0 0.0
    %1904 = vmatpush1.xpose.msra.mxu0 0.0
    %1905 = vmatprep.subr.mxu0 0.0
    %1906 = vmatpush1.xpose.msra.mxu0 0.0
    %1907 = vmatprep.subr.mxu0 0.0
    %1908 = vmatpush1.xpose.msra.mxu0 0.0
    %1909 = vmatprep.subr.mxu0 0.0
    %1910 = vmatpush1.xpose.msra.mxu0 0.0
    %1911 = vmatprep.subr.mxu0 0.0
    %1912 = vmatpush1.xpose.msra.mxu0 0.0
    %1913 = vmatprep.subr.mxu0 0.0
    %1914 = vmatpush1.xpose.msra.mxu0 0.0
    %1915 = vmatprep.subr.mxu0 0.0
    %1916 = vmatpush1.xpose.msra.mxu0 0.0
    %1917 = vmatprep.subr.mxu0 0.0
    %1918 = vmatpush1.xpose.msra.mxu0 0.0
    %1919 = vmatprep.subr.mxu0 0.0
    %1920 = vmatpush1.xpose.msra.mxu0 0.0
    %1921 = vmatprep.subr.mxu0 0.0
    %1922 = vmatpush1.xpose.msra.mxu0 0.0
    %1923 = vmatprep.subr.mxu0 0.0
    %1924 = vmatpush1.xpose.msra.mxu0 0.0
    %1925 = vmatprep.subr.mxu0 0.0
    %1926 = vmatpush1.xpose.msra.mxu0 0.0
    %1927 = vmatprep.subr.mxu0 0.0
    %1928 = vmatpush1.xpose.msra.mxu0 0.0
    %1929 = vmatprep.subr.mxu0 0.0
    %1930 = vmatpush1.xpose.msra.mxu0 0.0
    %1931 = vmatprep.subr.mxu0 0.0
    %1932 = vmatpush1.xpose.msra.mxu0 0.0
    %1933 = vmatprep.subr.mxu0 0.0
    %1934 = vmatpush1.xpose.msra.mxu0 0.0
    %1935 = vmatprep.subr.mxu0 0.0
    %1936 = vmatpush1.xpose.msra.mxu0 0.0
    %1937 = vmatprep.subr.mxu0 0.0
    %1938 = vmatpush1.xpose.msra.mxu0 0.0
    %1939 = vmatprep.subr.mxu0 0.0
    %1940 = vmatpush1.xpose.msra.mxu0 0.0
    %1941 = vmatprep.subr.mxu0 0.0
    %1942 = vmatpush1.xpose.msra.mxu0 0.0
    %1943 = vmatprep.subr.mxu0 0.0
    %1944 = vmatpush1.xpose.msra.mxu0 0.0
    %1945 = vmatprep.subr.mxu0 0.0
    %1946 = vmatpush1.xpose.msra.mxu0 0.0
    %1947 = vmatprep.subr.mxu0 0.0
    %1948 = vmatpush1.xpose.msra.mxu0 0.0
    %1949 = vmatprep.subr.mxu0 0.0
    %1950 = vmatpush1.xpose.msra.mxu0 0.0
    %1951 = vmatprep.subr.mxu0 0.0
    %1952 = vmatpush1.xpose.msra.mxu0 0.0
    %1953 = vmatprep.subr.mxu0 0.0
    %1954 = vmatpush1.xpose.msra.mxu0 0.0
    %1955 = vmatprep.subr.mxu0 0.0
    %1956 = vmatpush1.xpose.msra.mxu0 0.0
    %1957 = vmatprep.subr.mxu0 0.0
    %1958 = vmatpush1.xpose.msra.mxu0 0.0
    %1959 = vmatprep.subr.mxu0 0.0
    %1960 = vmatpush1.xpose.msra.mxu0 0.0
    %1961 = vmatprep.subr.mxu0 0.0
    %1962 = vmatpush1.xpose.msra.mxu0 0.0
    %1963 = vmatprep.mubr.f32.mxu0 0.0
    %1964 = vmatmul.mubr.f32.gmra.mrb[0].mxu0 %v1895
    %v1965 = vpop.f32.mrb[0].mxu0
    %v1966 = vadd.f32 0.0, %v1965
    %v1967 = vpop.f32.mrb[0].mxu0
    %1968 = vdwg.mxu0
    %v1969 = vmul.f32 %v1888, 0.25
    %v1970 = vmul.f32 %v1966, 0.25
    %v1971 = vadd.f32 %v1969, %v479
    %v1972 = vadd.f32 %v1970, %v483
    %v1973 = vsel %vm488, %v1971, -inf
    %1974 = vmax.xlane.f32.xlu0 %v1973
    %v1975 = vpop.xlane.xlu0 %1974
    %v1976 = vsel %vm488, %v1972, -inf
    %1977 = vmax.xlane.f32.xlu0 %v1976
    %v1978 = vpop.xlane.xlu0 %1977
    %v1979 = vsub.f32 %v1971, %v1975
    %v1980 = vsub.f32 %v1972, %v1978
    %v1981 = vmul.f32 %v1979, 1.442695
    %v1982 = vpow.pop %v1981
    %v1983 = vmul.f32 %v1980, 1.442695
    %v1984 = vpow.pop %v1983
    %v1985 = vsel %vm488, %v1982, 0.0
    %1986 = vadd.xlane.f32.xlu0 %v1985
    %v1987 = vpop.xlane.xlu0 %1986
    %v1988 = vsel %vm488, %v1984, 0.0
    %1989 = vadd.xlane.f32.xlu0 %v1988
    %v1990 = vpop.xlane.xlu0 %1989
    %v1991 = vrcp.pop %v1987
    %v1992 = vrcp.pop %v1990
    %v1993 = vmul.f32 %v1982, %v1991
    %v1994 = vmul.f32 %v1984, %v1992
    %1995 = vrot.lane.b32.xlu0 %v1473, 48
    %v1996 = vpop.permute.xlu0 %1995
    %v1999 = vsel %vm488, %v1993, 0
    %2001 = vmatprep.subr.mxu0 0.0
    %2002 = vmatpush1.msra.mxu0 %v1996
    %2003 = vmatprep.subr.mxu0 0.0
    %2004 = vmatpush1.msra.mxu0 0.0
    %2005 = vmatprep.subr.mxu0 0.0
    %2006 = vmatpush1.msra.mxu0 0.0
    %2007 = vmatprep.subr.mxu0 0.0
    %2008 = vmatpush1.msra.mxu0 0.0
    %2009 = vmatprep.subr.mxu0 0.0
    %2010 = vmatpush1.msra.mxu0 0.0
    %2011 = vmatprep.subr.mxu0 0.0
    %2012 = vmatpush1.msra.mxu0 0.0
    %2013 = vmatprep.subr.mxu0 0.0
    %2014 = vmatpush1.msra.mxu0 0.0
    %2015 = vmatprep.subr.mxu0 0.0
    %2016 = vmatpush1.msra.mxu0 0.0
    %2017 = vmatprep.subr.mxu0 0.0
    %2018 = vmatpush1.msra.mxu0 0.0
    %2019 = vmatprep.subr.mxu0 0.0
    %2020 = vmatpush1.msra.mxu0 0.0
    %2021 = vmatprep.subr.mxu0 0.0
    %2022 = vmatpush1.msra.mxu0 0.0
    %2023 = vmatprep.subr.mxu0 0.0
    %2024 = vmatpush1.msra.mxu0 0.0
    %2025 = vmatprep.subr.mxu0 0.0
    %2026 = vmatpush1.msra.mxu0 0.0
    %2027 = vmatprep.subr.mxu0 0.0
    %2028 = vmatpush1.msra.mxu0 0.0
    %2029 = vmatprep.subr.mxu0 0.0
    %2030 = vmatpush1.msra.mxu0 0.0
    %2031 = vmatprep.subr.mxu0 0.0
    %2032 = vmatpush1.msra.mxu0 0.0
    %2033 = vmatprep.subr.mxu0 0.0
    %2034 = vmatpush1.msra.mxu0 0.0
    %2035 = vmatprep.subr.mxu0 0.0
    %2036 = vmatpush1.msra.mxu0 0.0
    %2037 = vmatprep.subr.mxu0 0.0
    %2038 = vmatpush1.msra.mxu0 0.0
    %2039 = vmatprep.subr.mxu0 0.0
    %2040 = vmatpush1.msra.mxu0 0.0
    %2041 = vmatprep.subr.mxu0 0.0
    %2042 = vmatpush1.msra.mxu0 0.0
    %2043 = vmatprep.subr.mxu0 0.0
    %2044 = vmatpush1.msra.mxu0 0.0
    %2045 = vmatprep.subr.mxu0 0.0
    %2046 = vmatpush1.msra.mxu0 0.0
    %2047 = vmatprep.subr.mxu0 0.0
    %2048 = vmatpush1.msra.mxu0 0.0
    %2049 = vmatprep.subr.mxu0 0.0
    %2050 = vmatpush1.msra.mxu0 0.0
    %2051 = vmatprep.subr.mxu0 0.0
    %2052 = vmatpush1.msra.mxu0 0.0
    %2053 = vmatprep.subr.mxu0 0.0
    %2054 = vmatpush1.msra.mxu0 0.0
    %2055 = vmatprep.subr.mxu0 0.0
    %2056 = vmatpush1.msra.mxu0 0.0
    %2057 = vmatprep.subr.mxu0 0.0
    %2058 = vmatpush1.msra.mxu0 0.0
    %2059 = vmatprep.subr.mxu0 0.0
    %2060 = vmatpush1.msra.mxu0 0.0
    %2061 = vmatprep.subr.mxu0 0.0
    %2062 = vmatpush1.msra.mxu0 0.0
    %2063 = vmatprep.subr.mxu0 0.0
    %2064 = vmatpush1.msra.mxu0 0.0
    %2065 = vmatprep.mubr.f32.mxu0 0.0
    %2066 = vmatmul.mubr.f32.gmra.mrb[0].mxu0 %v1999
    %v2067 = vpop.f32.mrb[0].mxu0
    %v2068 = vadd.f32 0.0, %v2067
    %v2069 = vpop.f32.mrb[0].mxu0
    %2070 = vdwg.mxu0
    %2071 = vrot.lane.b32.xlu0 %v1478, 48
    %v2072 = vpop.permute.xlu0 %2071
    %v2075 = vsel %vm488, %v1994, 0
    %2077 = vmatprep.subr.mxu0 0.0
    %2078 = vmatpush1.msra.mxu0 %v2072
    %2079 = vmatprep.subr.mxu0 0.0
    %2080 = vmatpush1.msra.mxu0 0.0
    %2081 = vmatprep.subr.mxu0 0.0
    %2082 = vmatpush1.msra.mxu0 0.0
    %2083 = vmatprep.subr.mxu0 0.0
    %2084 = vmatpush1.msra.mxu0 0.0
    %2085 = vmatprep.subr.mxu0 0.0
    %2086 = vmatpush1.msra.mxu0 0.0
    %2087 = vmatprep.subr.mxu0 0.0
    %2088 = vmatpush1.msra.mxu0 0.0
    %2089 = vmatprep.subr.mxu0 0.0
    %2090 = vmatpush1.msra.mxu0 0.0
    %2091 = vmatprep.subr.mxu0 0.0
    %2092 = vmatpush1.msra.mxu0 0.0
    %2093 = vmatprep.subr.mxu0 0.0
    %2094 = vmatpush1.msra.mxu0 0.0
    %2095 = vmatprep.subr.mxu0 0.0
    %2096 = vmatpush1.msra.mxu0 0.0
    %2097 = vmatprep.subr.mxu0 0.0
    %2098 = vmatpush1.msra.mxu0 0.0
    %2099 = vmatprep.subr.mxu0 0.0
    %2100 = vmatpush1.msra.mxu0 0.0
    %2101 = vmatprep.subr.mxu0 0.0
    %2102 = vmatpush1.msra.mxu0 0.0
    %2103 = vmatprep.subr.mxu0 0.0
    %2104 = vmatpush1.msra.mxu0 0.0
    %2105 = vmatprep.subr.mxu0 0.0
    %2106 = vmatpush1.msra.mxu0 0.0
    %2107 = vmatprep.subr.mxu0 0.0
    %2108 = vmatpush1.msra.mxu0 0.0
    %2109 = vmatprep.subr.mxu0 0.0
    %2110 = vmatpush1.msra.mxu0 0.0
    %2111 = vmatprep.subr.mxu0 0.0
    %2112 = vmatpush1.msra.mxu0 0.0
    %2113 = vmatprep.subr.mxu0 0.0
    %2114 = vmatpush1.msra.mxu0 0.0
    %2115 = vmatprep.subr.mxu0 0.0
    %2116 = vmatpush1.msra.mxu0 0.0
    %2117 = vmatprep.subr.mxu0 0.0
    %2118 = vmatpush1.msra.mxu0 0.0
    %2119 = vmatprep.subr.mxu0 0.0
    %2120 = vmatpush1.msra.mxu0 0.0
    %2121 = vmatprep.subr.mxu0 0.0
    %2122 = vmatpush1.msra.mxu0 0.0
    %2123 = vmatprep.subr.mxu0 0.0
    %2124 = vmatpush1.msra.mxu0 0.0
    %2125 = vmatprep.subr.mxu0 0.0
    %2126 = vmatpush1.msra.mxu0 0.0
    %2127 = vmatprep.subr.mxu0 0.0
    %2128 = vmatpush1.msra.mxu0 0.0
    %2129 = vmatprep.subr.mxu0 0.0
    %2130 = vmatpush1.msra.mxu0 0.0
    %2131 = vmatprep.subr.mxu0 0.0
    %2132 = vmatpush1.msra.mxu0 0.0
    %2133 = vmatprep.subr.mxu0 0.0
    %2134 = vmatpush1.msra.mxu0 0.0
    %2135 = vmatprep.subr.mxu0 0.0
    %2136 = vmatpush1.msra.mxu0 0.0
    %2137 = vmatprep.subr.mxu0 0.0
    %2138 = vmatpush1.msra.mxu0 0.0
    %2139 = vmatprep.subr.mxu0 0.0
    %2140 = vmatpush1.msra.mxu0 0.0
    %2141 = vmatprep.mubr.f32.mxu0 0.0
    %2142 = vmatmul.mubr.f32.gmra.mrb[0].mxu0 %v2075
    %v2143 = vpop.f32.mrb[0].mxu0
    %v2144 = vadd.f32 0.0, %v2143
    %v2145 = vpop.f32.mrb[0].mxu0
    %2146 = vdwg.mxu0
    %2149 = vrot.lane.b32.xlu0 %v2068, 16
    %v2150 = vpop.permute.xlu0 %2149
    %2151 = vrot.lane.b32.xlu0 %v2144, 16
    %v2152 = vpop.permute.xlu0 %2151
    %v2155 = vsel %vm299, %v1734, %v2150
    %v2156 = vsel %vm299, %v1810, %v2152
    %v2157 = vlaneseq
    %v2158 = vshrl.u32 %v2157, 7
    %v2159 = vsub.s32 1, %v2158
    %v2160 = vrot.slane %v1386, %v2159
    %2165 = vrot.lane.b32.xlu0 %v1377, 32
    %v2166 = vpop.permute.xlu0 %2165
    %2167 = vrot.lane.b32.xlu0 %v1379, 32
    %v2168 = vpop.permute.xlu0 %2167
    %2169 = vrot.lane.b32.xlu0 %v1381, 32
    %v2170 = vpop.permute.xlu0 %2169
    %2171 = vrot.lane.b32.xlu0 %v1383, 32
    %v2172 = vpop.permute.xlu0 %2171
    %v2178 = vsel %vm151, %v2155, 0
    %v2181 = vsel %vm151, %v2156, 0
    %2183 = vmatprep.subr.mxu0 0.0
    %2184 = vmatpush1.msra.mxu0 %v2166
    %2185 = vmatprep.subr.mxu0 0.0
    %2186 = vmatpush1.msra.mxu0 %v2168
    %2187 = vmatprep.subr.mxu0 0.0
    %2188 = vmatpush1.msra.mxu0 %v2170
    %2189 = vmatprep.subr.mxu0 0.0
    %2190 = vmatpush1.msra.mxu0 %v2172
    %2191 = vmatprep.subr.mxu0 0.0
    %2192 = vmatpush1.msra.mxu0 0.0
    %2193 = vmatprep.subr.mxu0 0.0
    %2194 = vmatpush1.msra.mxu0 0.0
    %2195 = vmatprep.subr.mxu0 0.0
    %2196 = vmatpush1.msra.mxu0 0.0
    %2197 = vmatprep.subr.mxu0 0.0
    %2198 = vmatpush1.msra.mxu0 0.0
    %2199 = vmatprep.subr.mxu0 0.0
    %2200 = vmatpush1.msra.mxu0 0.0
    %2201 = vmatprep.subr.mxu0 0.0
    %2202 = vmatpush1.msra.mxu0 0.0
    %2203 = vmatprep.subr.mxu0 0.0
    %2204 = vmatpush1.msra.mxu0 0.0
    %2205 = vmatprep.subr.mxu0 0.0
    %2206 = vmatpush1.msra.mxu0 0.0
    %2207 = vmatprep.subr.mxu0 0.0
    %2208 = vmatpush1.msra.mxu0 0.0
    %2209 = vmatprep.subr.mxu0 0.0
    %2210 = vmatpush1.msra.mxu0 0.0
    %2211 = vmatprep.subr.mxu0 0.0
    %2212 = vmatpush1.msra.mxu0 0.0
    %2213 = vmatprep.subr.mxu0 0.0
    %2214 = vmatpush1.msra.mxu0 0.0
    %2215 = vmatprep.subr.mxu0 0.0
    %2216 = vmatpush1.msra.mxu0 0.0
    %2217 = vmatprep.subr.mxu0 0.0
    %2218 = vmatpush1.msra.mxu0 0.0
    %2219 = vmatprep.subr.mxu0 0.0
    %2220 = vmatpush1.msra.mxu0 0.0
    %2221 = vmatprep.subr.mxu0 0.0
    %2222 = vmatpush1.msra.mxu0 0.0
    %2223 = vmatprep.subr.mxu0 0.0
    %2224 = vmatpush1.msra.mxu0 0.0
    %2225 = vmatprep.subr.mxu0 0.0
    %2226 = vmatpush1.msra.mxu0 0.0
    %2227 = vmatprep.subr.mxu0 0.0
    %2228 = vmatpush1.msra.mxu0 0.0
    %2229 = vmatprep.subr.mxu0 0.0
    %2230 = vmatpush1.msra.mxu0 0.0
    %2231 = vmatprep.subr.mxu0 0.0
    %2232 = vmatpush1.msra.mxu0 0.0
    %2233 = vmatprep.subr.mxu0 0.0
    %2234 = vmatpush1.msra.mxu0 0.0
    %2235 = vmatprep.subr.mxu0 0.0
    %2236 = vmatpush1.msra.mxu0 0.0
    %2237 = vmatprep.subr.mxu0 0.0
    %2238 = vmatpush1.msra.mxu0 0.0
    %2239 = vmatprep.subr.mxu0 0.0
    %2240 = vmatpush1.msra.mxu0 0.0
    %2241 = vmatprep.subr.mxu0 0.0
    %2242 = vmatpush1.msra.mxu0 0.0
    %2243 = vmatprep.subr.mxu0 0.0
    %2244 = vmatpush1.msra.mxu0 0.0
    %2245 = vmatprep.subr.mxu0 0.0
    %2246 = vmatpush1.msra.mxu0 0.0
    %2247 = vmatprep.mubr.f32.mxu0 0.0
    %2248 = vmatmul.mubr.f32.gmra.mrb[0].mxu0 %v2178
    %v2249 = vpop.f32.mrb[0].mxu0
    %v2250 = vadd.f32 %v2160, %v2249
    %v2251 = vpop.f32.mrb[0].mxu0
    %2252 = vmatprep.mubr.f32.mxu0 0.0
    %2253 = vmatmul.mubr.f32.gmra.mrb[0].mxu0 %v2181
    %v2254 = vpop.f32.mrb[0].mxu0
    %v2255 = vadd.f32 %v2160, %v2254
    %v2256 = vpop.f32.mrb[0].mxu0
    %2257 = vdwg.mxu0
    %v2258 = vadd.f32 %v1374, %v2250
    %v2259 = vadd.f32 %v1375, %v2255
    %v2260 = vsel %vm151, %v2258, 0.0
    %2261 = vadd.xlane.f32.xlu0 %v2260
    %v2262 = vpop.xlane.xlu0 %2261
    %v2263 = vsel %vm151, %v2259, 0.0
    %2264 = vadd.xlane.f32.xlu0 %v2263
    %v2265 = vpop.xlane.xlu0 %2264
    %v2266 = vmul.f32 %v2262, %v158
    %v2267 = vmul.f32 %v2265, %v158
    %v2268 = vsub.f32 %v2258, %v2266
    %v2269 = vsub.f32 %v2259, %v2267
    %v2270 = vmul.f32 %v2268, %v2268
    %v2271 = vmul.f32 %v2269, %v2269
    %v2272 = vsel %vm151, %v2270, 0.0
    %2273 = vadd.xlane.f32.xlu0 %v2272
    %v2274 = vpop.xlane.xlu0 %2273
    %v2275 = vsel %vm151, %v2271, 0.0
    %2276 = vadd.xlane.f32.xlu0 %v2275
    %v2277 = vpop.xlane.xlu0 %2276
    %v2278 = vmul.f32 %v2274, %v158
    %v2279 = vmul.f32 %v2277, %v158
    %v2280 = vadd.f32 %v2278, 1e-12
    %v2281 = vadd.f32 %v2279, 1e-12
    %v2282 = vrsqrt.pop %v2280
    %v2283 = vrsqrt.pop %v2281
    %v2284 = vmul.f32 %v2268, %v2282
    %v2285 = vmul.f32 %v2269, %v2283
    %v2286 = vlaneseq
    %v2287 = vshrl.u32 %v2286, 7
    %v2288 = vsub.s32 2, %v2287
    %v2289 = vrot.slane %v1386, %v2288
    %v2290 = vmul.f32 %v2284, %v2289
    %v2291 = vmul.f32 %v2285, %v2289
    %v2292 = vlaneseq
    %v2293 = vshrl.u32 %v2292, 7
    %v2294 = vsub.s32 3, %v2293
    %v2295 = vrot.slane %v1386, %v2294
    %v2296 = vadd.f32 %v2290, %v2295
    %v2297 = vadd.f32 %v2291, %v2295
    %v2298 = vlaneseq
    %v2299 = vshrl.u32 %v2298, 7
    %v2300 = vsub.s32 4, %v2299
    %v2301 = vrot.slane %v1386, %v2300
    %v2303 = vsel %vm151, %v2296, 0
    %v2306 = vsel %vm151, %v2297, 0
    %2308 = vmatprep.subr.mxu0 0.0
    %2309 = vmatpush1.msra.mxu0 %v1378
    %2310 = vmatprep.subr.mxu0 0.0
    %2311 = vmatpush1.msra.mxu0 %v1380
    %2312 = vmatprep.subr.mxu0 0.0
    %2313 = vmatpush1.msra.mxu0 %v1382
    %2314 = vmatprep.subr.mxu0 0.0
    %2315 = vmatpush1.msra.mxu0 %v1384
    %2316 = vmatprep.subr.mxu0 0.0
    %2317 = vmatpush1.msra.mxu0 0.0
    %2318 = vmatprep.subr.mxu0 0.0
    %2319 = vmatpush1.msra.mxu0 0.0
    %2320 = vmatprep.subr.mxu0 0.0
    %2321 = vmatpush1.msra.mxu0 0.0
    %2322 = vmatprep.subr.mxu0 0.0
    %2323 = vmatpush1.msra.mxu0 0.0
    %2324 = vmatprep.subr.mxu0 0.0
    %2325 = vmatpush1.msra.mxu0 0.0
    %2326 = vmatprep.subr.mxu0 0.0
    %2327 = vmatpush1.msra.mxu0 0.0
    %2328 = vmatprep.subr.mxu0 0.0
    %2329 = vmatpush1.msra.mxu0 0.0
    %2330 = vmatprep.subr.mxu0 0.0
    %2331 = vmatpush1.msra.mxu0 0.0
    %2332 = vmatprep.subr.mxu0 0.0
    %2333 = vmatpush1.msra.mxu0 0.0
    %2334 = vmatprep.subr.mxu0 0.0
    %2335 = vmatpush1.msra.mxu0 0.0
    %2336 = vmatprep.subr.mxu0 0.0
    %2337 = vmatpush1.msra.mxu0 0.0
    %2338 = vmatprep.subr.mxu0 0.0
    %2339 = vmatpush1.msra.mxu0 0.0
    %2340 = vmatprep.subr.mxu0 0.0
    %2341 = vmatpush1.msra.mxu0 0.0
    %2342 = vmatprep.subr.mxu0 0.0
    %2343 = vmatpush1.msra.mxu0 0.0
    %2344 = vmatprep.subr.mxu0 0.0
    %2345 = vmatpush1.msra.mxu0 0.0
    %2346 = vmatprep.subr.mxu0 0.0
    %2347 = vmatpush1.msra.mxu0 0.0
    %2348 = vmatprep.subr.mxu0 0.0
    %2349 = vmatpush1.msra.mxu0 0.0
    %2350 = vmatprep.subr.mxu0 0.0
    %2351 = vmatpush1.msra.mxu0 0.0
    %2352 = vmatprep.subr.mxu0 0.0
    %2353 = vmatpush1.msra.mxu0 0.0
    %2354 = vmatprep.subr.mxu0 0.0
    %2355 = vmatpush1.msra.mxu0 0.0
    %2356 = vmatprep.subr.mxu0 0.0
    %2357 = vmatpush1.msra.mxu0 0.0
    %2358 = vmatprep.subr.mxu0 0.0
    %2359 = vmatpush1.msra.mxu0 0.0
    %2360 = vmatprep.subr.mxu0 0.0
    %2361 = vmatpush1.msra.mxu0 0.0
    %2362 = vmatprep.subr.mxu0 0.0
    %2363 = vmatpush1.msra.mxu0 0.0
    %2364 = vmatprep.subr.mxu0 0.0
    %2365 = vmatpush1.msra.mxu0 0.0
    %2366 = vmatprep.subr.mxu0 0.0
    %2367 = vmatpush1.msra.mxu0 0.0
    %2368 = vmatprep.subr.mxu0 0.0
    %2369 = vmatpush1.msra.mxu0 0.0
    %2370 = vmatprep.subr.mxu0 0.0
    %2371 = vmatpush1.msra.mxu0 0.0
    %2372 = vmatprep.mubr.f32.mxu0 0.0
    %2373 = vmatmul.mubr.f32.gmra.mrb[0].mxu0 %v2303
    %v2374 = vpop.f32.mrb[0].mxu0
    %v2375 = vadd.f32 %v2301, %v2374
    %v2376 = vpop.f32.mrb[0].mxu0
    %2377 = vmatprep.mubr.f32.mxu0 0.0
    %2378 = vmatmul.mubr.f32.gmra.mrb[0].mxu0 %v2306
    %v2379 = vpop.f32.mrb[0].mxu0
    %v2380 = vadd.f32 %v2301, %v2379
    %v2381 = vpop.f32.mrb[0].mxu0
    %2382 = vdwg.mxu0
    %v2383 = vmul.f32 %v2375, %v2375
    %v2384 = vmul.f32 %v2380, %v2380
    %v2385 = vmul.f32 %v2375, %v2383
    %v2386 = vmul.f32 %v2380, %v2384
    %v2387 = vmul.f32 %v2385, 0.044715
    %v2388 = vmul.f32 %v2386, 0.044715
    %v2389 = vadd.f32 %v2375, %v2387
    %v2390 = vadd.f32 %v2380, %v2388
    %v2391 = vmul.f32 %v2389, 0.7978846
    %v2392 = vmul.f32 %v2390, 0.7978846
    %v2393 = vtanh.pop %v2391
    %v2394 = vtanh.pop %v2392
    %v2395 = vadd.f32 %v2393, 1.0
    %v2396 = vadd.f32 %v2394, 1.0
    %v2397 = vmul.f32 %v2395, 0.5
    %v2398 = vmul.f32 %v2396, 0.5
    %v2399 = vmul.f32 %v2375, %v2397
    %v2400 = vmul.f32 %v2380, %v2398
    %v2401 = vlaneseq
    %v2402 = vshrl.u32 %v2401, 7
    %v2403 = vsub.s32 5, %v2402
    %v2404 = vrot.slane %v1386, %v2403
    %v2406 = vsel %vm69, %v2399, 0
    %v2409 = vsel %vm69, %v2400, 0
    %2411 = vmatprep.subr.mxu0 0.0
    %2412 = vmatpush1.msra.mxu0 %v1388
    %2413 = vmatprep.subr.mxu0 0.0
    %2414 = vmatpush1.msra.mxu0 %v1389
    %2415 = vmatprep.subr.mxu0 0.0
    %2416 = vmatpush1.msra.mxu0 %v1390
    %2417 = vmatprep.subr.mxu0 0.0
    %2418 = vmatpush1.msra.mxu0 %v1391
    %2419 = vmatprep.subr.mxu0 0.0
    %2420 = vmatpush1.msra.mxu0 %v1392
    %2421 = vmatprep.subr.mxu0 0.0
    %2422 = vmatpush1.msra.mxu0 %v1393
    %2423 = vmatprep.subr.mxu0 0.0
    %2424 = vmatpush1.msra.mxu0 %v1394
    %2425 = vmatprep.subr.mxu0 0.0
    %2426 = vmatpush1.msra.mxu0 %v1395
    %2427 = vmatprep.subr.mxu0 0.0
    %2428 = vmatpush1.msra.mxu0 0.0
    %2429 = vmatprep.subr.mxu0 0.0
    %2430 = vmatpush1.msra.mxu0 0.0
    %2431 = vmatprep.subr.mxu0 0.0
    %2432 = vmatpush1.msra.mxu0 0.0
    %2433 = vmatprep.subr.mxu0 0.0
    %2434 = vmatpush1.msra.mxu0 0.0
    %2435 = vmatprep.subr.mxu0 0.0
    %2436 = vmatpush1.msra.mxu0 0.0
    %2437 = vmatprep.subr.mxu0 0.0
    %2438 = vmatpush1.msra.mxu0 0.0
    %2439 = vmatprep.subr.mxu0 0.0
    %2440 = vmatpush1.msra.mxu0 0.0
    %2441 = vmatprep.subr.mxu0 0.0
    %2442 = vmatpush1.msra.mxu0 0.0
    %2443 = vmatprep.subr.mxu0 0.0
    %2444 = vmatpush1.msra.mxu0 0.0
    %2445 = vmatprep.subr.mxu0 0.0
    %2446 = vmatpush1.msra.mxu0 0.0
    %2447 = vmatprep.subr.mxu0 0.0
    %2448 = vmatpush1.msra.mxu0 0.0
    %2449 = vmatprep.subr.mxu0 0.0
    %2450 = vmatpush1.msra.mxu0 0.0
    %2451 = vmatprep.subr.mxu0 0.0
    %2452 = vmatpush1.msra.mxu0 0.0
    %2453 = vmatprep.subr.mxu0 0.0
    %2454 = vmatpush1.msra.mxu0 0.0
    %2455 = vmatprep.subr.mxu0 0.0
    %2456 = vmatpush1.msra.mxu0 0.0
    %2457 = vmatprep.subr.mxu0 0.0
    %2458 = vmatpush1.msra.mxu0 0.0
    %2459 = vmatprep.subr.mxu0 0.0
    %2460 = vmatpush1.msra.mxu0 0.0
    %2461 = vmatprep.subr.mxu0 0.0
    %2462 = vmatpush1.msra.mxu0 0.0
    %2463 = vmatprep.subr.mxu0 0.0
    %2464 = vmatpush1.msra.mxu0 0.0
    %2465 = vmatprep.subr.mxu0 0.0
    %2466 = vmatpush1.msra.mxu0 0.0
    %2467 = vmatprep.subr.mxu0 0.0
    %2468 = vmatpush1.msra.mxu0 0.0
    %2469 = vmatprep.subr.mxu0 0.0
    %2470 = vmatpush1.msra.mxu0 0.0
    %2471 = vmatprep.subr.mxu0 0.0
    %2472 = vmatpush1.msra.mxu0 0.0
    %2473 = vmatprep.subr.mxu0 0.0
    %2474 = vmatpush1.msra.mxu0 0.0
    %2475 = vmatprep.mubr.f32.mxu0 0.0
    %2476 = vmatmul.mubr.f32.gmra.mrb[0].mxu0 %v2406
    %v2477 = vpop.f32.mrb[0].mxu0
    %v2478 = vadd.f32 %v2404, %v2477
    %v2479 = vpop.f32.mrb[0].mxu0
    %2480 = vmatprep.mubr.f32.mxu0 0.0
    %2481 = vmatmul.mubr.f32.gmra.mrb[0].mxu0 %v2409
    %v2482 = vpop.f32.mrb[0].mxu0
    %v2483 = vadd.f32 %v2404, %v2482
    %v2484 = vpop.f32.mrb[0].mxu0
    %2485 = vdwg.mxu0
    %v2486 = vadd.f32 %v2296, %v2478
    %v2487 = vadd.f32 %v2297, %v2483
    %v2488 = vsel %vm151, %v2486, 0.0
    %2489 = vadd.xlane.f32.xlu0 %v2488
    %v2490 = vpop.xlane.xlu0 %2489
    %v2491 = vsel %vm151, %v2487, 0.0
    %2492 = vadd.xlane.f32.xlu0 %v2491
    %v2493 = vpop.xlane.xlu0 %2492
    %v2494 = vmul.f32 %v2490, %v158
    %v2495 = vmul.f32 %v2493, %v158
    %v2496 = vsub.f32 %v2486, %v2494
    %v2497 = vsub.f32 %v2487, %v2495
    %v2498 = vmul.f32 %v2496, %v2496
    %v2499 = vmul.f32 %v2497, %v2497
    %v2500 = vsel %vm151, %v2498, 0.0
    %2501 = vadd.xlane.f32.xlu0 %v2500
    %v2502 = vpop.xlane.xlu0 %2501
    %v2503 = vsel %vm151, %v2499, 0.0
    %2504 = vadd.xlane.f32.xlu0 %v2503
    %v2505 = vpop.xlane.xlu0 %2504
    %v2506 = vmul.f32 %v2502, %v158
    %v2507 = vmul.f32 %v2505, %v158
    %v2508 = vadd.f32 %v2506, 1e-12
    %v2509 = vadd.f32 %v2507, 1e-12
    %v2510 = vrsqrt.pop %v2508
    %v2511 = vrsqrt.pop %v2509
    %v2512 = vmul.f32 %v2496, %v2510
    %v2513 = vmul.f32 %v2497, %v2511
    %v2514 = vlaneseq
    %v2515 = vshrl.u32 %v2514, 7
    %v2516 = vsub.s32 6, %v2515
    %v2517 = vrot.slane %v1386, %v2516
    %v2518 = vmul.f32 %v2512, %v2517
    %v2519 = vmul.f32 %v2513, %v2517
    %v2520 = vlaneseq
    %v2521 = vshrl.u32 %v2520, 7
    %v2522 = vsub.s32 7, %v2521
    %v2523 = vrot.slane %v1386, %v2522
    %v2524 = vadd.f32 %v2518, %v2523
    %v2525 = vadd.f32 %v2519, %v2523
    %vm2526 = vcmp.eq.s32.totalorder %v30, 3
    %v2527 = vsel %vm2526, 1, 0
    %v2528 = vcvt.s32.f32 %v2527
    %v2529 = vlaneseq
    %v2530 = vshrl.u32 %v2529, 7
    %v2531 = vsub.s32 0, %v2530
    %v2532 = vrot.slane %v2528, %v2531
    %2534 = vbcast.lane.b32.xlu0 %v2532, 256
    %v2535 = vpop.permute.xlu0 %2534
    %v2536 = vlaneseq
    %v2537 = vshrl.u32 %v2536, 7
    %v2538 = vsub.s32 1, %v2537
    %v2539 = vrot.slane %v2528, %v2538
    %2541 = vbcast.lane.b32.xlu0 %v2539, 256
    %v2542 = vpop.permute.xlu0 %2541
    %vm2543 = vcmp.eq.s32.totalorder %v30, 4
    %v2544 = vsel %vm2543, 1, 0
    %v2545 = vcvt.s32.f32 %v2544
    %v2546 = vlaneseq
    %v2547 = vshrl.u32 %v2546, 7
    %v2548 = vsub.s32 0, %v2547
    %v2549 = vrot.slane %v2545, %v2548
    %2551 = vbcast.lane.b32.xlu0 %v2549, 256
    %v2552 = vpop.permute.xlu0 %2551
    %v2553 = vlaneseq
    %v2554 = vshrl.u32 %v2553, 7
    %v2555 = vsub.s32 1, %v2554
    %v2556 = vrot.slane %v2545, %v2555
    %2558 = vbcast.lane.b32.xlu0 %v2556, 256
    %v2559 = vpop.permute.xlu0 %2558
    %v2560 = vmul.f32 %v2535, %v2524
    %v2561 = vmul.f32 %v2542, %v2525
    %v2562 = vsel %vm151, %v2560, 0.0
    %v2563 = vrot.slane %v2562, 4
    %v2564 = vadd.f32 %v2562, %v2563
    %v2565 = vrot.slane %v2564, 2
    %v2566 = vadd.f32 %v2564, %v2565
    %v2567 = vrot.slane %v2566, 1
    %v2568 = vadd.f32 %v2566, %v2567
    %v2569 = vsel %vm151, %v2561, 0.0
    %v2570 = vrot.slane %v2569, 4
    %v2571 = vadd.f32 %v2569, %v2570
    %v2572 = vrot.slane %v2571, 2
    %v2573 = vadd.f32 %v2571, %v2572
    %v2574 = vrot.slane %v2573, 1
    %v2575 = vadd.f32 %v2573, %v2574
    %v2576 = vmul.f32 %v2552, %v2524
    %v2577 = vmul.f32 %v2559, %v2525
    %v2578 = vsel %vm151, %v2576, 0.0
    %v2579 = vrot.slane %v2578, 4
    %v2580 = vadd.f32 %v2578, %v2579
    %v2581 = vrot.slane %v2580, 2
    %v2582 = vadd.f32 %v2580, %v2581
    %v2583 = vrot.slane %v2582, 1
    %v2584 = vadd.f32 %v2582, %v2583
    %v2585 = vsel %vm151, %v2577, 0.0
    %v2586 = vrot.slane %v2585, 4
    %v2587 = vadd.f32 %v2585, %v2586
    %v2588 = vrot.slane %v2587, 2
    %v2589 = vadd.f32 %v2587, %v2588
    %v2590 = vrot.slane %v2589, 1
    %v2591 = vadd.f32 %v2589, %v2590
    %vm2594 = vcmask 1041409
    %v2595 = vsel %vm2594, %v2575, %v2568
    %vm2597 = vcmask 254976
    %v2598 = vsel %vm2597, %v2595, 0.0
    %2599 = vadd.xlane.f32.xlu0 %v2598
    %v2600 = vpop.xlane.xlu0 %2599
    %v2603 = vsel %vm2594, %v2591, %v2584
    %v2605 = vsel %vm2597, %v2603, 0.0
    %2606 = vadd.xlane.f32.xlu0 %v2605
    %v2607 = vpop.xlane.xlu0 %2606
    %v2608 = vadd.f32 %v2600, %v2607
    %v2609 = vrcp.pop 64.0
    %v2610 = vmul.f32 %v2608, %v2609
    %v2612 = vrot.slane %v2610, 1
    %v2615 = vsub.f32 %v2568, %v2610
    %v2616 = vsub.f32 %v2575, %v2612
    %v2617 = vsub.f32 %v2584, %v2610
    %v2618 = vsub.f32 %v2591, %v2612
    %v2619 = vmul.f32 %v2615, %v2615
    %v2620 = vmul.f32 %v2616, %v2616
    %v2623 = vrot.slane %v2620, 7
    %v2624 = vsel %vm2594, %v2623, %v2619
    %v2626 = vsel %vm2597, %v2624, 0.0
    %2627 = vadd.xlane.f32.xlu0 %v2626
    %v2628 = vpop.xlane.xlu0 %2627
    %v2629 = vmul.f32 %v2617, %v2617
    %v2630 = vmul.f32 %v2618, %v2618
    %v2633 = vrot.slane %v2630, 7
    %v2634 = vsel %vm2594, %v2633, %v2629
    %v2636 = vsel %vm2597, %v2634, 0.0
    %2637 = vadd.xlane.f32.xlu0 %v2636
    %v2638 = vpop.xlane.xlu0 %2637
    %v2639 = vadd.f32 %v2628, %v2638
    %v2640 = vmul.f32 %v2639, %v2609
    %v2641 = vadd.f32 %v2640, 1e-05
    %v2642 = vrsqrt.pop %v2641
    %v2644 = vrot.slane %v2642, 1
    %v2647 = vmul.f32 %v2615, %v2642
    %v2648 = vmul.f32 %v2616, %v2644
    %v2649 = vlaneseq
    %v2650 = vshrl.u32 %v2649, 7
    %v2651 = vsub.s32 2, %v2650
    %v2652 = vrot.slane %v32, %v2651
    %v2653 = vmul.f32 %v2647, %v2652
    %v2654 = vmul.f32 %v2648, %v2652
    %v2655 = vlaneseq
    %v2656 = vshrl.u32 %v2655, 7
    %v2657 = vsub.s32 4, %v2656
    %v2658 = vrot.slane %v32, %v2657
    %v2659 = vadd.f32 %v2653, %v2658
    %v2660 = vadd.f32 %v2654, %v2658
    %v2661 = vmul.f32 %v2617, %v2642
    %v2662 = vmul.f32 %v2618, %v2644
    %v2663 = vlaneseq
    %v2664 = vshrl.u32 %v2663, 7
    %v2665 = vsub.s32 3, %v2664
    %v2666 = vrot.slane %v32, %v2665
    %v2667 = vmul.f32 %v2661, %v2666
    %v2668 = vmul.f32 %v2662, %v2666
    %v2669 = vlaneseq
    %v2670 = vshrl.u32 %v2669, 7
    %v2671 = vsub.s32 5, %v2670
    %v2672 = vrot.slane %v32, %v2671
    %v2673 = vadd.f32 %v2667, %v2672
    %v2674 = vadd.f32 %v2668, %v2672
    %v2675 = vld [vmem:[%s7] sm:$0xff]
    %v2676 = vld [vmem:[%s7 + $0x8] sm:$0xff]
    %v2677 = vld [vmem:[%s7 + $0x10] sm:$0xff]
    %v2678 = vld [vmem:[%s7 + $0x18] sm:$0xff]
    %v2679 = vld [vmem:[%s7 + $0x20] sm:$0xff]
    %v2680 = vld [vmem:[%s7 + $0x28] sm:$0xff]
    %v2681 = vld [vmem:[%s7 + $0x30] sm:$0xff]
    %v2682 = vld [vmem:[%s7 + $0x38] sm:$0xff]
    %v2685 = vrot.slane %v2674, 7
    %v2686 = vsel %vm2594, %v2685, %v2673
    %v2687 = vsel %vm151, %v2686, 0
    %2689 = vmatprep.subr.mxu0 0.0
    %2690 = vmatpush1.msra.mxu0 %v2679
    %2691 = vmatprep.subr.mxu0 0.0
    %2692 = vmatpush1.msra.mxu0 %v2680
    %2693 = vmatprep.subr.mxu0 0.0
    %2694 = vmatpush1.msra.mxu0 %v2681
    %2695 = vmatprep.subr.mxu0 0.0
    %2696 = vmatpush1.msra.mxu0 %v2682
    %2697 = vmatprep.subr.mxu0 0.0
    %2698 = vmatpush1.msra.mxu0 0.0
    %2699 = vmatprep.subr.mxu0 0.0
    %2700 = vmatpush1.msra.mxu0 0.0
    %2701 = vmatprep.subr.mxu0 0.0
    %2702 = vmatpush1.msra.mxu0 0.0
    %2703 = vmatprep.subr.mxu0 0.0
    %2704 = vmatpush1.msra.mxu0 0.0
    %2705 = vmatprep.subr.mxu0 0.0
    %2706 = vmatpush1.msra.mxu0 0.0
    %2707 = vmatprep.subr.mxu0 0.0
    %2708 = vmatpush1.msra.mxu0 0.0
    %2709 = vmatprep.subr.mxu0 0.0
    %2710 = vmatpush1.msra.mxu0 0.0
    %2711 = vmatprep.subr.mxu0 0.0
    %2712 = vmatpush1.msra.mxu0 0.0
    %2713 = vmatprep.subr.mxu0 0.0
    %2714 = vmatpush1.msra.mxu0 0.0
    %2715 = vmatprep.subr.mxu0 0.0
    %2716 = vmatpush1.msra.mxu0 0.0
    %2717 = vmatprep.subr.mxu0 0.0
    %2718 = vmatpush1.msra.mxu0 0.0
    %2719 = vmatprep.subr.mxu0 0.0
    %2720 = vmatpush1.msra.mxu0 0.0
    %2721 = vmatprep.subr.mxu0 0.0
    %2722 = vmatpush1.msra.mxu0 0.0
    %2723 = vmatprep.subr.mxu0 0.0
    %2724 = vmatpush1.msra.mxu0 0.0
    %2725 = vmatprep.subr.mxu0 0.0
    %2726 = vmatpush1.msra.mxu0 0.0
    %2727 = vmatprep.subr.mxu0 0.0
    %2728 = vmatpush1.msra.mxu0 0.0
    %2729 = vmatprep.subr.mxu0 0.0
    %2730 = vmatpush1.msra.mxu0 0.0
    %2731 = vmatprep.subr.mxu0 0.0
    %2732 = vmatpush1.msra.mxu0 0.0
    %2733 = vmatprep.subr.mxu0 0.0
    %2734 = vmatpush1.msra.mxu0 0.0
    %2735 = vmatprep.subr.mxu0 0.0
    %2736 = vmatpush1.msra.mxu0 0.0
    %2737 = vmatprep.subr.mxu0 0.0
    %2738 = vmatpush1.msra.mxu0 0.0
    %2739 = vmatprep.subr.mxu0 0.0
    %2740 = vmatpush1.msra.mxu0 0.0
    %2741 = vmatprep.subr.mxu0 0.0
    %2742 = vmatpush1.msra.mxu0 0.0
    %2743 = vmatprep.subr.mxu0 0.0
    %2744 = vmatpush1.msra.mxu0 0.0
    %2745 = vmatprep.subr.mxu0 0.0
    %2746 = vmatpush1.msra.mxu0 0.0
    %2747 = vmatprep.subr.mxu0 0.0
    %2748 = vmatpush1.msra.mxu0 0.0
    %2749 = vmatprep.subr.mxu0 0.0
    %2750 = vmatpush1.msra.mxu0 0.0
    %2751 = vmatprep.subr.mxu0 0.0
    %2752 = vmatpush1.msra.mxu0 0.0
    %2753 = vmatprep.mubr.f32.mxu0 0.0
    %2754 = vmatmul.mubr.f32.gmra.mrb[0].mxu0 %v2687
    %v2755 = vpop.f32.mrb[0].mxu0
    %v2756 = vadd.f32 0.0, %v2755
    %v2757 = vpop.f32.mrb[0].mxu0
    %2758 = vdwg.mxu0
    %v2761 = vrot.slane %v2660, 7
    %v2762 = vsel %vm2594, %v2761, %v2659
    %v2763 = vsel %vm151, %v2762, 0
    %2765 = vmatprep.subr.mxu0 0.0
    %2766 = vmatpush1.msra.mxu0 %v2675
    %2767 = vmatprep.subr.mxu0 0.0
    %2768 = vmatpush1.msra.mxu0 %v2676
    %2769 = vmatprep.subr.mxu0 0.0
    %2770 = vmatpush1.msra.mxu0 %v2677
    %2771 = vmatprep.subr.mxu0 0.0
    %2772 = vmatpush1.msra.mxu0 %v2678
    %2773 = vmatprep.subr.mxu0 0.0
    %2774 = vmatpush1.msra.mxu0 0.0
    %2775 = vmatprep.subr.mxu0 0.0
    %2776 = vmatpush1.msra.mxu0 0.0
    %2777 = vmatprep.subr.mxu0 0.0
    %2778 = vmatpush1.msra.mxu0 0.0
    %2779 = vmatprep.subr.mxu0 0.0
    %2780 = vmatpush1.msra.mxu0 0.0
    %2781 = vmatprep.subr.mxu0 0.0
    %2782 = vmatpush1.msra.mxu0 0.0
    %2783 = vmatprep.subr.mxu0 0.0
    %2784 = vmatpush1.msra.mxu0 0.0
    %2785 = vmatprep.subr.mxu0 0.0
    %2786 = vmatpush1.msra.mxu0 0.0
    %2787 = vmatprep.subr.mxu0 0.0
    %2788 = vmatpush1.msra.mxu0 0.0
    %2789 = vmatprep.subr.mxu0 0.0
    %2790 = vmatpush1.msra.mxu0 0.0
    %2791 = vmatprep.subr.mxu0 0.0
    %2792 = vmatpush1.msra.mxu0 0.0
    %2793 = vmatprep.subr.mxu0 0.0
    %2794 = vmatpush1.msra.mxu0 0.0
    %2795 = vmatprep.subr.mxu0 0.0
    %2796 = vmatpush1.msra.mxu0 0.0
    %2797 = vmatprep.subr.mxu0 0.0
    %2798 = vmatpush1.msra.mxu0 0.0
    %2799 = vmatprep.subr.mxu0 0.0
    %2800 = vmatpush1.msra.mxu0 0.0
    %2801 = vmatprep.subr.mxu0 0.0
    %2802 = vmatpush1.msra.mxu0 0.0
    %2803 = vmatprep.subr.mxu0 0.0
    %2804 = vmatpush1.msra.mxu0 0.0
    %2805 = vmatprep.subr.mxu0 0.0
    %2806 = vmatpush1.msra.mxu0 0.0
    %2807 = vmatprep.subr.mxu0 0.0
    %2808 = vmatpush1.msra.mxu0 0.0
    %2809 = vmatprep.subr.mxu0 0.0
    %2810 = vmatpush1.msra.mxu0 0.0
    %2811 = vmatprep.subr.mxu0 0.0
    %2812 = vmatpush1.msra.mxu0 0.0
    %2813 = vmatprep.subr.mxu0 0.0
    %2814 = vmatpush1.msra.mxu0 0.0
    %2815 = vmatprep.subr.mxu0 0.0
    %2816 = vmatpush1.msra.mxu0 0.0
    %2817 = vmatprep.subr.mxu0 0.0
    %2818 = vmatpush1.msra.mxu0 0.0
    %2819 = vmatprep.subr.mxu0 0.0
    %2820 = vmatpush1.msra.mxu0 0.0
    %2821 = vmatprep.subr.mxu0 0.0
    %2822 = vmatpush1.msra.mxu0 0.0
    %2823 = vmatprep.subr.mxu0 0.0
    %2824 = vmatpush1.msra.mxu0 0.0
    %2825 = vmatprep.subr.mxu0 0.0
    %2826 = vmatpush1.msra.mxu0 0.0
    %2827 = vmatprep.subr.mxu0 0.0
    %2828 = vmatpush1.msra.mxu0 0.0
    %2829 = vmatprep.mubr.f32.mxu0 0.0
    %2830 = vmatmul.mubr.f32.gmra.mrb[0].mxu0 %v2763
    %v2831 = vpop.f32.mrb[0].mxu0
    %v2832 = vadd.f32 %v2756, %v2831
    %v2833 = vpop.f32.mrb[0].mxu0
    %2834 = vdwg.mxu0
    %v2835 = vlaneseq
    %v2836 = vshrl.u32 %v2835, 7
    %v2837 = vsub.s32 6, %v2836
    %v2838 = vrot.slane %v32, %v2837
    %v2839 = vadd.f32 %v2832, %v2838
    %vm2840 = vcmask 25600
    %2841 = vst.msk [vmem:[#allocation2] sm:$0x3] %vm2840, %v2839
    // Predicated region
    $region34: #{relationship_encoder_forward.1} parent=1 // pred_check
      _
    $region35: #{relationship_encoder_forward.1} parent=1 // pred_check_branch
      %2843 = sbr.rel (0) target = $region37
    $region36: #{relationship_encoder_forward.1} parent=1 // pred_region
      %s2845 = ssub.s32 32, 32
      %2846 = vsyncadd [#allocation3], %s2845
      %s2848 = sshll.u32 [#allocation2], 4
      %s2849 = int_to_ptr.vmem [resolvable:$true] %s2848
      %2851 = dma.vmem_to_hbm [thread:$0]  %s2849, 32, %s8, [#allocation3]
    $region37: #{relationship_encoder_forward.1} parent=1 // pred_fallthru
      _
    // Predicated region
    $region38: #{relationship_encoder_forward.1} parent=1 // pred_check
      _
    $region39: #{relationship_encoder_forward.1} parent=1 // pred_check_branch
      %2853 = sbr.rel (0) target = $region41
    $region40: #{relationship_encoder_forward.1} parent=1 // pred_region
      %2854 = dma.done [#allocation3], 32
    $region41: #{relationship_encoder_forward.1} parent=1 // pred_fallthru
      _
    %2855 = vsyncpa [#allocation3], 1

</llo_original>
